<compile_context>
chip_gen: v5e
topology: v5e:2x2
jax: 0.10.0
libtpu: 0.0.40
codegen_flags: <defaults>
</compile_context>

<pallas_src>
import numpy as np
import jax
import jax.numpy as jnp
from jax.experimental import pallas as pl
from jax.experimental.pallas import tpu as pltpu


def _triplet_wrt_kernel(x_ref, xt_ref, sqc_ref, sqr_ref, tc_ref, tr_ref, vr_ref,
                        sp_ref, ge_ref):
    # x_ref : (TILE_M, Dpad)  features for this row tile (f32 or bf16)
    # xt_ref: (Dpad,  Npad)   full transposed features   (f32 or bf16, resident)
    # sqc_ref:(TILE_M, 1)     ||x_i||^2 for this row tile (f32)
    # sqr_ref:(1,  Npad)      ||x_j||^2 for all columns   (f32)
    # tc_ref: (TILE_M, 1)     int32 labels for this tile (-1 sentinel for pads)
    # tr_ref: (1,  Npad)      int32 labels for all columns
    # vr_ref: (1,  Npad)      f32 column validity mask (1.0 = real sample)
    # sp_ref: (TILE_M, 1)     per-row SoftMargin term  log(1 + exp(-(cn - fp)))
    # ge_ref: (TILE_M, 1)     per-row 1.0 if closest_negative >= furthest_positive

    # pdist_torch panel: ||a||^2 + ||b||^2 - 2 a.b, clamp(1e-12), sqrt  (MXU + VPU)
    gram = jnp.dot(x_ref[...], xt_ref[...],
                   preferred_element_type=jnp.float32)            # (TILE_M, Npad)
    dist2 = (sqc_ref[...] + sqr_ref[...]) - 2.0 * gram
    dist = jnp.sqrt(jnp.maximum(dist2, 1e-12))

    # positive / negative pair masks (padded columns excluded via the validity row).
    # Trimmed VPU form: one select + one subtract instead of cast + 2 muls + sub.
    eq = tc_ref[...] == tr_ref[...]                                # (TILE_M, Npad) bool
    v = vr_ref[...]                                                # (1, Npad) f32 in {0,1}
    is_pos = jnp.where(eq, v, 0.0)                                 # eq * v
    is_neg = v - is_pos                                            # (1 - eq) * v

    # ---- fused softmax-weighted reductions (one exp per matrix, no weight matrices) ----
    # furthest_positive = sum(dist_ap * softmax_weights(dist_ap, is_pos))
    dist_ap = dist * is_pos                                        # already masked
    max_ap = jnp.max(dist_ap, axis=1, keepdims=True)
    e_ap = jnp.exp(dist_ap - max_ap) * is_pos
    z_ap = jnp.sum(e_ap, axis=1, keepdims=True) + 1e-6             # (TILE_M, 1)
    fp = jnp.sum(dist_ap * e_ap, axis=1, keepdims=True) / z_ap

    # closest_negative = sum(dist_an * softmax_weights(-dist_an, is_neg))
    dist_an = dist * is_neg
    neg = -dist_an                                                 # already masked
    max_an = jnp.max(neg, axis=1, keepdims=True)
    e_an = jnp.exp(neg - max_an) * is_neg
    z_an = jnp.sum(e_an, axis=1, keepdims=True) + 1e-6
    cn = jnp.sum(dist_an * e_an, axis=1, keepdims=True) / z_an

    # SoftMarginLoss(x, y=1) term:  log(1 + exp(-(cn - fp)))  (numerically stable)
    z = cn - fp
    sp_ref[...] = jnp.maximum(-z, 0.0) + jnp.log1p(jnp.exp(-jnp.abs(z)))
    ge_ref[...] = (cn >= fp).astype(jnp.float32)


# Lazily resolved: does the installed Pallas accept pl.Buffered(buffer_count=1)
# as pipeline_mode for grid-invariant inputs?  (True/False after first call.)
_BUFFERED_INVARIANT_SUPPORTED = None


def _vmem_budget_cap():
    """~85% of physical VMEM (64 MiB on v7x, 128 MiB on v5e/v6e), with a safe fallback."""
    try:
        info = pltpu.get_tpu_info()
        phys = int(info.vmem_capacity_bytes)
        return max(int(phys * 0.85), 32 * 1024 * 1024)
    except Exception:
        return 64 * 1024 * 1024


def triplet_loss_wrt(inputs, targets, normalize_feature=False,
                     tile_m=256, mxu_dtype=jnp.bfloat16):
    """Pallas implementation of TripletLoss_WRT.forward.

    inputs:  (N, D) float features
    targets: (N,)   integer identity labels
    returns: (loss scalar f32, correct count i32)

    mxu_dtype: dtype of the MXU operands only (gram is accumulated in f32).
      Default bf16 (2-4x faster matmul + half the resident VMEM on v5e/v6e/v7x);
      pass jnp.float32 for exact parity with the f32 PyTorch reference.
    """
    global _BUFFERED_INVARIANT_SUPPORTED

    inputs = jnp.asarray(inputs, jnp.float32)
    targets = jnp.asarray(targets, jnp.int32)
    N, D = inputs.shape

    if normalize_feature:
        # glue (matches torch `normalize`): unit-length along last axis
        inputs = inputs / (jnp.linalg.norm(inputs, ord=2, axis=-1, keepdims=True) + 1e-12)

    # N padded to a lane multiple (128): N is the last dim of every NxN panel.
    n_pad = int(np.ceil(N / 128)) * 128
    d_pad = int(np.ceil(D / 128)) * 128
    tile_m = int(min(tile_m, n_pad))
    if tile_m % 8 != 0 or n_pad % tile_m != 0:
        tile_m = 128                     # n_pad is always a multiple of 128
    num_tiles = n_pad // tile_m
    # (v7x note: an even num_tiles keeps both TensorCores busy; not forced here to avoid
    #  doubling the padding for small batches.)

    x = jnp.zeros((n_pad, d_pad), jnp.float32).at[:N, :D].set(inputs)
    sq_col = jnp.sum(x * x, axis=1, keepdims=True)                  # (n_pad, 1) f32
    sq_row = sq_col.reshape(1, n_pad)                               # (1, n_pad)
    t_col = jnp.full((n_pad, 1), -1, jnp.int32).at[:N, 0].set(targets)
    t_row = t_col.reshape(1, n_pad)
    v_row = jnp.zeros((1, n_pad), jnp.float32).at[0, :N].set(1.0)

    # MXU operands (bf16 by default); squared norms stay f32.
    x_mxu = x.astype(mxu_dtype)
    xt_mxu = x_mxu.T                                                # (d_pad, n_pad)
    itemsize = jnp.dtype(mxu_dtype).itemsize

    cost = pl.CostEstimate(
        flops=2 * n_pad * n_pad * d_pad + 16 * n_pad * n_pad,
        transcendentals=3 * n_pad * n_pad,
        bytes_accessed=2 * n_pad * d_pad * itemsize + 8 * n_pad * 4,
    )

    # Working-set estimate: resident x^T (+ its extra copy if double-buffered),
    # double-buffered x row tiles, and headroom for the live (TILE_M, Npad) f32 panels.
    xt_bytes = d_pad * n_pad * itemsize
    row_tile_bytes = tile_m * d_pad * itemsize
    panel_bytes = tile_m * n_pad * 4
    vmem_cap = _vmem_budget_cap()

    def _build(single_buffer_invariant):
        if single_buffer_invariant:
            def inv(shape):
                return pl.BlockSpec(shape, lambda i: (0, 0),
                                    pipeline_mode=pl.Buffered(buffer_count=1))
            xt_total = xt_bytes
        else:
            def inv(shape):
                return pl.BlockSpec(shape, lambda i: (0, 0))
            xt_total = 2 * xt_bytes
        est = xt_total + 2 * row_tile_bytes + 12 * panel_bytes + 2 * (1 << 20)
        vmem_limit = int(min(max(est, 32 * 1024 * 1024), vmem_cap))
        return pl.pallas_call(
            _triplet_wrt_kernel,
            out_shape=(jax.ShapeDtypeStruct((n_pad, 1), jnp.float32),
                       jax.ShapeDtypeStruct((n_pad, 1), jnp.float32)),
            grid_spec=pltpu.PrefetchScalarGridSpec(
                num_scalar_prefetch=0,
                grid=(num_tiles,),
                in_specs=[
                    pl.BlockSpec((tile_m, d_pad), lambda i: (i, 0)),  # x row tile (streamed)
                    inv((d_pad, n_pad)),                              # x^T (resident, 1-buffered)
                    pl.BlockSpec((tile_m, 1), lambda i: (i, 0)),      # sq col tile
                    inv((1, n_pad)),                                  # sq row
                    pl.BlockSpec((tile_m, 1), lambda i: (i, 0)),      # labels col tile
                    inv((1, n_pad)),                                  # labels row
                    inv((1, n_pad)),                                  # validity row
                ],
                out_specs=(pl.BlockSpec((tile_m, 1), lambda i: (i, 0)),
                           pl.BlockSpec((tile_m, 1), lambda i: (i, 0))),
            ),
            compiler_params=pltpu.CompilerParams(
                dimension_semantics=("parallel",),
                vmem_limit_bytes=vmem_limit),
            cost_estimate=cost,
        )

    if _BUFFERED_INVARIANT_SUPPORTED is None:
        attempts = (True, False)
    else:
        attempts = (_BUFFERED_INVARIANT_SUPPORTED,)

    sp = ge = None
    last_err = None
    for use_single in attempts:
        try:
            sp, ge = _build(use_single)(x_mxu, xt_mxu, sq_col, sq_row,
                                        t_col, t_row, v_row)
            _BUFFERED_INVARIANT_SUPPORTED = use_single
            break
        except Exception as e:          # fall back to default double-buffering
            last_err = e
            sp = ge = None
    if sp is None:
        raise last_err

    # O(N) finalization (mean over real rows / correct count) in the wrapper so
    # the row-tile grid axis stays fully parallel.
    loss = jnp.mean(sp[:N, 0])
    correct = jnp.sum(ge[:N, 0]).astype(jnp.int32)
    return loss, correct


def _reference_jax(inputs, targets, normalize_feature=False):
    """Pure-JAX reference replicating the PyTorch semantics exactly."""
    inputs = jnp.asarray(inputs, jnp.float32)
    if normalize_feature:
        inputs = inputs / (jnp.linalg.norm(inputs, axis=-1, keepdims=True) + 1e-12)
    sq = jnp.sum(inputs ** 2, axis=1, keepdims=True)
    dist = jnp.sqrt(jnp.maximum(sq + sq.T - 2.0 * inputs @ inputs.T, 1e-12))
    t = jnp.asarray(targets).reshape(-1, 1)
    is_pos = (t == t.T).astype(jnp.float32)
    is_neg = 1.0 - is_pos
    dist_ap = dist * is_pos
    dist_an = dist * is_neg

    def sw(d, m):
        mx = jnp.max(d * m, axis=1, keepdims=True)
        z = jnp.sum(jnp.exp(d - mx) * m, axis=1, keepdims=True) + 1e-6
        return jnp.exp(d - mx) * m / z

    fp = jnp.sum(dist_ap * sw(dist_ap, is_pos), axis=1)
    cn = jnp.sum(dist_an * sw(-dist_an, is_neg), axis=1)
    z = cn - fp
    loss = jnp.mean(jnp.maximum(-z, 0.0) + jnp.log1p(jnp.exp(-jnp.abs(z))))
    correct = jnp.sum(cn >= fp).astype(jnp.int32)
    return loss, correct


if __name__ == "__main__":
    key = jax.random.PRNGKey(0)
    k1, k2 = jax.random.split(key)

    # --- Test 1: small batch (4 identities x 2 samples), single row tile, f32 MXU (exact) ---
    N1, D1 = 8, 32
    feats1 = jax.random.normal(k1, (N1, D1), dtype=jnp.float32)
    labels1 = jnp.array([0, 0, 1, 1, 2, 2, 3, 3], dtype=jnp.int32)

    loss1, correct1 = triplet_loss_wrt(feats1, labels1, normalize_feature=False,
                                       mxu_dtype=jnp.float32)
    loss1 = jax.block_until_ready(loss1)
    correct1 = jax.block_until_ready(correct1)
    ref_loss1, ref_correct1 = _reference_jax(feats1, labels1, normalize_feature=False)
    assert np.allclose(np.asarray(loss1), np.asarray(ref_loss1), atol=1e-4), (loss1, ref_loss1)
    assert int(correct1) == int(ref_correct1), (correct1, ref_correct1)

    # --- Test 2a: 32 identities x 8 samples, default TILE_M=256 (single tile), normalized ---
    N2, D2 = 256, 64
    feats2 = jax.random.normal(k2, (N2, D2), dtype=jnp.float32)
    labels2 = jnp.repeat(jnp.arange(32, dtype=jnp.int32), 8)

    loss2, correct2 = triplet_loss_wrt(feats2, labels2, normalize_feature=True,
                                       mxu_dtype=jnp.float32)
    loss2 = jax.block_until_ready(loss2)
    correct2 = jax.block_until_ready(correct2)
    ref_loss2, ref_correct2 = _reference_jax(feats2, labels2, normalize_feature=True)
    assert np.allclose(np.asarray(loss2), np.asarray(ref_loss2), atol=1e-3), (loss2, ref_loss2)
    assert int(correct2) == int(ref_correct2), (correct2, ref_correct2)

    # --- Test 2b: same batch with TILE_M=128 -> 2 row tiles (multi-step grid path) ---
    loss2b, correct2b = triplet_loss_wrt(feats2, labels2, normalize_feature=True,
                                         tile_m=128, mxu_dtype=jnp.float32)
    loss2b = jax.block_until_ready(loss2b)
    assert np.allclose(np.asarray(loss2b), np.asarray(ref_loss2), atol=1e-3), (loss2b, ref_loss2)
    assert int(correct2b) == int(ref_correct2), (correct2b, ref_correct2)

    # --- Test 3: default bf16 MXU fast path (v5e/v6e/v7x); loose tolerance vs f32 reference ---
    loss3, correct3 = triplet_loss_wrt(feats1, labels1)           # defaults: bf16, TILE_M=256
    loss3 = jax.block_until_ready(loss3)
    assert np.isfinite(np.asarray(loss3))
    assert abs(float(loss3) - float(ref_loss1)) < 0.1, (loss3, ref_loss1)

    loss4, correct4 = triplet_loss_wrt(feats2, labels2, normalize_feature=True)
    loss4 = jax.block_until_ready(loss4)
    assert np.isfinite(np.asarray(loss4))
    assert abs(float(loss4) - float(ref_loss2)) < 0.1, (loss4, ref_loss2)

    print("KERNEL_OK")
</pallas_src>

<mosaic_0001>
module attributes {stable_mosaic.version = 11 : i64} {
  func.func @_triplet_wrt_kernel(%arg0: i32, %arg1: memref<128x128xf32, #tpu.memory_space<vmem>>, %arg2: memref<128x128xf32, #tpu.memory_space<vmem>>, %arg3: memref<128x1xf32, #tpu.memory_space<vmem>>, %arg4: memref<1x128xf32, #tpu.memory_space<vmem>>, %arg5: memref<128x1xi32, #tpu.memory_space<vmem>>, %arg6: memref<1x128xi32, #tpu.memory_space<vmem>>, %arg7: memref<1x128xf32, #tpu.memory_space<vmem>>, %arg8: memref<128x1xf32, #tpu.memory_space<vmem>>, %arg9: memref<128x1xf32, #tpu.memory_space<vmem>>) attributes {dimension_semantics = [#tpu.dimension_semantics<parallel>], iteration_bounds = array<i64: 1>, scalar_prefetch = 0 : i64, scratch_operands = 0 : i64, tpu.core_type = #tpu.core_type<tc>, window_params = [{transform_indices = @transform_0, window_bounds = array<i64: 128, 128>}, {pipeline_mode = #tpu.pipeline_mode<synchronous>, transform_indices = @transform_1, window_bounds = array<i64: 128, 128>}, {transform_indices = @transform_2, window_bounds = array<i64: 128, 1>}, {pipeline_mode = #tpu.pipeline_mode<synchronous>, transform_indices = @transform_3, window_bounds = array<i64: 1, 128>}, {transform_indices = @transform_4, window_bounds = array<i64: 128, 1>}, {pipeline_mode = #tpu.pipeline_mode<synchronous>, transform_indices = @transform_5, window_bounds = array<i64: 1, 128>}, {pipeline_mode = #tpu.pipeline_mode<synchronous>, transform_indices = @transform_6, window_bounds = array<i64: 1, 128>}, {transform_indices = @transform_7, window_bounds = array<i64: 128, 1>}, {transform_indices = @transform_8, window_bounds = array<i64: 128, 1>}]} {
    %c0 = arith.constant 0 : index
    %c0_0 = arith.constant 0 : index
    %0 = vector.load %arg1[%c0, %c0_0] : memref<128x128xf32, #tpu.memory_space<vmem>>, vector<128x128xf32>
    %c0_1 = arith.constant 0 : index
    %c0_2 = arith.constant 0 : index
    %1 = vector.load %arg2[%c0_1, %c0_2] : memref<128x128xf32, #tpu.memory_space<vmem>>, vector<128x128xf32>
    %cst = arith.constant dense<0.000000e+00> : vector<128x128xf32>
    %2 = tpu.matmul %0, %1, %cst {dimension_numbers = #tpu.dot_dimension_numbers<[1], [0], [0], [1], [0, 0, 1, 1], [], []>} : vector<128x128xf32>, vector<128x128xf32>, vector<128x128xf32> -> vector<128x128xf32>
    %c0_3 = arith.constant 0 : index
    %c0_4 = arith.constant 0 : index
    %3 = vector.load %arg3[%c0_3, %c0_4] : memref<128x1xf32, #tpu.memory_space<vmem>>, vector<128x1xf32>
    %c0_5 = arith.constant 0 : index
    %c0_6 = arith.constant 0 : index
    %4 = vector.load %arg4[%c0_5, %c0_6] : memref<1x128xf32, #tpu.memory_space<vmem>>, vector<1x128xf32>
    %5 = vector.broadcast %3 : vector<128x1xf32> to vector<128x128xf32>
    %6 = vector.broadcast %4 : vector<1x128xf32> to vector<128x128xf32>
    %7 = arith.addf %5, %6 : vector<128x128xf32>
    %cst_7 = arith.constant 2.000000e+00 : f32
    %8 = vector.broadcast %cst_7 : f32 to vector<128x128xf32>
    %9 = arith.mulf %8, %2 : vector<128x128xf32>
    %10 = arith.subf %7, %9 : vector<128x128xf32>
    %cst_8 = arith.constant 9.99999996E-13 : f32
    %11 = vector.broadcast %cst_8 : f32 to vector<128x128xf32>
    %12 = arith.maximumf %10, %11 : vector<128x128xf32>
    %13 = math.sqrt %12 : vector<128x128xf32>
    %c0_9 = arith.constant 0 : index
    %c0_10 = arith.constant 0 : index
    %14 = vector.load %arg5[%c0_9, %c0_10] : memref<128x1xi32, #tpu.memory_space<vmem>>, vector<128x1xi32>
    %c0_11 = arith.constant 0 : index
    %c0_12 = arith.constant 0 : index
    %15 = vector.load %arg6[%c0_11, %c0_12] : memref<1x128xi32, #tpu.memory_space<vmem>>, vector<1x128xi32>
    %16 = vector.broadcast %14 : vector<128x1xi32> to vector<128x128xi32>
    %17 = vector.broadcast %15 : vector<1x128xi32> to vector<128x128xi32>
    %18 = arith.cmpi eq, %16, %17 : vector<128x128xi32>
    %c0_13 = arith.constant 0 : index
    %c0_14 = arith.constant 0 : index
    %19 = vector.load %arg7[%c0_13, %c0_14] : memref<1x128xf32, #tpu.memory_space<vmem>>, vector<1x128xf32>
    %cst_15 = arith.constant 0.000000e+00 : f32
    %20 = vector.shape_cast %19 : vector<1x128xf32> to vector<1x128xf32>
    %21 = vector.broadcast %20 : vector<1x128xf32> to vector<128x128xf32>
    %22 = vector.broadcast %cst_15 : f32 to vector<128x128xf32>
    %23 = arith.select %18, %21, %22 : vector<128x128xi1>, vector<128x128xf32>
    %24 = vector.broadcast %19 : vector<1x128xf32> to vector<128x128xf32>
    %25 = arith.subf %24, %23 : vector<128x128xf32>
    %26 = arith.mulf %13, %23 : vector<128x128xf32>
    %cst_16 = arith.constant dense<0xFF800000> : vector<128xf32>
    %27 = vector.multi_reduction <maximumf>, %26, %cst_16 [1] : vector<128x128xf32> to vector<128xf32>
    %28 = vector.shape_cast %27 : vector<128xf32> to vector<128x1xf32>
    %29 = vector.broadcast %28 : vector<128x1xf32> to vector<128x128xf32>
    %30 = arith.subf %26, %29 : vector<128x128xf32>
    %31 = math.exp %30 : vector<128x128xf32>
    %32 = arith.mulf %31, %23 : vector<128x128xf32>
    %cst_17 = arith.constant dense<0.000000e+00> : vector<128xf32>
    %33 = vector.multi_reduction <add>, %32, %cst_17 [1] : vector<128x128xf32> to vector<128xf32>
    %34 = vector.shape_cast %33 : vector<128xf32> to vector<128x1xf32>
    %cst_18 = arith.constant 9.99999997E-7 : f32
    %35 = vector.broadcast %cst_18 : f32 to vector<128x1xf32>
    %36 = arith.addf %34, %35 : vector<128x1xf32>
    %37 = arith.mulf %26, %32 : vector<128x128xf32>
    %cst_19 = arith.constant dense<0.000000e+00> : vector<128xf32>
    %38 = vector.multi_reduction <add>, %37, %cst_19 [1] : vector<128x128xf32> to vector<128xf32>
    %39 = vector.shape_cast %38 : vector<128xf32> to vector<128x1xf32>
    %40 = arith.divf %39, %36 : vector<128x1xf32>
    %41 = arith.mulf %13, %25 : vector<128x128xf32>
    %cst_20 = arith.constant 0.000000e+00 : f32
    %42 = vector.broadcast %cst_20 : f32 to vector<128x128xf32>
    %43 = arith.subf %42, %41 : vector<128x128xf32>
    %cst_21 = arith.constant dense<0xFF800000> : vector<128xf32>
    %44 = vector.multi_reduction <maximumf>, %43, %cst_21 [1] : vector<128x128xf32> to vector<128xf32>
    %45 = vector.shape_cast %44 : vector<128xf32> to vector<128x1xf32>
    %46 = vector.broadcast %45 : vector<128x1xf32> to vector<128x128xf32>
    %47 = arith.subf %43, %46 : vector<128x128xf32>
    %48 = math.exp %47 : vector<128x128xf32>
    %49 = arith.mulf %48, %25 : vector<128x128xf32>
    %cst_22 = arith.constant dense<0.000000e+00> : vector<128xf32>
    %50 = vector.multi_reduction <add>, %49, %cst_22 [1] : vector<128x128xf32> to vector<128xf32>
    %51 = vector.shape_cast %50 : vector<128xf32> to vector<128x1xf32>
    %cst_23 = arith.constant 9.99999997E-7 : f32
    %52 = vector.broadcast %cst_23 : f32 to vector<128x1xf32>
    %53 = arith.addf %51, %52 : vector<128x1xf32>
    %54 = arith.mulf %41, %49 : vector<128x128xf32>
    %cst_24 = arith.constant dense<0.000000e+00> : vector<128xf32>
    %55 = vector.multi_reduction <add>, %54, %cst_24 [1] : vector<128x128xf32> to vector<128xf32>
    %56 = vector.shape_cast %55 : vector<128xf32> to vector<128x1xf32>
    %57 = arith.divf %56, %53 : vector<128x1xf32>
    %58 = arith.subf %57, %40 : vector<128x1xf32>
    %cst_25 = arith.constant 0.000000e+00 : f32
    %59 = vector.broadcast %cst_25 : f32 to vector<128x1xf32>
    %60 = arith.subf %59, %58 : vector<128x1xf32>
    %cst_26 = arith.constant 0.000000e+00 : f32
    %61 = vector.broadcast %cst_26 : f32 to vector<128x1xf32>
    %62 = arith.maximumf %60, %61 : vector<128x1xf32>
    %63 = math.absf %58 : vector<128x1xf32>
    %cst_27 = arith.constant 0.000000e+00 : f32
    %64 = vector.broadcast %cst_27 : f32 to vector<128x1xf32>
    %65 = arith.subf %64, %63 : vector<128x1xf32>
    %66 = math.exp %65 : vector<128x1xf32>
    %67 = math.log1p %66 : vector<128x1xf32>
    %68 = arith.addf %62, %67 : vector<128x1xf32>
    %c0_28 = arith.constant 0 : index
    %c0_29 = arith.constant 0 : index
    %69 = vector.load %arg8[%c0_28, %c0_29] : memref<128x1xf32, #tpu.memory_space<vmem>>, vector<128x1xf32>
    tpu.vector_store %arg8[%c0_28, %c0_29], %68 {strides = array<i32>} : memref<128x1xf32, #tpu.memory_space<vmem>>, vector<128x1xf32>,
    %70 = arith.cmpf oge, %57, %40 : vector<128x1xf32>
    %71 = arith.extui %70 : vector<128x1xi1> to vector<128x1xi32>
    %72 = arith.sitofp %71 : vector<128x1xi32> to vector<128x1xf32>
    %c0_30 = arith.constant 0 : index
    %c0_31 = arith.constant 0 : index
    %73 = vector.load %arg9[%c0_30, %c0_31] : memref<128x1xf32, #tpu.memory_space<vmem>>, vector<128x1xf32>
    tpu.vector_store %arg9[%c0_30, %c0_31], %72 {strides = array<i32>} : memref<128x1xf32, #tpu.memory_space<vmem>>, vector<128x1xf32>,
    return
  }
  func.func @transform_0(%arg0: i32) -> (i32, i32) {
    %c0_i32 = arith.constant 0 : i32
    %c0_i32_0 = arith.constant 0 : i32
    return %arg0, %c0_i32 : i32, i32
  }
  func.func @transform_1(%arg0: i32) -> (i32, i32) {
    %c0_i32 = arith.constant 0 : i32
    %c0_i32_0 = arith.constant 0 : i32
    %c0_i32_1 = arith.constant 0 : i32
    return %c0_i32, %c0_i32_0 : i32, i32
  }
  func.func @transform_2(%arg0: i32) -> (i32, i32) {
    %c0_i32 = arith.constant 0 : i32
    %c0_i32_0 = arith.constant 0 : i32
    return %arg0, %c0_i32 : i32, i32
  }
  func.func @transform_3(%arg0: i32) -> (i32, i32) {
    %c0_i32 = arith.constant 0 : i32
    %c0_i32_0 = arith.constant 0 : i32
    %c0_i32_1 = arith.constant 0 : i32
    return %c0_i32, %c0_i32_0 : i32, i32
  }
  func.func @transform_4(%arg0: i32) -> (i32, i32) {
    %c0_i32 = arith.constant 0 : i32
    %c0_i32_0 = arith.constant 0 : i32
    return %arg0, %c0_i32 : i32, i32
  }
  func.func @transform_5(%arg0: i32) -> (i32, i32) {
    %c0_i32 = arith.constant 0 : i32
    %c0_i32_0 = arith.constant 0 : i32
    %c0_i32_1 = arith.constant 0 : i32
    return %c0_i32, %c0_i32_0 : i32, i32
  }
  func.func @transform_6(%arg0: i32) -> (i32, i32) {
    %c0_i32 = arith.constant 0 : i32
    %c0_i32_0 = arith.constant 0 : i32
    %c0_i32_1 = arith.constant 0 : i32
    return %c0_i32, %c0_i32_0 : i32, i32
  }
  func.func @transform_7(%arg0: i32) -> (i32, i32) {
    %c0_i32 = arith.constant 0 : i32
    %c0_i32_0 = arith.constant 0 : i32
    return %arg0, %c0_i32 : i32, i32
  }
  func.func @transform_8(%arg0: i32) -> (i32, i32) {
    %c0_i32 = arith.constant 0 : i32
    %c0_i32_0 = arith.constant 0 : i32
    return %arg0, %c0_i32 : i32, i32
  }
}

module attributes {stable_mosaic.version = 11 : i64} {
  func.func @_triplet_wrt_kernel(%arg0: i32, %arg1: memref<128x128xf32, #tpu.memory_space<vmem>>, %arg2: memref<128x128xf32, #tpu.memory_space<vmem>>, %arg3: memref<128x1xf32, #tpu.memory_space<vmem>>, %arg4: memref<1x128xf32, #tpu.memory_space<vmem>>, %arg5: memref<128x1xi32, #tpu.memory_space<vmem>>, %arg6: memref<1x128xi32, #tpu.memory_space<vmem>>, %arg7: memref<1x128xf32, #tpu.memory_space<vmem>>, %arg8: memref<128x1xf32, #tpu.memory_space<vmem>>, %arg9: memref<128x1xf32, #tpu.memory_space<vmem>>) attributes {dimension_semantics = [#tpu.dimension_semantics<parallel>], iteration_bounds = array<i64: 1>, scalar_prefetch = 0 : i64, scratch_operands = 0 : i64, tpu.core_type = #tpu.core_type<tc>, window_params = [{transform_indices = @transform_0, window_bounds = array<i64: 128, 128>}, {pipeline_mode = #tpu.pipeline_mode<synchronous>, transform_indices = @transform_1, window_bounds = array<i64: 128, 128>}, {transform_indices = @transform_2, window_bounds = array<i64: 128, 1>}, {pipeline_mode = #tpu.pipeline_mode<synchronous>, transform_indices = @transform_3, window_bounds = array<i64: 1, 128>}, {transform_indices = @transform_4, window_bounds = array<i64: 128, 1>}, {pipeline_mode = #tpu.pipeline_mode<synchronous>, transform_indices = @transform_5, window_bounds = array<i64: 1, 128>}, {pipeline_mode = #tpu.pipeline_mode<synchronous>, transform_indices = @transform_6, window_bounds = array<i64: 1, 128>}, {transform_indices = @transform_7, window_bounds = array<i64: 128, 1>}, {transform_indices = @transform_8, window_bounds = array<i64: 128, 1>}]} {
    %c0 = arith.constant 0 : index
    %c0_0 = arith.constant 0 : index
    %0 = vector.load %arg1[%c0, %c0_0] : memref<128x128xf32, #tpu.memory_space<vmem>>, vector<128x128xf32>
    %c0_1 = arith.constant 0 : index
    %c0_2 = arith.constant 0 : index
    %1 = vector.load %arg2[%c0_1, %c0_2] : memref<128x128xf32, #tpu.memory_space<vmem>>, vector<128x128xf32>
    %cst = arith.constant dense<0.000000e+00> : vector<128x128xf32>
    %2 = tpu.matmul %0, %1, %cst {dimension_numbers = #tpu.dot_dimension_numbers<[1], [0], [0], [1], [0, 0, 1, 1], [], []>} : vector<128x128xf32>, vector<128x128xf32>, vector<128x128xf32> -> vector<128x128xf32>
    %c0_3 = arith.constant 0 : index
    %c0_4 = arith.constant 0 : index
    %3 = vector.load %arg3[%c0_3, %c0_4] : memref<128x1xf32, #tpu.memory_space<vmem>>, vector<128x1xf32>
    %c0_5 = arith.constant 0 : index
    %c0_6 = arith.constant 0 : index
    %4 = vector.load %arg4[%c0_5, %c0_6] : memref<1x128xf32, #tpu.memory_space<vmem>>, vector<1x128xf32>
    %5 = vector.broadcast %3 : vector<128x1xf32> to vector<128x128xf32>
    %6 = vector.broadcast %4 : vector<1x128xf32> to vector<128x128xf32>
    %7 = arith.addf %5, %6 : vector<128x128xf32>
    %cst_7 = arith.constant 2.000000e+00 : f32
    %8 = vector.broadcast %cst_7 : f32 to vector<128x128xf32>
    %9 = arith.mulf %8, %2 : vector<128x128xf32>
    %10 = arith.subf %7, %9 : vector<128x128xf32>
    %cst_8 = arith.constant 9.99999996E-13 : f32
    %11 = vector.broadcast %cst_8 : f32 to vector<128x128xf32>
    %12 = arith.maximumf %10, %11 : vector<128x128xf32>
    %13 = math.sqrt %12 : vector<128x128xf32>
    %c0_9 = arith.constant 0 : index
    %c0_10 = arith.constant 0 : index
    %14 = vector.load %arg5[%c0_9, %c0_10] : memref<128x1xi32, #tpu.memory_space<vmem>>, vector<128x1xi32>
    %c0_11 = arith.constant 0 : index
    %c0_12 = arith.constant 0 : index
    %15 = vector.load %arg6[%c0_11, %c0_12] : memref<1x128xi32, #tpu.memory_space<vmem>>, vector<1x128xi32>
    %16 = vector.broadcast %14 : vector<128x1xi32> to vector<128x128xi32>
    %17 = vector.broadcast %15 : vector<1x128xi32> to vector<128x128xi32>
    %18 = arith.cmpi eq, %16, %17 : vector<128x128xi32>
    %c0_13 = arith.constant 0 : index
    %c0_14 = arith.constant 0 : index
    %19 = vector.load %arg7[%c0_13, %c0_14] : memref<1x128xf32, #tpu.memory_space<vmem>>, vector<1x128xf32>
    %cst_15 = arith.constant 0.000000e+00 : f32
    %20 = vector.shape_cast %19 : vector<1x128xf32> to vector<1x128xf32>
    %21 = vector.broadcast %20 : vector<1x128xf32> to vector<128x128xf32>
    %22 = vector.broadcast %cst_15 : f32 to vector<128x128xf32>
    %23 = arith.select %18, %21, %22 : vector<128x128xi1>, vector<128x128xf32>
    %24 = vector.broadcast %19 : vector<1x128xf32> to vector<128x128xf32>
    %25 = arith.subf %24, %23 : vector<128x128xf32>
    %26 = arith.mulf %13, %23 : vector<128x128xf32>
    %cst_16 = arith.constant dense<0xFF800000> : vector<128xf32>
    %27 = vector.multi_reduction <maximumf>, %26, %cst_16 [1] : vector<128x128xf32> to vector<128xf32>
    %28 = vector.shape_cast %27 : vector<128xf32> to vector<128x1xf32>
    %29 = vector.broadcast %28 : vector<128x1xf32> to vector<128x128xf32>
    %30 = arith.subf %26, %29 : vector<128x128xf32>
    %31 = math.exp %30 : vector<128x128xf32>
    %32 = arith.mulf %31, %23 : vector<128x128xf32>
    %cst_17 = arith.constant dense<0.000000e+00> : vector<128xf32>
    %33 = vector.multi_reduction <add>, %32, %cst_17 [1] : vector<128x128xf32> to vector<128xf32>
    %34 = vector.shape_cast %33 : vector<128xf32> to vector<128x1xf32>
    %cst_18 = arith.constant 9.99999997E-7 : f32
    %35 = vector.broadcast %cst_18 : f32 to vector<128x1xf32>
    %36 = arith.addf %34, %35 : vector<128x1xf32>
    %37 = arith.mulf %26, %32 : vector<128x128xf32>
    %cst_19 = arith.constant dense<0.000000e+00> : vector<128xf32>
    %38 = vector.multi_reduction <add>, %37, %cst_19 [1] : vector<128x128xf32> to vector<128xf32>
    %39 = vector.shape_cast %38 : vector<128xf32> to vector<128x1xf32>
    %40 = arith.divf %39, %36 : vector<128x1xf32>
    %41 = arith.mulf %13, %25 : vector<128x128xf32>
    %cst_20 = arith.constant 0.000000e+00 : f32
    %42 = vector.broadcast %cst_20 : f32 to vector<128x128xf32>
    %43 = arith.subf %42, %41 : vector<128x128xf32>
    %cst_21 = arith.constant dense<0xFF800000> : vector<128xf32>
    %44 = vector.multi_reduction <maximumf>, %43, %cst_21 [1] : vector<128x128xf32> to vector<128xf32>
    %45 = vector.shape_cast %44 : vector<128xf32> to vector<128x1xf32>
    %46 = vector.broadcast %45 : vector<128x1xf32> to vector<128x128xf32>
    %47 = arith.subf %43, %46 : vector<128x128xf32>
    %48 = math.exp %47 : vector<128x128xf32>
    %49 = arith.mulf %48, %25 : vector<128x128xf32>
    %cst_22 = arith.constant dense<0.000000e+00> : vector<128xf32>
    %50 = vector.multi_reduction <add>, %49, %cst_22 [1] : vector<128x128xf32> to vector<128xf32>
    %51 = vector.shape_cast %50 : vector<128xf32> to vector<128x1xf32>
    %cst_23 = arith.constant 9.99999997E-7 : f32
    %52 = vector.broadcast %cst_23 : f32 to vector<128x1xf32>
    %53 = arith.addf %51, %52 : vector<128x1xf32>
    %54 = arith.mulf %41, %49 : vector<128x128xf32>
    %cst_24 = arith.constant dense<0.000000e+00> : vector<128xf32>
    %55 = vector.multi_reduction <add>, %54, %cst_24 [1] : vector<128x128xf32> to vector<128xf32>
    %56 = vector.shape_cast %55 : vector<128xf32> to vector<128x1xf32>
    %57 = arith.divf %56, %53 : vector<128x1xf32>
    %58 = arith.subf %57, %40 : vector<128x1xf32>
    %cst_25 = arith.constant 0.000000e+00 : f32
    %59 = vector.broadcast %cst_25 : f32 to vector<128x1xf32>
    %60 = arith.subf %59, %58 : vector<128x1xf32>
    %cst_26 = arith.constant 0.000000e+00 : f32
    %61 = vector.broadcast %cst_26 : f32 to vector<128x1xf32>
    %62 = arith.maximumf %60, %61 : vector<128x1xf32>
    %63 = math.absf %58 : vector<128x1xf32>
    %cst_27 = arith.constant 0.000000e+00 : f32
    %64 = vector.broadcast %cst_27 : f32 to vector<128x1xf32>
    %65 = arith.subf %64, %63 : vector<128x1xf32>
    %66 = math.exp %65 : vector<128x1xf32>
    %67 = math.log1p %66 : vector<128x1xf32>
    %68 = arith.addf %62, %67 : vector<128x1xf32>
    %c0_28 = arith.constant 0 : index
    %c0_29 = arith.constant 0 : index
    %69 = vector.load %arg8[%c0_28, %c0_29] : memref<128x1xf32, #tpu.memory_space<vmem>>, vector<128x1xf32>
    tpu.vector_store %arg8[%c0_28, %c0_29], %68 {strides = array<i32>} : memref<128x1xf32, #tpu.memory_space<vmem>>, vector<128x1xf32>,
    %70 = arith.cmpf oge, %57, %40 : vector<128x1xf32>
    %71 = arith.extui %70 : vector<128x1xi1> to vector<128x1xi32>
    %72 = arith.sitofp %71 : vector<128x1xi32> to vector<128x1xf32>
    %c0_30 = arith.constant 0 : index
    %c0_31 = arith.constant 0 : index
    %73 = vector.load %arg9[%c0_30, %c0_31] : memref<128x1xf32, #tpu.memory_space<vmem>>, vector<128x1xf32>
    tpu.vector_store %arg9[%c0_30, %c0_31], %72 {strides = array<i32>} : memref<128x1xf32, #tpu.memory_space<vmem>>, vector<128x1xf32>,
    return
  }
  func.func @transform_0(%arg0: i32) -> (i32, i32) {
    %c0_i32 = arith.constant 0 : i32
    %c0_i32_0 = arith.constant 0 : i32
    return %arg0, %c0_i32 : i32, i32
  }
  func.func @transform_1(%arg0: i32) -> (i32, i32) {
    %c0_i32 = arith.constant 0 : i32
    %c0_i32_0 = arith.constant 0 : i32
    %c0_i32_1 = arith.constant 0 : i32
    return %c0_i32, %c0_i32_0 : i32, i32
  }
  func.func @transform_2(%arg0: i32) -> (i32, i32) {
    %c0_i32 = arith.constant 0 : i32
    %c0_i32_0 = arith.constant 0 : i32
    return %arg0, %c0_i32 : i32, i32
  }
  func.func @transform_3(%arg0: i32) -> (i32, i32) {
    %c0_i32 = arith.constant 0 : i32
    %c0_i32_0 = arith.constant 0 : i32
    %c0_i32_1 = arith.constant 0 : i32
    return %c0_i32, %c0_i32_0 : i32, i32
  }
  func.func @transform_4(%arg0: i32) -> (i32, i32) {
    %c0_i32 = arith.constant 0 : i32
    %c0_i32_0 = arith.constant 0 : i32
    return %arg0, %c0_i32 : i32, i32
  }
  func.func @transform_5(%arg0: i32) -> (i32, i32) {
    %c0_i32 = arith.constant 0 : i32
    %c0_i32_0 = arith.constant 0 : i32
    %c0_i32_1 = arith.constant 0 : i32
    return %c0_i32, %c0_i32_0 : i32, i32
  }
  func.func @transform_6(%arg0: i32) -> (i32, i32) {
    %c0_i32 = arith.constant 0 : i32
    %c0_i32_0 = arith.constant 0 : i32
    %c0_i32_1 = arith.constant 0 : i32
    return %c0_i32, %c0_i32_0 : i32, i32
  }
  func.func @transform_7(%arg0: i32) -> (i32, i32) {
    %c0_i32 = arith.constant 0 : i32
    %c0_i32_0 = arith.constant 0 : i32
    return %arg0, %c0_i32 : i32, i32
  }
  func.func @transform_8(%arg0: i32) -> (i32, i32) {
    %c0_i32 = arith.constant 0 : i32
    %c0_i32_0 = arith.constant 0 : i32
    return %arg0, %c0_i32 : i32, i32
  }
}

</mosaic_0001>

<llo_original>
// kernel: tpu_custom_call.1
$region0: #{tpu_custom_call.1}
  #allocation0 [shape = 'u32[]', space=smem, size = 0x4, offset = 0x4, fixed_abs, tag = 'smem constant byte address 0x4 - core index']
  #allocation1 [shape = 'u32[72,128]{1,0:T(1,128)}', space=vmem, size = 0x9000, scoped, tag = 'internal scratch']
  %s0 = inlined_call_operand.vmem [shape: f32[128,128], index: 0, kind: input, shape index: {}]
  %s1 = inlined_call_operand.vmem [shape: f32[128,128], index: 1, kind: input, shape index: {}]
  %s2 = inlined_call_operand.vmem [shape: f32[128,1], index: 2, kind: input, shape index: {}]
  %s3 = inlined_call_operand.vmem [shape: f32[1,128], index: 3, kind: input, shape index: {}]
  %s4 = inlined_call_operand.vmem [shape: s32[128,1], index: 4, kind: input, shape index: {}]
  %s5 = inlined_call_operand.vmem [shape: s32[1,128], index: 5, kind: input, shape index: {}]
  %s6 = inlined_call_operand.vmem [shape: f32[1,128], index: 6, kind: input, shape index: {}]
  %s7 = inlined_call_operand.vmem [shape: f32[128,1], index: 7, kind: output, shape index: {0}]
  %s8 = inlined_call_operand.vmem [shape: f32[128,1], index: 8, kind: output, shape index: {1}]
  %9 = xla_tuple %s7, %s8
  %s10 = sld [smem:[#allocation0]]
  $region46: #{tpu_custom_call.1} parent=0
    _
  %s12 = ssub.s32 1, %s10
  %s13 = scalar_select 0, %s12, %s10
  // Predicated region
  $region2: #{tpu_custom_call.1} parent=0 // pred_check
    _
  $region3: #{tpu_custom_call.1} parent=0 // pred_check_branch
    %15 = sbr.rel (0) target = $region5
  $region4: #{tpu_custom_call.1} parent=0 // pred_region
    _
  $region5: #{tpu_custom_call.1} parent=0 // pred_fallthru
    _
  // Predicated region
  $region6: #{tpu_custom_call.1} parent=0 // pred_check
    _
  $region7: #{tpu_custom_call.1} parent=0 // pred_check_branch
    %17 = sbr.rel (0) target = $region9
  $region8: #{tpu_custom_call.1} parent=0 // pred_region
    _
  $region9: #{tpu_custom_call.1} parent=0 // pred_fallthru
    _
  // Predicated region
  $region10: #{tpu_custom_call.1} parent=0 // pred_check
    _
  $region11: #{tpu_custom_call.1} parent=0 // pred_check_branch
    %19 = sbr.rel (0) target = $region13
  $region12: #{tpu_custom_call.1} parent=0 // pred_region
    _
  $region13: #{tpu_custom_call.1} parent=0 // pred_fallthru
    _
  // Predicated region
  $region14: #{tpu_custom_call.1} parent=0 // pred_check
    _
  $region15: #{tpu_custom_call.1} parent=0 // pred_check_branch
    %21 = sbr.rel (0) target = $region17
  $region16: #{tpu_custom_call.1} parent=0 // pred_region
    _
  $region17: #{tpu_custom_call.1} parent=0 // pred_fallthru
    _
  // Predicated region
  $region18: #{tpu_custom_call.1} parent=0 // pred_check
    _
  $region19: #{tpu_custom_call.1} parent=0 // pred_check_branch
    %23 = sbr.rel (0) target = $region21
  $region20: #{tpu_custom_call.1} parent=0 // pred_region
    _
  $region21: #{tpu_custom_call.1} parent=0 // pred_fallthru
    _
  // Predicated region
  $region22: #{tpu_custom_call.1} parent=0 // pred_check
    _
  $region23: #{tpu_custom_call.1} parent=0 // pred_check_branch
    %25 = sbr.rel (0) target = $region25
  $region24: #{tpu_custom_call.1} parent=0 // pred_region
    _
  $region25: #{tpu_custom_call.1} parent=0 // pred_fallthru
    _
  // Predicated region
  $region26: #{tpu_custom_call.1} parent=0 // pred_check
    _
  $region27: #{tpu_custom_call.1} parent=0 // pred_check_branch
    %27 = sbr.rel (0) target = $region29
  $region28: #{tpu_custom_call.1} parent=0 // pred_region
    _
  $region29: #{tpu_custom_call.1} parent=0 // pred_fallthru
    _
  %v28 = vld [vmem:[%s0] sm:$0xff]
  %v29 = vld [vmem:[%s0 + $0x8] sm:$0xff]
  %v30 = vld [vmem:[%s0 + $0x10] sm:$0xff]
  %v31 = vld [vmem:[%s0 + $0x18] sm:$0xff]
  %v32 = vld [vmem:[%s0 + $0x20] sm:$0xff]
  %v33 = vld [vmem:[%s0 + $0x28] sm:$0xff]
  %v34 = vld [vmem:[%s0 + $0x30] sm:$0xff]
  %v35 = vld [vmem:[%s0 + $0x38] sm:$0xff]
  %v36 = vld [vmem:[%s0 + $0x40] sm:$0xff]
  %v37 = vld [vmem:[%s0 + $0x48] sm:$0xff]
  %v38 = vld [vmem:[%s0 + $0x50] sm:$0xff]
  %v39 = vld [vmem:[%s0 + $0x58] sm:$0xff]
  %v40 = vld [vmem:[%s0 + $0x60] sm:$0xff]
  %v41 = vld [vmem:[%s0 + $0x68] sm:$0xff]
  %v42 = vld [vmem:[%s0 + $0x70] sm:$0xff]
  %v43 = vld [vmem:[%s0 + $0x78] sm:$0xff]
  %v44 = vld [vmem:[%s1] sm:$0xff]
  %v45 = vld [vmem:[%s1 + $0x8] sm:$0xff]
  %v46 = vld [vmem:[%s1 + $0x10] sm:$0xff]
  %v47 = vld [vmem:[%s1 + $0x18] sm:$0xff]
  %v48 = vld [vmem:[%s1 + $0x20] sm:$0xff]
  %v49 = vld [vmem:[%s1 + $0x28] sm:$0xff]
  %v50 = vld [vmem:[%s1 + $0x30] sm:$0xff]
  %v51 = vld [vmem:[%s1 + $0x38] sm:$0xff]
  %v52 = vld [vmem:[%s1 + $0x40] sm:$0xff]
  %v53 = vld [vmem:[%s1 + $0x48] sm:$0xff]
  %v54 = vld [vmem:[%s1 + $0x50] sm:$0xff]
  %v55 = vld [vmem:[%s1 + $0x58] sm:$0xff]
  %v56 = vld [vmem:[%s1 + $0x60] sm:$0xff]
  %v57 = vld [vmem:[%s1 + $0x68] sm:$0xff]
  %v58 = vld [vmem:[%s1 + $0x70] sm:$0xff]
  %v59 = vld [vmem:[%s1 + $0x78] sm:$0xff]
  %60 = vmatpush.msra.mxu0 %v59
  %61 = vmatpush.msra.mxu0 %v58
  %62 = vmatpush.msra.mxu0 %v57
  %63 = vmatpush.msra.mxu0 %v56
  %64 = vmatpush.msra.mxu0 %v55
  %65 = vmatpush.msra.mxu0 %v54
  %66 = vmatpush.msra.mxu0 %v53
  %67 = vmatpush.msra.mxu0 %v52
  %68 = vmatpush.msra.mxu0 %v51
  %69 = vmatpush.msra.mxu0 %v50
  %70 = vmatpush.msra.mxu0 %v49
  %71 = vmatpush.msra.mxu0 %v48
  %72 = vmatpush.msra.mxu0 %v47
  %73 = vmatpush.msra.mxu0 %v46
  %74 = vmatpush.msra.mxu0 %v45
  %75 = vmatpush.msra.mxu0 %v44
  %76 = vmatmul.f32.gmra.mxu0 %v28
  %v77 = vpop.f32.mrf.mxu0
  %v78 = vadd.f32 0.0, %v77
  %79 = vmatmul.f32.gmra.mxu0 %v29
  %v80 = vpop.f32.mrf.mxu0
  %v81 = vadd.f32 0.0, %v80
  %82 = vmatmul.f32.gmra.mxu0 %v30
  %v83 = vpop.f32.mrf.mxu0
  %v84 = vadd.f32 0.0, %v83
  %85 = vmatmul.f32.gmra.mxu0 %v31
  %v86 = vpop.f32.mrf.mxu0
  %v87 = vadd.f32 0.0, %v86
  %88 = vmatmul.f32.gmra.mxu0 %v32
  %v89 = vpop.f32.mrf.mxu0
  %v90 = vadd.f32 0.0, %v89
  %91 = vmatmul.f32.gmra.mxu0 %v33
  %v92 = vpop.f32.mrf.mxu0
  %v93 = vadd.f32 0.0, %v92
  %94 = vmatmul.f32.gmra.mxu0 %v34
  %v95 = vpop.f32.mrf.mxu0
  %v96 = vadd.f32 0.0, %v95
  %97 = vmatmul.f32.gmra.mxu0 %v35
  %v98 = vpop.f32.mrf.mxu0
  %v99 = vadd.f32 0.0, %v98
  %100 = vmatmul.f32.gmra.mxu0 %v36
  %v101 = vpop.f32.mrf.mxu0
  %v102 = vadd.f32 0.0, %v101
  %103 = vmatmul.f32.gmra.mxu0 %v37
  %v104 = vpop.f32.mrf.mxu0
  %v105 = vadd.f32 0.0, %v104
  %106 = vmatmul.f32.gmra.mxu0 %v38
  %v107 = vpop.f32.mrf.mxu0
  %v108 = vadd.f32 0.0, %v107
  %109 = vmatmul.f32.gmra.mxu0 %v39
  %v110 = vpop.f32.mrf.mxu0
  %v111 = vadd.f32 0.0, %v110
  %112 = vmatmul.f32.gmra.mxu0 %v40
  %v113 = vpop.f32.mrf.mxu0
  %v114 = vadd.f32 0.0, %v113
  %115 = vmatmul.f32.gmra.mxu0 %v41
  %v116 = vpop.f32.mrf.mxu0
  %v117 = vadd.f32 0.0, %v116
  %118 = vmatmul.f32.gmra.mxu0 %v42
  %v119 = vpop.f32.mrf.mxu0
  %v120 = vadd.f32 0.0, %v119
  %121 = vmatmul.f32.gmra.mxu0 %v43
  %v122 = vpop.f32.mrf.mxu0
  %v123 = vadd.f32 0.0, %v122
  %124 = vdwg.mxu0
  %v125 = vld [vmem:[%s2] sm:$0xff]
  %v126 = vld [vmem:[%s2 + $0x8] sm:$0xff]
  %v127 = vld [vmem:[%s2 + $0x10] sm:$0xff]
  %v128 = vld [vmem:[%s2 + $0x18] sm:$0xff]
  %v129 = vld [vmem:[%s2 + $0x20] sm:$0xff]
  %v130 = vld [vmem:[%s2 + $0x28] sm:$0xff]
  %v131 = vld [vmem:[%s2 + $0x30] sm:$0xff]
  %v132 = vld [vmem:[%s2 + $0x38] sm:$0xff]
  %v133 = vld [vmem:[%s2 + $0x40] sm:$0xff]
  %v134 = vld [vmem:[%s2 + $0x48] sm:$0xff]
  %v135 = vld [vmem:[%s2 + $0x50] sm:$0xff]
  %v136 = vld [vmem:[%s2 + $0x58] sm:$0xff]
  %v137 = vld [vmem:[%s2 + $0x60] sm:$0xff]
  %v138 = vld [vmem:[%s2 + $0x68] sm:$0xff]
  %v139 = vld [vmem:[%s2 + $0x70] sm:$0xff]
  %v140 = vld [vmem:[%s2 + $0x78] sm:$0xff]
  %v141 = vld [vmem:[%s3] sm:$0x1]
  %143 = vset.pattern.permute.xlu0 0
  %144 = vperm.xlu0 %143, %v125
  %v145 = vpop.permute.xlu0 %144
  %148 = vset.pattern.permute.xlu0 0
  %149 = vperm.xlu0 %148, %v126
  %v150 = vpop.permute.xlu0 %149
  %153 = vset.pattern.permute.xlu0 0
  %154 = vperm.xlu0 %153, %v127
  %v155 = vpop.permute.xlu0 %154
  %158 = vset.pattern.permute.xlu0 0
  %159 = vperm.xlu0 %158, %v128
  %v160 = vpop.permute.xlu0 %159
  %163 = vset.pattern.permute.xlu0 0
  %164 = vperm.xlu0 %163, %v129
  %v165 = vpop.permute.xlu0 %164
  %168 = vset.pattern.permute.xlu0 0
  %169 = vperm.xlu0 %168, %v130
  %v170 = vpop.permute.xlu0 %169
  %173 = vset.pattern.permute.xlu0 0
  %174 = vperm.xlu0 %173, %v131
  %v175 = vpop.permute.xlu0 %174
  %178 = vset.pattern.permute.xlu0 0
  %179 = vperm.xlu0 %178, %v132
  %v180 = vpop.permute.xlu0 %179
  %183 = vset.pattern.permute.xlu0 0
  %184 = vperm.xlu0 %183, %v133
  %v185 = vpop.permute.xlu0 %184
  %188 = vset.pattern.permute.xlu0 0
  %189 = vperm.xlu0 %188, %v134
  %v190 = vpop.permute.xlu0 %189
  %193 = vset.pattern.permute.xlu0 0
  %194 = vperm.xlu0 %193, %v135
  %v195 = vpop.permute.xlu0 %194
  %198 = vset.pattern.permute.xlu0 0
  %199 = vperm.xlu0 %198, %v136
  %v200 = vpop.permute.xlu0 %199
  %203 = vset.pattern.permute.xlu0 0
  %204 = vperm.xlu0 %203, %v137
  %v205 = vpop.permute.xlu0 %204
  %208 = vset.pattern.permute.xlu0 0
  %209 = vperm.xlu0 %208, %v138
  %v210 = vpop.permute.xlu0 %209
  %213 = vset.pattern.permute.xlu0 0
  %214 = vperm.xlu0 %213, %v139
  %v215 = vpop.permute.xlu0 %214
  %218 = vset.pattern.permute.xlu0 0
  %219 = vperm.xlu0 %218, %v140
  %v220 = vpop.permute.xlu0 %219
  %v223 = vperm.slane %v141, 0
  %v225 = vadd.f32 %v145, %v223
  %v226 = vadd.f32 %v150, %v223
  %v227 = vadd.f32 %v155, %v223
  %v228 = vadd.f32 %v160, %v223
  %v229 = vadd.f32 %v165, %v223
  %v230 = vadd.f32 %v170, %v223
  %v231 = vadd.f32 %v175, %v223
  %v232 = vadd.f32 %v180, %v223
  %v233 = vadd.f32 %v185, %v223
  %v234 = vadd.f32 %v190, %v223
  %v235 = vadd.f32 %v195, %v223
  %v236 = vadd.f32 %v200, %v223
  %v237 = vadd.f32 %v205, %v223
  %v238 = vadd.f32 %v210, %v223
  %v239 = vadd.f32 %v215, %v223
  %v240 = vadd.f32 %v220, %v223
  %v241 = vmul.f32 %v78, 2.0
  %v242 = vmul.f32 %v81, 2.0
  %v243 = vmul.f32 %v84, 2.0
  %v244 = vmul.f32 %v87, 2.0
  %v245 = vmul.f32 %v90, 2.0
  %v246 = vmul.f32 %v93, 2.0
  %v247 = vmul.f32 %v96, 2.0
  %v248 = vmul.f32 %v99, 2.0
  %v249 = vmul.f32 %v102, 2.0
  %v250 = vmul.f32 %v105, 2.0
  %v251 = vmul.f32 %v108, 2.0
  %v252 = vmul.f32 %v111, 2.0
  %v253 = vmul.f32 %v114, 2.0
  %v254 = vmul.f32 %v117, 2.0
  %v255 = vmul.f32 %v120, 2.0
  %v256 = vmul.f32 %v123, 2.0
  %v257 = vsub.f32 %v225, %v241
  %v258 = vsub.f32 %v226, %v242
  %v259 = vsub.f32 %v227, %v243
  %v260 = vsub.f32 %v228, %v244
  %v261 = vsub.f32 %v229, %v245
  %v262 = vsub.f32 %v230, %v246
  %v263 = vsub.f32 %v231, %v247
  %v264 = vsub.f32 %v232, %v248
  %v265 = vsub.f32 %v233, %v249
  %v266 = vsub.f32 %v234, %v250
  %v267 = vsub.f32 %v235, %v251
  %v268 = vsub.f32 %v236, %v252
  %v269 = vsub.f32 %v237, %v253
  %v270 = vsub.f32 %v238, %v254
  %v271 = vsub.f32 %v239, %v255
  %v272 = vsub.f32 %v240, %v256
  %v273 = vmax.f32 %v257, 1e-12
  %v274 = vmax.f32 %v258, 1e-12
  %v275 = vmax.f32 %v259, 1e-12
  %v276 = vmax.f32 %v260, 1e-12
  %v277 = vmax.f32 %v261, 1e-12
  %v278 = vmax.f32 %v262, 1e-12
  %v279 = vmax.f32 %v263, 1e-12
  %v280 = vmax.f32 %v264, 1e-12
  %v281 = vmax.f32 %v265, 1e-12
  %v282 = vmax.f32 %v266, 1e-12
  %v283 = vmax.f32 %v267, 1e-12
  %v284 = vmax.f32 %v268, 1e-12
  %v285 = vmax.f32 %v269, 1e-12
  %v286 = vmax.f32 %v270, 1e-12
  %v287 = vmax.f32 %v271, 1e-12
  %v288 = vmax.f32 %v272, 1e-12
  %v289 = vrsqrt.pop %v273
  %v290 = vmul.f32 %v289, %v273
  %v291 = vmul.f32 %v290, %v289
  %v292 = vmul.f32 0.5, %v291
  %v293 = vsub.f32 1.5, %v292
  %v294 = vmul.f32 %v289, %v293
  %v295 = vmul.f32 %v273, %v294
  %vm296 = vcmp.eq.f32.partialorder %v273, inf
  %v297 = vsel %vm296, %v273, %v295
  %vm298 = vcmp.eq.f32.partialorder %v273, 0.0
  %v299 = vand.u32 %v273, 2147483648
  %v300 = vsel %vm298, %v299, %v297
  %v301 = vrsqrt.pop %v274
  %v302 = vmul.f32 %v301, %v274
  %v303 = vmul.f32 %v302, %v301
  %v304 = vmul.f32 0.5, %v303
  %v305 = vsub.f32 1.5, %v304
  %v306 = vmul.f32 %v301, %v305
  %v307 = vmul.f32 %v274, %v306
  %vm308 = vcmp.eq.f32.partialorder %v274, inf
  %v309 = vsel %vm308, %v274, %v307
  %vm310 = vcmp.eq.f32.partialorder %v274, 0.0
  %v311 = vand.u32 %v274, 2147483648
  %v312 = vsel %vm310, %v311, %v309
  %v313 = vrsqrt.pop %v275
  %v314 = vmul.f32 %v313, %v275
  %v315 = vmul.f32 %v314, %v313
  %v316 = vmul.f32 0.5, %v315
  %v317 = vsub.f32 1.5, %v316
  %v318 = vmul.f32 %v313, %v317
  %v319 = vmul.f32 %v275, %v318
  %vm320 = vcmp.eq.f32.partialorder %v275, inf
  %v321 = vsel %vm320, %v275, %v319
  %vm322 = vcmp.eq.f32.partialorder %v275, 0.0
  %v323 = vand.u32 %v275, 2147483648
  %v324 = vsel %vm322, %v323, %v321
  %v325 = vrsqrt.pop %v276
  %v326 = vmul.f32 %v325, %v276
  %v327 = vmul.f32 %v326, %v325
  %v328 = vmul.f32 0.5, %v327
  %v329 = vsub.f32 1.5, %v328
  %v330 = vmul.f32 %v325, %v329
  %v331 = vmul.f32 %v276, %v330
  %vm332 = vcmp.eq.f32.partialorder %v276, inf
  %v333 = vsel %vm332, %v276, %v331
  %vm334 = vcmp.eq.f32.partialorder %v276, 0.0
  %v335 = vand.u32 %v276, 2147483648
  %v336 = vsel %vm334, %v335, %v333
  %v337 = vrsqrt.pop %v277
  %v338 = vmul.f32 %v337, %v277
  %v339 = vmul.f32 %v338, %v337
  %v340 = vmul.f32 0.5, %v339
  %v341 = vsub.f32 1.5, %v340
  %v342 = vmul.f32 %v337, %v341
  %v343 = vmul.f32 %v277, %v342
  %vm344 = vcmp.eq.f32.partialorder %v277, inf
  %v345 = vsel %vm344, %v277, %v343
  %vm346 = vcmp.eq.f32.partialorder %v277, 0.0
  %v347 = vand.u32 %v277, 2147483648
  %v348 = vsel %vm346, %v347, %v345
  %v349 = vrsqrt.pop %v278
  %v350 = vmul.f32 %v349, %v278
  %v351 = vmul.f32 %v350, %v349
  %v352 = vmul.f32 0.5, %v351
  %v353 = vsub.f32 1.5, %v352
  %v354 = vmul.f32 %v349, %v353
  %v355 = vmul.f32 %v278, %v354
  %vm356 = vcmp.eq.f32.partialorder %v278, inf
  %v357 = vsel %vm356, %v278, %v355
  %vm358 = vcmp.eq.f32.partialorder %v278, 0.0
  %v359 = vand.u32 %v278, 2147483648
  %v360 = vsel %vm358, %v359, %v357
  %v361 = vrsqrt.pop %v279
  %v362 = vmul.f32 %v361, %v279
  %v363 = vmul.f32 %v362, %v361
  %v364 = vmul.f32 0.5, %v363
  %v365 = vsub.f32 1.5, %v364
  %v366 = vmul.f32 %v361, %v365
  %v367 = vmul.f32 %v279, %v366
  %vm368 = vcmp.eq.f32.partialorder %v279, inf
  %v369 = vsel %vm368, %v279, %v367
  %vm370 = vcmp.eq.f32.partialorder %v279, 0.0
  %v371 = vand.u32 %v279, 2147483648
  %v372 = vsel %vm370, %v371, %v369
  %v373 = vrsqrt.pop %v280
  %v374 = vmul.f32 %v373, %v280
  %v375 = vmul.f32 %v374, %v373
  %v376 = vmul.f32 0.5, %v375
  %v377 = vsub.f32 1.5, %v376
  %v378 = vmul.f32 %v373, %v377
  %v379 = vmul.f32 %v280, %v378
  %vm380 = vcmp.eq.f32.partialorder %v280, inf
  %v381 = vsel %vm380, %v280, %v379
  %vm382 = vcmp.eq.f32.partialorder %v280, 0.0
  %v383 = vand.u32 %v280, 2147483648
  %v384 = vsel %vm382, %v383, %v381
  %v385 = vrsqrt.pop %v281
  %v386 = vmul.f32 %v385, %v281
  %v387 = vmul.f32 %v386, %v385
  %v388 = vmul.f32 0.5, %v387
  %v389 = vsub.f32 1.5, %v388
  %v390 = vmul.f32 %v385, %v389
  %v391 = vmul.f32 %v281, %v390
  %vm392 = vcmp.eq.f32.partialorder %v281, inf
  %v393 = vsel %vm392, %v281, %v391
  %vm394 = vcmp.eq.f32.partialorder %v281, 0.0
  %v395 = vand.u32 %v281, 2147483648
  %v396 = vsel %vm394, %v395, %v393
  %v397 = vrsqrt.pop %v282
  %v398 = vmul.f32 %v397, %v282
  %v399 = vmul.f32 %v398, %v397
  %v400 = vmul.f32 0.5, %v399
  %v401 = vsub.f32 1.5, %v400
  %v402 = vmul.f32 %v397, %v401
  %v403 = vmul.f32 %v282, %v402
  %vm404 = vcmp.eq.f32.partialorder %v282, inf
  %v405 = vsel %vm404, %v282, %v403
  %vm406 = vcmp.eq.f32.partialorder %v282, 0.0
  %v407 = vand.u32 %v282, 2147483648
  %v408 = vsel %vm406, %v407, %v405
  %v409 = vrsqrt.pop %v283
  %v410 = vmul.f32 %v409, %v283
  %v411 = vmul.f32 %v410, %v409
  %v412 = vmul.f32 0.5, %v411
  %v413 = vsub.f32 1.5, %v412
  %v414 = vmul.f32 %v409, %v413
  %v415 = vmul.f32 %v283, %v414
  %vm416 = vcmp.eq.f32.partialorder %v283, inf
  %v417 = vsel %vm416, %v283, %v415
  %vm418 = vcmp.eq.f32.partialorder %v283, 0.0
  %v419 = vand.u32 %v283, 2147483648
  %v420 = vsel %vm418, %v419, %v417
  %v421 = vrsqrt.pop %v284
  %v422 = vmul.f32 %v421, %v284
  %v423 = vmul.f32 %v422, %v421
  %v424 = vmul.f32 0.5, %v423
  %v425 = vsub.f32 1.5, %v424
  %v426 = vmul.f32 %v421, %v425
  %v427 = vmul.f32 %v284, %v426
  %vm428 = vcmp.eq.f32.partialorder %v284, inf
  %v429 = vsel %vm428, %v284, %v427
  %vm430 = vcmp.eq.f32.partialorder %v284, 0.0
  %v431 = vand.u32 %v284, 2147483648
  %v432 = vsel %vm430, %v431, %v429
  %v433 = vrsqrt.pop %v285
  %v434 = vmul.f32 %v433, %v285
  %v435 = vmul.f32 %v434, %v433
  %v436 = vmul.f32 0.5, %v435
  %v437 = vsub.f32 1.5, %v436
  %v438 = vmul.f32 %v433, %v437
  %v439 = vmul.f32 %v285, %v438
  %vm440 = vcmp.eq.f32.partialorder %v285, inf
  %v441 = vsel %vm440, %v285, %v439
  %vm442 = vcmp.eq.f32.partialorder %v285, 0.0
  %v443 = vand.u32 %v285, 2147483648
  %v444 = vsel %vm442, %v443, %v441
  %v445 = vrsqrt.pop %v286
  %v446 = vmul.f32 %v445, %v286
  %v447 = vmul.f32 %v446, %v445
  %v448 = vmul.f32 0.5, %v447
  %v449 = vsub.f32 1.5, %v448
  %v450 = vmul.f32 %v445, %v449
  %v451 = vmul.f32 %v286, %v450
  %vm452 = vcmp.eq.f32.partialorder %v286, inf
  %v453 = vsel %vm452, %v286, %v451
  %vm454 = vcmp.eq.f32.partialorder %v286, 0.0
  %v455 = vand.u32 %v286, 2147483648
  %v456 = vsel %vm454, %v455, %v453
  %v457 = vrsqrt.pop %v287
  %v458 = vmul.f32 %v457, %v287
  %v459 = vmul.f32 %v458, %v457
  %v460 = vmul.f32 0.5, %v459
  %v461 = vsub.f32 1.5, %v460
  %v462 = vmul.f32 %v457, %v461
  %v463 = vmul.f32 %v287, %v462
  %vm464 = vcmp.eq.f32.partialorder %v287, inf
  %v465 = vsel %vm464, %v287, %v463
  %vm466 = vcmp.eq.f32.partialorder %v287, 0.0
  %v467 = vand.u32 %v287, 2147483648
  %v468 = vsel %vm466, %v467, %v465
  %v469 = vrsqrt.pop %v288
  %v470 = vmul.f32 %v469, %v288
  %v471 = vmul.f32 %v470, %v469
  %v472 = vmul.f32 0.5, %v471
  %v473 = vsub.f32 1.5, %v472
  %v474 = vmul.f32 %v469, %v473
  %v475 = vmul.f32 %v288, %v474
  %vm476 = vcmp.eq.f32.partialorder %v288, inf
  %v477 = vsel %vm476, %v288, %v475
  %vm478 = vcmp.eq.f32.partialorder %v288, 0.0
  %v479 = vand.u32 %v288, 2147483648
  %v480 = vsel %vm478, %v479, %v477
  %v481 = vld [vmem:[%s4] sm:$0xff]
  %v482 = vld [vmem:[%s4 + $0x8] sm:$0xff]
  %v483 = vld [vmem:[%s4 + $0x10] sm:$0xff]
  %v484 = vld [vmem:[%s4 + $0x18] sm:$0xff]
  %v485 = vld [vmem:[%s4 + $0x20] sm:$0xff]
  %v486 = vld [vmem:[%s4 + $0x28] sm:$0xff]
  %v487 = vld [vmem:[%s4 + $0x30] sm:$0xff]
  %v488 = vld [vmem:[%s4 + $0x38] sm:$0xff]
  %v489 = vld [vmem:[%s4 + $0x40] sm:$0xff]
  %v490 = vld [vmem:[%s4 + $0x48] sm:$0xff]
  %v491 = vld [vmem:[%s4 + $0x50] sm:$0xff]
  %v492 = vld [vmem:[%s4 + $0x58] sm:$0xff]
  %v493 = vld [vmem:[%s4 + $0x60] sm:$0xff]
  %v494 = vld [vmem:[%s4 + $0x68] sm:$0xff]
  %v495 = vld [vmem:[%s4 + $0x70] sm:$0xff]
  %v496 = vld [vmem:[%s4 + $0x78] sm:$0xff]
  %v497 = vld [vmem:[%s5] sm:$0x1]
  %498 = vset.pattern.permute.xlu0 0
  %499 = vperm.xlu0 %498, %v481
  %v500 = vpop.permute.xlu0 %499
  %501 = vset.pattern.permute.xlu0 0
  %502 = vperm.xlu0 %501, %v482
  %v503 = vpop.permute.xlu0 %502
  %504 = vset.pattern.permute.xlu0 0
  %505 = vperm.xlu0 %504, %v483
  %v506 = vpop.permute.xlu0 %505
  %507 = vset.pattern.permute.xlu0 0
  %508 = vperm.xlu0 %507, %v484
  %v509 = vpop.permute.xlu0 %508
  %510 = vset.pattern.permute.xlu0 0
  %511 = vperm.xlu0 %510, %v485
  %v512 = vpop.permute.xlu0 %511
  %513 = vset.pattern.permute.xlu0 0
  %514 = vperm.xlu0 %513, %v486
  %v515 = vpop.permute.xlu0 %514
  %516 = vset.pattern.permute.xlu0 0
  %517 = vperm.xlu0 %516, %v487
  %v518 = vpop.permute.xlu0 %517
  %519 = vset.pattern.permute.xlu0 0
  %520 = vperm.xlu0 %519, %v488
  %v521 = vpop.permute.xlu0 %520
  %522 = vset.pattern.permute.xlu0 0
  %523 = vperm.xlu0 %522, %v489
  %v524 = vpop.permute.xlu0 %523
  %525 = vset.pattern.permute.xlu0 0
  %526 = vperm.xlu0 %525, %v490
  %v527 = vpop.permute.xlu0 %526
  %528 = vset.pattern.permute.xlu0 0
  %529 = vperm.xlu0 %528, %v491
  %v530 = vpop.permute.xlu0 %529
  %531 = vset.pattern.permute.xlu0 0
  %532 = vperm.xlu0 %531, %v492
  %v533 = vpop.permute.xlu0 %532
  %534 = vset.pattern.permute.xlu0 0
  %535 = vperm.xlu0 %534, %v493
  %v536 = vpop.permute.xlu0 %535
  %537 = vset.pattern.permute.xlu0 0
  %538 = vperm.xlu0 %537, %v494
  %v539 = vpop.permute.xlu0 %538
  %540 = vset.pattern.permute.xlu0 0
  %541 = vperm.xlu0 %540, %v495
  %v542 = vpop.permute.xlu0 %541
  %543 = vset.pattern.permute.xlu0 0
  %544 = vperm.xlu0 %543, %v496
  %v545 = vpop.permute.xlu0 %544
  %v546 = vperm.slane %v497, 0
  %vm547 = vcmp.eq.s32.totalorder %v500, %v546
  %vm548 = vcmp.eq.s32.totalorder %v503, %v546
  %vm549 = vcmp.eq.s32.totalorder %v506, %v546
  %vm550 = vcmp.eq.s32.totalorder %v509, %v546
  %vm551 = vcmp.eq.s32.totalorder %v512, %v546
  %vm552 = vcmp.eq.s32.totalorder %v515, %v546
  %vm553 = vcmp.eq.s32.totalorder %v518, %v546
  %vm554 = vcmp.eq.s32.totalorder %v521, %v546
  %vm555 = vcmp.eq.s32.totalorder %v524, %v546
  %vm556 = vcmp.eq.s32.totalorder %v527, %v546
  %vm557 = vcmp.eq.s32.totalorder %v530, %v546
  %vm558 = vcmp.eq.s32.totalorder %v533, %v546
  %vm559 = vcmp.eq.s32.totalorder %v536, %v546
  %vm560 = vcmp.eq.s32.totalorder %v539, %v546
  %vm561 = vcmp.eq.s32.totalorder %v542, %v546
  %vm562 = vcmp.eq.s32.totalorder %v545, %v546
  %v563 = vld [vmem:[%s6] sm:$0x1]
  %v565 = vperm.slane %v563, 0
  %v567 = vsel %vm547, %v565, 0.0
  %v568 = vsel %vm548, %v565, 0.0
  %v569 = vsel %vm549, %v565, 0.0
  %v570 = vsel %vm550, %v565, 0.0
  %v571 = vsel %vm551, %v565, 0.0
  %v572 = vsel %vm552, %v565, 0.0
  %v573 = vsel %vm553, %v565, 0.0
  %v574 = vsel %vm554, %v565, 0.0
  %v575 = vsel %vm555, %v565, 0.0
  %v576 = vsel %vm556, %v565, 0.0
  %v577 = vsel %vm557, %v565, 0.0
  %v578 = vsel %vm558, %v565, 0.0
  %v579 = vsel %vm559, %v565, 0.0
  %v580 = vsel %vm560, %v565, 0.0
  %v581 = vsel %vm561, %v565, 0.0
  %v582 = vsel %vm562, %v565, 0.0
  %v583 = vsub.f32 %v565, %v567
  %v584 = vsub.f32 %v565, %v568
  %v585 = vsub.f32 %v565, %v569
  %v586 = vsub.f32 %v565, %v570
  %v587 = vsub.f32 %v565, %v571
  %v588 = vsub.f32 %v565, %v572
  %v589 = vsub.f32 %v565, %v573
  %v590 = vsub.f32 %v565, %v574
  %v591 = vsub.f32 %v565, %v575
  %v592 = vsub.f32 %v565, %v576
  %v593 = vsub.f32 %v565, %v577
  %v594 = vsub.f32 %v565, %v578
  %v595 = vsub.f32 %v565, %v579
  %v596 = vsub.f32 %v565, %v580
  %v597 = vsub.f32 %v565, %v581
  %v598 = vsub.f32 %v565, %v582
  %v599 = vmul.f32 %v300, %v567
  %v600 = vmul.f32 %v312, %v568
  %v601 = vmul.f32 %v324, %v569
  %v602 = vmul.f32 %v336, %v570
  %v603 = vmul.f32 %v348, %v571
  %v604 = vmul.f32 %v360, %v572
  %v605 = vmul.f32 %v372, %v573
  %v606 = vmul.f32 %v384, %v574
  %v607 = vmul.f32 %v396, %v575
  %v608 = vmul.f32 %v408, %v576
  %v609 = vmul.f32 %v420, %v577
  %v610 = vmul.f32 %v432, %v578
  %v611 = vmul.f32 %v444, %v579
  %v612 = vmul.f32 %v456, %v580
  %v613 = vmul.f32 %v468, %v581
  %v614 = vmul.f32 %v480, %v582
  %615 = vmax.xlane.f32.xlu0 %v599
  %v616 = vpop.xlane.xlu0 %615
  %617 = vmax.xlane.f32.xlu0 %v600
  %v618 = vpop.xlane.xlu0 %617
  %619 = vmax.xlane.f32.xlu0 %v601
  %v620 = vpop.xlane.xlu0 %619
  %621 = vmax.xlane.f32.xlu0 %v602
  %v622 = vpop.xlane.xlu0 %621
  %623 = vmax.xlane.f32.xlu0 %v603
  %v624 = vpop.xlane.xlu0 %623
  %625 = vmax.xlane.f32.xlu0 %v604
  %v626 = vpop.xlane.xlu0 %625
  %627 = vmax.xlane.f32.xlu0 %v605
  %v628 = vpop.xlane.xlu0 %627
  %629 = vmax.xlane.f32.xlu0 %v606
  %v630 = vpop.xlane.xlu0 %629
  %631 = vmax.xlane.f32.xlu0 %v607
  %v632 = vpop.xlane.xlu0 %631
  %633 = vmax.xlane.f32.xlu0 %v608
  %v634 = vpop.xlane.xlu0 %633
  %635 = vmax.xlane.f32.xlu0 %v609
  %v636 = vpop.xlane.xlu0 %635
  %637 = vmax.xlane.f32.xlu0 %v610
  %v638 = vpop.xlane.xlu0 %637
  %639 = vmax.xlane.f32.xlu0 %v611
  %v640 = vpop.xlane.xlu0 %639
  %641 = vmax.xlane.f32.xlu0 %v612
  %v642 = vpop.xlane.xlu0 %641
  %643 = vmax.xlane.f32.xlu0 %v613
  %v644 = vpop.xlane.xlu0 %643
  %645 = vmax.xlane.f32.xlu0 %v614
  %v646 = vpop.xlane.xlu0 %645
  %v647 = vsub.f32 %v599, %v616
  %v648 = vsub.f32 %v600, %v618
  %v649 = vsub.f32 %v601, %v620
  %v650 = vsub.f32 %v602, %v622
  %v651 = vsub.f32 %v603, %v624
  %v652 = vsub.f32 %v604, %v626
  %v653 = vsub.f32 %v605, %v628
  %v654 = vsub.f32 %v606, %v630
  %v655 = vsub.f32 %v607, %v632
  %v656 = vsub.f32 %v608, %v634
  %v657 = vsub.f32 %v609, %v636
  %v658 = vsub.f32 %v610, %v638
  %v659 = vsub.f32 %v611, %v640
  %v660 = vsub.f32 %v612, %v642
  %v661 = vsub.f32 %v613, %v644
  %v662 = vsub.f32 %v614, %v646
  %v663 = vmul.f32 %v647, 1.442695
  %v664 = vpow.pop %v663
  %v665 = vmul.f32 %v648, 1.442695
  %v666 = vpow.pop %v665
  %v667 = vmul.f32 %v649, 1.442695
  %v668 = vpow.pop %v667
  %v669 = vmul.f32 %v650, 1.442695
  %v670 = vpow.pop %v669
  %v671 = vmul.f32 %v651, 1.442695
  %v672 = vpow.pop %v671
  %v673 = vmul.f32 %v652, 1.442695
  %v674 = vpow.pop %v673
  %v675 = vmul.f32 %v653, 1.442695
  %v676 = vpow.pop %v675
  %v677 = vmul.f32 %v654, 1.442695
  %v678 = vpow.pop %v677
  %v679 = vmul.f32 %v655, 1.442695
  %v680 = vpow.pop %v679
  %v681 = vmul.f32 %v656, 1.442695
  %v682 = vpow.pop %v681
  %v683 = vmul.f32 %v657, 1.442695
  %v684 = vpow.pop %v683
  %v685 = vmul.f32 %v658, 1.442695
  %v686 = vpow.pop %v685
  %v687 = vmul.f32 %v659, 1.442695
  %v688 = vpow.pop %v687
  %v689 = vmul.f32 %v660, 1.442695
  %v690 = vpow.pop %v689
  %v691 = vmul.f32 %v661, 1.442695
  %v692 = vpow.pop %v691
  %v693 = vmul.f32 %v662, 1.442695
  %v694 = vpow.pop %v693
  %v695 = vmul.f32 %v664, %v567
  %v696 = vmul.f32 %v666, %v568
  %v697 = vmul.f32 %v668, %v569
  %v698 = vmul.f32 %v670, %v570
  %v699 = vmul.f32 %v672, %v571
  %v700 = vmul.f32 %v674, %v572
  %v701 = vmul.f32 %v676, %v573
  %v702 = vmul.f32 %v678, %v574
  %v703 = vmul.f32 %v680, %v575
  %v704 = vmul.f32 %v682, %v576
  %v705 = vmul.f32 %v684, %v577
  %v706 = vmul.f32 %v686, %v578
  %v707 = vmul.f32 %v688, %v579
  %v708 = vmul.f32 %v690, %v580
  %v709 = vmul.f32 %v692, %v581
  %v710 = vmul.f32 %v694, %v582
  %711 = vadd.xlane.f32.xlu0 %v695
  %v712 = vpop.xlane.xlu0 %711
  %713 = vadd.xlane.f32.xlu0 %v696
  %v714 = vpop.xlane.xlu0 %713
  %715 = vadd.xlane.f32.xlu0 %v697
  %v716 = vpop.xlane.xlu0 %715
  %717 = vadd.xlane.f32.xlu0 %v698
  %v718 = vpop.xlane.xlu0 %717
  %719 = vadd.xlane.f32.xlu0 %v699
  %v720 = vpop.xlane.xlu0 %719
  %721 = vadd.xlane.f32.xlu0 %v700
  %v722 = vpop.xlane.xlu0 %721
  %723 = vadd.xlane.f32.xlu0 %v701
  %v724 = vpop.xlane.xlu0 %723
  %725 = vadd.xlane.f32.xlu0 %v702
  %v726 = vpop.xlane.xlu0 %725
  %727 = vadd.xlane.f32.xlu0 %v703
  %v728 = vpop.xlane.xlu0 %727
  %729 = vadd.xlane.f32.xlu0 %v704
  %v730 = vpop.xlane.xlu0 %729
  %731 = vadd.xlane.f32.xlu0 %v705
  %v732 = vpop.xlane.xlu0 %731
  %733 = vadd.xlane.f32.xlu0 %v706
  %v734 = vpop.xlane.xlu0 %733
  %735 = vadd.xlane.f32.xlu0 %v707
  %v736 = vpop.xlane.xlu0 %735
  %737 = vadd.xlane.f32.xlu0 %v708
  %v738 = vpop.xlane.xlu0 %737
  %739 = vadd.xlane.f32.xlu0 %v709
  %v740 = vpop.xlane.xlu0 %739
  %741 = vadd.xlane.f32.xlu0 %v710
  %v742 = vpop.xlane.xlu0 %741
  %v743 = vadd.f32 %v712, 1e-06
  %v744 = vadd.f32 %v714, 1e-06
  %v745 = vadd.f32 %v716, 1e-06
  %v746 = vadd.f32 %v718, 1e-06
  %v747 = vadd.f32 %v720, 1e-06
  %v748 = vadd.f32 %v722, 1e-06
  %v749 = vadd.f32 %v724, 1e-06
  %v750 = vadd.f32 %v726, 1e-06
  %v751 = vadd.f32 %v728, 1e-06
  %v752 = vadd.f32 %v730, 1e-06
  %v753 = vadd.f32 %v732, 1e-06
  %v754 = vadd.f32 %v734, 1e-06
  %v755 = vadd.f32 %v736, 1e-06
  %v756 = vadd.f32 %v738, 1e-06
  %v757 = vadd.f32 %v740, 1e-06
  %v758 = vadd.f32 %v742, 1e-06
  %v759 = vmul.f32 %v599, %v695
  %v760 = vmul.f32 %v600, %v696
  %v761 = vmul.f32 %v601, %v697
  %v762 = vmul.f32 %v602, %v698
  %v763 = vmul.f32 %v603, %v699
  %v764 = vmul.f32 %v604, %v700
  %v765 = vmul.f32 %v605, %v701
  %v766 = vmul.f32 %v606, %v702
  %v767 = vmul.f32 %v607, %v703
  %v768 = vmul.f32 %v608, %v704
  %v769 = vmul.f32 %v609, %v705
  %v770 = vmul.f32 %v610, %v706
  %v771 = vmul.f32 %v611, %v707
  %v772 = vmul.f32 %v612, %v708
  %v773 = vmul.f32 %v613, %v709
  %v774 = vmul.f32 %v614, %v710
  %775 = vadd.xlane.f32.xlu0 %v759
  %v776 = vpop.xlane.xlu0 %775
  %777 = vadd.xlane.f32.xlu0 %v760
  %v778 = vpop.xlane.xlu0 %777
  %779 = vadd.xlane.f32.xlu0 %v761
  %v780 = vpop.xlane.xlu0 %779
  %781 = vadd.xlane.f32.xlu0 %v762
  %v782 = vpop.xlane.xlu0 %781
  %783 = vadd.xlane.f32.xlu0 %v763
  %v784 = vpop.xlane.xlu0 %783
  %785 = vadd.xlane.f32.xlu0 %v764
  %v786 = vpop.xlane.xlu0 %785
  %787 = vadd.xlane.f32.xlu0 %v765
  %v788 = vpop.xlane.xlu0 %787
  %789 = vadd.xlane.f32.xlu0 %v766
  %v790 = vpop.xlane.xlu0 %789
  %791 = vadd.xlane.f32.xlu0 %v767
  %v792 = vpop.xlane.xlu0 %791
  %793 = vadd.xlane.f32.xlu0 %v768
  %v794 = vpop.xlane.xlu0 %793
  %795 = vadd.xlane.f32.xlu0 %v769
  %v796 = vpop.xlane.xlu0 %795
  %797 = vadd.xlane.f32.xlu0 %v770
  %v798 = vpop.xlane.xlu0 %797
  %799 = vadd.xlane.f32.xlu0 %v771
  %v800 = vpop.xlane.xlu0 %799
  %801 = vadd.xlane.f32.xlu0 %v772
  %v802 = vpop.xlane.xlu0 %801
  %803 = vadd.xlane.f32.xlu0 %v773
  %v804 = vpop.xlane.xlu0 %803
  %805 = vadd.xlane.f32.xlu0 %v774
  %v806 = vpop.xlane.xlu0 %805
  %v807 = vrcp.pop %v743
  %v808 = vmul.f32 %v743, %v807
  %v809 = vsub.f32 1.0, %v808
  %v810 = vmul.f32 %v807, %v809
  %v811 = vadd.f32 %v807, %v810
  %vm812 = vweird.f32 %v743
  %vm813 = vweird.f32 %v807
  %vm814 = vmor %vm812, %vm813
  %v815 = vsel %vm814, %v807, %v811
  %v816 = vand.u32 2147483647, %v743
  %vm817 = vcmp.eq.f32.partialorder %v816, 8.507059e+37
  %v818 = vand.u32 %v743, 2147483648
  %v819 = vor.u32 1.1754944e-38, %v818
  %v820 = vsel %vm817, %v819, %v815
  %v821 = vmul.f32 %v776, %v820
  %v822 = vrcp.pop %v744
  %v823 = vmul.f32 %v744, %v822
  %v824 = vsub.f32 1.0, %v823
  %v825 = vmul.f32 %v822, %v824
  %v826 = vadd.f32 %v822, %v825
  %vm827 = vweird.f32 %v744
  %vm828 = vweird.f32 %v822
  %vm829 = vmor %vm827, %vm828
  %v830 = vsel %vm829, %v822, %v826
  %v831 = vand.u32 2147483647, %v744
  %vm832 = vcmp.eq.f32.partialorder %v831, 8.507059e+37
  %v833 = vand.u32 %v744, 2147483648
  %v834 = vor.u32 1.1754944e-38, %v833
  %v835 = vsel %vm832, %v834, %v830
  %v836 = vmul.f32 %v778, %v835
  %v837 = vrcp.pop %v745
  %v838 = vmul.f32 %v745, %v837
  %v839 = vsub.f32 1.0, %v838
  %v840 = vmul.f32 %v837, %v839
  %v841 = vadd.f32 %v837, %v840
  %vm842 = vweird.f32 %v745
  %vm843 = vweird.f32 %v837
  %vm844 = vmor %vm842, %vm843
  %v845 = vsel %vm844, %v837, %v841
  %v846 = vand.u32 2147483647, %v745
  %vm847 = vcmp.eq.f32.partialorder %v846, 8.507059e+37
  %v848 = vand.u32 %v745, 2147483648
  %v849 = vor.u32 1.1754944e-38, %v848
  %v850 = vsel %vm847, %v849, %v845
  %v851 = vmul.f32 %v780, %v850
  %v852 = vrcp.pop %v746
  %v853 = vmul.f32 %v746, %v852
  %v854 = vsub.f32 1.0, %v853
  %v855 = vmul.f32 %v852, %v854
  %v856 = vadd.f32 %v852, %v855
  %vm857 = vweird.f32 %v746
  %vm858 = vweird.f32 %v852
  %vm859 = vmor %vm857, %vm858
  %v860 = vsel %vm859, %v852, %v856
  %v861 = vand.u32 2147483647, %v746
  %vm862 = vcmp.eq.f32.partialorder %v861, 8.507059e+37
  %v863 = vand.u32 %v746, 2147483648
  %v864 = vor.u32 1.1754944e-38, %v863
  %v865 = vsel %vm862, %v864, %v860
  %v866 = vmul.f32 %v782, %v865
  %v867 = vrcp.pop %v747
  %v868 = vmul.f32 %v747, %v867
  %v869 = vsub.f32 1.0, %v868
  %v870 = vmul.f32 %v867, %v869
  %v871 = vadd.f32 %v867, %v870
  %vm872 = vweird.f32 %v747
  %vm873 = vweird.f32 %v867
  %vm874 = vmor %vm872, %vm873
  %v875 = vsel %vm874, %v867, %v871
  %v876 = vand.u32 2147483647, %v747
  %vm877 = vcmp.eq.f32.partialorder %v876, 8.507059e+37
  %v878 = vand.u32 %v747, 2147483648
  %v879 = vor.u32 1.1754944e-38, %v878
  %v880 = vsel %vm877, %v879, %v875
  %v881 = vmul.f32 %v784, %v880
  %v882 = vrcp.pop %v748
  %v883 = vmul.f32 %v748, %v882
  %v884 = vsub.f32 1.0, %v883
  %v885 = vmul.f32 %v882, %v884
  %v886 = vadd.f32 %v882, %v885
  %vm887 = vweird.f32 %v748
  %vm888 = vweird.f32 %v882
  %vm889 = vmor %vm887, %vm888
  %v890 = vsel %vm889, %v882, %v886
  %v891 = vand.u32 2147483647, %v748
  %vm892 = vcmp.eq.f32.partialorder %v891, 8.507059e+37
  %v893 = vand.u32 %v748, 2147483648
  %v894 = vor.u32 1.1754944e-38, %v893
  %v895 = vsel %vm892, %v894, %v890
  %v896 = vmul.f32 %v786, %v895
  %v897 = vrcp.pop %v749
  %v898 = vmul.f32 %v749, %v897
  %v899 = vsub.f32 1.0, %v898
  %v900 = vmul.f32 %v897, %v899
  %v901 = vadd.f32 %v897, %v900
  %vm902 = vweird.f32 %v749
  %vm903 = vweird.f32 %v897
  %vm904 = vmor %vm902, %vm903
  %v905 = vsel %vm904, %v897, %v901
  %v906 = vand.u32 2147483647, %v749
  %vm907 = vcmp.eq.f32.partialorder %v906, 8.507059e+37
  %v908 = vand.u32 %v749, 2147483648
  %v909 = vor.u32 1.1754944e-38, %v908
  %v910 = vsel %vm907, %v909, %v905
  %v911 = vmul.f32 %v788, %v910
  %v912 = vrcp.pop %v750
  %v913 = vmul.f32 %v750, %v912
  %v914 = vsub.f32 1.0, %v913
  %v915 = vmul.f32 %v912, %v914
  %v916 = vadd.f32 %v912, %v915
  %vm917 = vweird.f32 %v750
  %vm918 = vweird.f32 %v912
  %vm919 = vmor %vm917, %vm918
  %v920 = vsel %vm919, %v912, %v916
  %v921 = vand.u32 2147483647, %v750
  %vm922 = vcmp.eq.f32.partialorder %v921, 8.507059e+37
  %v923 = vand.u32 %v750, 2147483648
  %v924 = vor.u32 1.1754944e-38, %v923
  %v925 = vsel %vm922, %v924, %v920
  %v926 = vmul.f32 %v790, %v925
  %v927 = vrcp.pop %v751
  %v928 = vmul.f32 %v751, %v927
  %v929 = vsub.f32 1.0, %v928
  %v930 = vmul.f32 %v927, %v929
  %v931 = vadd.f32 %v927, %v930
  %vm932 = vweird.f32 %v751
  %vm933 = vweird.f32 %v927
  %vm934 = vmor %vm932, %vm933
  %v935 = vsel %vm934, %v927, %v931
  %v936 = vand.u32 2147483647, %v751
  %vm937 = vcmp.eq.f32.partialorder %v936, 8.507059e+37
  %v938 = vand.u32 %v751, 2147483648
  %v939 = vor.u32 1.1754944e-38, %v938
  %v940 = vsel %vm937, %v939, %v935
  %v941 = vmul.f32 %v792, %v940
  %v942 = vrcp.pop %v752
  %v943 = vmul.f32 %v752, %v942
  %v944 = vsub.f32 1.0, %v943
  %v945 = vmul.f32 %v942, %v944
  %v946 = vadd.f32 %v942, %v945
  %vm947 = vweird.f32 %v752
  %vm948 = vweird.f32 %v942
  %vm949 = vmor %vm947, %vm948
  %v950 = vsel %vm949, %v942, %v946
  %v951 = vand.u32 2147483647, %v752
  %vm952 = vcmp.eq.f32.partialorder %v951, 8.507059e+37
  %v953 = vand.u32 %v752, 2147483648
  %v954 = vor.u32 1.1754944e-38, %v953
  %v955 = vsel %vm952, %v954, %v950
  %v956 = vmul.f32 %v794, %v955
  %v957 = vrcp.pop %v753
  %v958 = vmul.f32 %v753, %v957
  %v959 = vsub.f32 1.0, %v958
  %v960 = vmul.f32 %v957, %v959
  %v961 = vadd.f32 %v957, %v960
  %vm962 = vweird.f32 %v753
  %vm963 = vweird.f32 %v957
  %vm964 = vmor %vm962, %vm963
  %v965 = vsel %vm964, %v957, %v961
  %v966 = vand.u32 2147483647, %v753
  %vm967 = vcmp.eq.f32.partialorder %v966, 8.507059e+37
  %v968 = vand.u32 %v753, 2147483648
  %v969 = vor.u32 1.1754944e-38, %v968
  %v970 = vsel %vm967, %v969, %v965
  %v971 = vmul.f32 %v796, %v970
  %v972 = vrcp.pop %v754
  %v973 = vmul.f32 %v754, %v972
  %v974 = vsub.f32 1.0, %v973
  %v975 = vmul.f32 %v972, %v974
  %v976 = vadd.f32 %v972, %v975
  %vm977 = vweird.f32 %v754
  %vm978 = vweird.f32 %v972
  %vm979 = vmor %vm977, %vm978
  %v980 = vsel %vm979, %v972, %v976
  %v981 = vand.u32 2147483647, %v754
  %vm982 = vcmp.eq.f32.partialorder %v981, 8.507059e+37
  %v983 = vand.u32 %v754, 2147483648
  %v984 = vor.u32 1.1754944e-38, %v983
  %v985 = vsel %vm982, %v984, %v980
  %v986 = vmul.f32 %v798, %v985
  %v987 = vrcp.pop %v755
  %v988 = vmul.f32 %v755, %v987
  %v989 = vsub.f32 1.0, %v988
  %v990 = vmul.f32 %v987, %v989
  %v991 = vadd.f32 %v987, %v990
  %vm992 = vweird.f32 %v755
  %vm993 = vweird.f32 %v987
  %vm994 = vmor %vm992, %vm993
  %v995 = vsel %vm994, %v987, %v991
  %v996 = vand.u32 2147483647, %v755
  %vm997 = vcmp.eq.f32.partialorder %v996, 8.507059e+37
  %v998 = vand.u32 %v755, 2147483648
  %v999 = vor.u32 1.1754944e-38, %v998
  %v1000 = vsel %vm997, %v999, %v995
  %v1001 = vmul.f32 %v800, %v1000
  %v1002 = vrcp.pop %v756
  %v1003 = vmul.f32 %v756, %v1002
  %v1004 = vsub.f32 1.0, %v1003
  %v1005 = vmul.f32 %v1002, %v1004
  %v1006 = vadd.f32 %v1002, %v1005
  %vm1007 = vweird.f32 %v756
  %vm1008 = vweird.f32 %v1002
  %vm1009 = vmor %vm1007, %vm1008
  %v1010 = vsel %vm1009, %v1002, %v1006
  %v1011 = vand.u32 2147483647, %v756
  %vm1012 = vcmp.eq.f32.partialorder %v1011, 8.507059e+37
  %v1013 = vand.u32 %v756, 2147483648
  %v1014 = vor.u32 1.1754944e-38, %v1013
  %v1015 = vsel %vm1012, %v1014, %v1010
  %v1016 = vmul.f32 %v802, %v1015
  %v1017 = vrcp.pop %v757
  %v1018 = vmul.f32 %v757, %v1017
  %v1019 = vsub.f32 1.0, %v1018
  %v1020 = vmul.f32 %v1017, %v1019
  %v1021 = vadd.f32 %v1017, %v1020
  %vm1022 = vweird.f32 %v757
  %vm1023 = vweird.f32 %v1017
  %vm1024 = vmor %vm1022, %vm1023
  %v1025 = vsel %vm1024, %v1017, %v1021
  %v1026 = vand.u32 2147483647, %v757
  %vm1027 = vcmp.eq.f32.partialorder %v1026, 8.507059e+37
  %v1028 = vand.u32 %v757, 2147483648
  %v1029 = vor.u32 1.1754944e-38, %v1028
  %v1030 = vsel %vm1027, %v1029, %v1025
  %v1031 = vmul.f32 %v804, %v1030
  %v1032 = vrcp.pop %v758
  %v1033 = vmul.f32 %v758, %v1032
  %v1034 = vsub.f32 1.0, %v1033
  %v1035 = vmul.f32 %v1032, %v1034
  %v1036 = vadd.f32 %v1032, %v1035
  %vm1037 = vweird.f32 %v758
  %vm1038 = vweird.f32 %v1032
  %vm1039 = vmor %vm1037, %vm1038
  %v1040 = vsel %vm1039, %v1032, %v1036
  %v1041 = vand.u32 2147483647, %v758
  %vm1042 = vcmp.eq.f32.partialorder %v1041, 8.507059e+37
  %v1043 = vand.u32 %v758, 2147483648
  %v1044 = vor.u32 1.1754944e-38, %v1043
  %v1045 = vsel %vm1042, %v1044, %v1040
  %v1046 = vmul.f32 %v806, %v1045
  %v1047 = vmul.f32 %v300, %v583
  %v1048 = vmul.f32 %v312, %v584
  %v1049 = vmul.f32 %v324, %v585
  %v1050 = vmul.f32 %v336, %v586
  %v1051 = vmul.f32 %v348, %v587
  %v1052 = vmul.f32 %v360, %v588
  %v1053 = vmul.f32 %v372, %v589
  %v1054 = vmul.f32 %v384, %v590
  %v1055 = vmul.f32 %v396, %v591
  %v1056 = vmul.f32 %v408, %v592
  %v1057 = vmul.f32 %v420, %v593
  %v1058 = vmul.f32 %v432, %v594
  %v1059 = vmul.f32 %v444, %v595
  %v1060 = vmul.f32 %v456, %v596
  %v1061 = vmul.f32 %v468, %v597
  %v1062 = vmul.f32 %v480, %v598
  %v1063 = vsub.f32 0.0, %v1047
  %v1064 = vsub.f32 0.0, %v1048
  %v1065 = vsub.f32 0.0, %v1049
  %v1066 = vsub.f32 0.0, %v1050
  %v1067 = vsub.f32 0.0, %v1051
  %v1068 = vsub.f32 0.0, %v1052
  %v1069 = vsub.f32 0.0, %v1053
  %v1070 = vsub.f32 0.0, %v1054
  %v1071 = vsub.f32 0.0, %v1055
  %v1072 = vsub.f32 0.0, %v1056
  %v1073 = vsub.f32 0.0, %v1057
  %v1074 = vsub.f32 0.0, %v1058
  %v1075 = vsub.f32 0.0, %v1059
  %v1076 = vsub.f32 0.0, %v1060
  %v1077 = vsub.f32 0.0, %v1061
  %v1078 = vsub.f32 0.0, %v1062
  %1079 = vmax.xlane.f32.xlu0 %v1063
  %v1080 = vpop.xlane.xlu0 %1079
  %1081 = vmax.xlane.f32.xlu0 %v1064
  %v1082 = vpop.xlane.xlu0 %1081
  %1083 = vmax.xlane.f32.xlu0 %v1065
  %v1084 = vpop.xlane.xlu0 %1083
  %1085 = vmax.xlane.f32.xlu0 %v1066
  %v1086 = vpop.xlane.xlu0 %1085
  %1087 = vmax.xlane.f32.xlu0 %v1067
  %v1088 = vpop.xlane.xlu0 %1087
  %1089 = vmax.xlane.f32.xlu0 %v1068
  %v1090 = vpop.xlane.xlu0 %1089
  %1091 = vmax.xlane.f32.xlu0 %v1069
  %v1092 = vpop.xlane.xlu0 %1091
  %1093 = vmax.xlane.f32.xlu0 %v1070
  %v1094 = vpop.xlane.xlu0 %1093
  %1095 = vmax.xlane.f32.xlu0 %v1071
  %v1096 = vpop.xlane.xlu0 %1095
  %1097 = vmax.xlane.f32.xlu0 %v1072
  %v1098 = vpop.xlane.xlu0 %1097
  %1099 = vmax.xlane.f32.xlu0 %v1073
  %v1100 = vpop.xlane.xlu0 %1099
  %1101 = vmax.xlane.f32.xlu0 %v1074
  %v1102 = vpop.xlane.xlu0 %1101
  %1103 = vmax.xlane.f32.xlu0 %v1075
  %v1104 = vpop.xlane.xlu0 %1103
  %1105 = vmax.xlane.f32.xlu0 %v1076
  %v1106 = vpop.xlane.xlu0 %1105
  %1107 = vmax.xlane.f32.xlu0 %v1077
  %v1108 = vpop.xlane.xlu0 %1107
  %1109 = vmax.xlane.f32.xlu0 %v1078
  %v1110 = vpop.xlane.xlu0 %1109
  %v1111 = vsub.f32 %v1063, %v1080
  %v1112 = vsub.f32 %v1064, %v1082
  %v1113 = vsub.f32 %v1065, %v1084
  %v1114 = vsub.f32 %v1066, %v1086
  %v1115 = vsub.f32 %v1067, %v1088
  %v1116 = vsub.f32 %v1068, %v1090
  %v1117 = vsub.f32 %v1069, %v1092
  %v1118 = vsub.f32 %v1070, %v1094
  %v1119 = vsub.f32 %v1071, %v1096
  %v1120 = vsub.f32 %v1072, %v1098
  %v1121 = vsub.f32 %v1073, %v1100
  %v1122 = vsub.f32 %v1074, %v1102
  %v1123 = vsub.f32 %v1075, %v1104
  %v1124 = vsub.f32 %v1076, %v1106
  %v1125 = vsub.f32 %v1077, %v1108
  %v1126 = vsub.f32 %v1078, %v1110
  %v1127 = vmul.f32 %v1111, 1.442695
  %v1128 = vpow.pop %v1127
  %v1129 = vmul.f32 %v1112, 1.442695
  %v1130 = vpow.pop %v1129
  %v1131 = vmul.f32 %v1113, 1.442695
  %v1132 = vpow.pop %v1131
  %v1133 = vmul.f32 %v1114, 1.442695
  %v1134 = vpow.pop %v1133
  %v1135 = vmul.f32 %v1115, 1.442695
  %v1136 = vpow.pop %v1135
  %v1137 = vmul.f32 %v1116, 1.442695
  %v1138 = vpow.pop %v1137
  %v1139 = vmul.f32 %v1117, 1.442695
  %v1140 = vpow.pop %v1139
  %v1141 = vmul.f32 %v1118, 1.442695
  %v1142 = vpow.pop %v1141
  %v1143 = vmul.f32 %v1119, 1.442695
  %v1144 = vpow.pop %v1143
  %v1145 = vmul.f32 %v1120, 1.442695
  %v1146 = vpow.pop %v1145
  %v1147 = vmul.f32 %v1121, 1.442695
  %v1148 = vpow.pop %v1147
  %v1149 = vmul.f32 %v1122, 1.442695
  %v1150 = vpow.pop %v1149
  %v1151 = vmul.f32 %v1123, 1.442695
  %v1152 = vpow.pop %v1151
  %v1153 = vmul.f32 %v1124, 1.442695
  %v1154 = vpow.pop %v1153
  %v1155 = vmul.f32 %v1125, 1.442695
  %v1156 = vpow.pop %v1155
  %v1157 = vmul.f32 %v1126, 1.442695
  %v1158 = vpow.pop %v1157
  %v1159 = vmul.f32 %v1128, %v583
  %v1160 = vmul.f32 %v1130, %v584
  %v1161 = vmul.f32 %v1132, %v585
  %v1162 = vmul.f32 %v1134, %v586
  %v1163 = vmul.f32 %v1136, %v587
  %v1164 = vmul.f32 %v1138, %v588
  %v1165 = vmul.f32 %v1140, %v589
  %v1166 = vmul.f32 %v1142, %v590
  %v1167 = vmul.f32 %v1144, %v591
  %v1168 = vmul.f32 %v1146, %v592
  %v1169 = vmul.f32 %v1148, %v593
  %v1170 = vmul.f32 %v1150, %v594
  %v1171 = vmul.f32 %v1152, %v595
  %v1172 = vmul.f32 %v1154, %v596
  %v1173 = vmul.f32 %v1156, %v597
  %v1174 = vmul.f32 %v1158, %v598
  %1175 = vadd.xlane.f32.xlu0 %v1159
  %v1176 = vpop.xlane.xlu0 %1175
  %1177 = vadd.xlane.f32.xlu0 %v1160
  %v1178 = vpop.xlane.xlu0 %1177
  %1179 = vadd.xlane.f32.xlu0 %v1161
  %v1180 = vpop.xlane.xlu0 %1179
  %1181 = vadd.xlane.f32.xlu0 %v1162
  %v1182 = vpop.xlane.xlu0 %1181
  %1183 = vadd.xlane.f32.xlu0 %v1163
  %v1184 = vpop.xlane.xlu0 %1183
  %1185 = vadd.xlane.f32.xlu0 %v1164
  %v1186 = vpop.xlane.xlu0 %1185
  %1187 = vadd.xlane.f32.xlu0 %v1165
  %v1188 = vpop.xlane.xlu0 %1187
  %1189 = vadd.xlane.f32.xlu0 %v1166
  %v1190 = vpop.xlane.xlu0 %1189
  %1191 = vadd.xlane.f32.xlu0 %v1167
  %v1192 = vpop.xlane.xlu0 %1191
  %1193 = vadd.xlane.f32.xlu0 %v1168
  %v1194 = vpop.xlane.xlu0 %1193
  %1195 = vadd.xlane.f32.xlu0 %v1169
  %v1196 = vpop.xlane.xlu0 %1195
  %1197 = vadd.xlane.f32.xlu0 %v1170
  %v1198 = vpop.xlane.xlu0 %1197
  %1199 = vadd.xlane.f32.xlu0 %v1171
  %v1200 = vpop.xlane.xlu0 %1199
  %1201 = vadd.xlane.f32.xlu0 %v1172
  %v1202 = vpop.xlane.xlu0 %1201
  %1203 = vadd.xlane.f32.xlu0 %v1173
  %v1204 = vpop.xlane.xlu0 %1203
  %1205 = vadd.xlane.f32.xlu0 %v1174
  %v1206 = vpop.xlane.xlu0 %1205
  %v1207 = vadd.f32 %v1176, 1e-06
  %v1208 = vadd.f32 %v1178, 1e-06
  %v1209 = vadd.f32 %v1180, 1e-06
  %v1210 = vadd.f32 %v1182, 1e-06
  %v1211 = vadd.f32 %v1184, 1e-06
  %v1212 = vadd.f32 %v1186, 1e-06
  %v1213 = vadd.f32 %v1188, 1e-06
  %v1214 = vadd.f32 %v1190, 1e-06
  %v1215 = vadd.f32 %v1192, 1e-06
  %v1216 = vadd.f32 %v1194, 1e-06
  %v1217 = vadd.f32 %v1196, 1e-06
  %v1218 = vadd.f32 %v1198, 1e-06
  %v1219 = vadd.f32 %v1200, 1e-06
  %v1220 = vadd.f32 %v1202, 1e-06
  %v1221 = vadd.f32 %v1204, 1e-06
  %v1222 = vadd.f32 %v1206, 1e-06
  %v1223 = vmul.f32 %v1047, %v1159
  %v1224 = vmul.f32 %v1048, %v1160
  %v1225 = vmul.f32 %v1049, %v1161
  %v1226 = vmul.f32 %v1050, %v1162
  %v1227 = vmul.f32 %v1051, %v1163
  %v1228 = vmul.f32 %v1052, %v1164
  %v1229 = vmul.f32 %v1053, %v1165
  %v1230 = vmul.f32 %v1054, %v1166
  %v1231 = vmul.f32 %v1055, %v1167
  %v1232 = vmul.f32 %v1056, %v1168
  %v1233 = vmul.f32 %v1057, %v1169
  %v1234 = vmul.f32 %v1058, %v1170
  %v1235 = vmul.f32 %v1059, %v1171
  %v1236 = vmul.f32 %v1060, %v1172
  %v1237 = vmul.f32 %v1061, %v1173
  %v1238 = vmul.f32 %v1062, %v1174
  %1239 = vadd.xlane.f32.xlu0 %v1223
  %v1240 = vpop.xlane.xlu0 %1239
  %1241 = vadd.xlane.f32.xlu0 %v1224
  %v1242 = vpop.xlane.xlu0 %1241
  %1243 = vadd.xlane.f32.xlu0 %v1225
  %v1244 = vpop.xlane.xlu0 %1243
  %1245 = vadd.xlane.f32.xlu0 %v1226
  %v1246 = vpop.xlane.xlu0 %1245
  %1247 = vadd.xlane.f32.xlu0 %v1227
  %v1248 = vpop.xlane.xlu0 %1247
  %1249 = vadd.xlane.f32.xlu0 %v1228
  %v1250 = vpop.xlane.xlu0 %1249
  %1251 = vadd.xlane.f32.xlu0 %v1229
  %v1252 = vpop.xlane.xlu0 %1251
  %1253 = vadd.xlane.f32.xlu0 %v1230
  %v1254 = vpop.xlane.xlu0 %1253
  %1255 = vadd.xlane.f32.xlu0 %v1231
  %v1256 = vpop.xlane.xlu0 %1255
  %1257 = vadd.xlane.f32.xlu0 %v1232
  %v1258 = vpop.xlane.xlu0 %1257
  %1259 = vadd.xlane.f32.xlu0 %v1233
  %v1260 = vpop.xlane.xlu0 %1259
  %1261 = vadd.xlane.f32.xlu0 %v1234
  %v1262 = vpop.xlane.xlu0 %1261
  %1263 = vadd.xlane.f32.xlu0 %v1235
  %v1264 = vpop.xlane.xlu0 %1263
  %1265 = vadd.xlane.f32.xlu0 %v1236
  %v1266 = vpop.xlane.xlu0 %1265
  %1267 = vadd.xlane.f32.xlu0 %v1237
  %v1268 = vpop.xlane.xlu0 %1267
  %1269 = vadd.xlane.f32.xlu0 %v1238
  %v1270 = vpop.xlane.xlu0 %1269
  %v1271 = vrcp.pop %v1207
  %v1272 = vmul.f32 %v1207, %v1271
  %v1273 = vsub.f32 1.0, %v1272
  %v1274 = vmul.f32 %v1271, %v1273
  %v1275 = vadd.f32 %v1271, %v1274
  %vm1276 = vweird.f32 %v1207
  %vm1277 = vweird.f32 %v1271
  %vm1278 = vmor %vm1276, %vm1277
  %v1279 = vsel %vm1278, %v1271, %v1275
  %v1280 = vand.u32 2147483647, %v1207
  %vm1281 = vcmp.eq.f32.partialorder %v1280, 8.507059e+37
  %v1282 = vand.u32 %v1207, 2147483648
  %v1283 = vor.u32 1.1754944e-38, %v1282
  %v1284 = vsel %vm1281, %v1283, %v1279
  %v1285 = vmul.f32 %v1240, %v1284
  %v1286 = vrcp.pop %v1208
  %v1287 = vmul.f32 %v1208, %v1286
  %v1288 = vsub.f32 1.0, %v1287
  %v1289 = vmul.f32 %v1286, %v1288
  %v1290 = vadd.f32 %v1286, %v1289
  %vm1291 = vweird.f32 %v1208
  %vm1292 = vweird.f32 %v1286
  %vm1293 = vmor %vm1291, %vm1292
  %v1294 = vsel %vm1293, %v1286, %v1290
  %v1295 = vand.u32 2147483647, %v1208
  %vm1296 = vcmp.eq.f32.partialorder %v1295, 8.507059e+37
  %v1297 = vand.u32 %v1208, 2147483648
  %v1298 = vor.u32 1.1754944e-38, %v1297
  %v1299 = vsel %vm1296, %v1298, %v1294
  %v1300 = vmul.f32 %v1242, %v1299
  %v1301 = vrcp.pop %v1209
  %v1302 = vmul.f32 %v1209, %v1301
  %v1303 = vsub.f32 1.0, %v1302
  %v1304 = vmul.f32 %v1301, %v1303
  %v1305 = vadd.f32 %v1301, %v1304
  %vm1306 = vweird.f32 %v1209
  %vm1307 = vweird.f32 %v1301
  %vm1308 = vmor %vm1306, %vm1307
  %v1309 = vsel %vm1308, %v1301, %v1305
  %v1310 = vand.u32 2147483647, %v1209
  %vm1311 = vcmp.eq.f32.partialorder %v1310, 8.507059e+37
  %v1312 = vand.u32 %v1209, 2147483648
  %v1313 = vor.u32 1.1754944e-38, %v1312
  %v1314 = vsel %vm1311, %v1313, %v1309
  %v1315 = vmul.f32 %v1244, %v1314
  %v1316 = vrcp.pop %v1210
  %v1317 = vmul.f32 %v1210, %v1316
  %v1318 = vsub.f32 1.0, %v1317
  %v1319 = vmul.f32 %v1316, %v1318
  %v1320 = vadd.f32 %v1316, %v1319
  %vm1321 = vweird.f32 %v1210
  %vm1322 = vweird.f32 %v1316
  %vm1323 = vmor %vm1321, %vm1322
  %v1324 = vsel %vm1323, %v1316, %v1320
  %v1325 = vand.u32 2147483647, %v1210
  %vm1326 = vcmp.eq.f32.partialorder %v1325, 8.507059e+37
  %v1327 = vand.u32 %v1210, 2147483648
  %v1328 = vor.u32 1.1754944e-38, %v1327
  %v1329 = vsel %vm1326, %v1328, %v1324
  %v1330 = vmul.f32 %v1246, %v1329
  %v1331 = vrcp.pop %v1211
  %v1332 = vmul.f32 %v1211, %v1331
  %v1333 = vsub.f32 1.0, %v1332
  %v1334 = vmul.f32 %v1331, %v1333
  %v1335 = vadd.f32 %v1331, %v1334
  %vm1336 = vweird.f32 %v1211
  %vm1337 = vweird.f32 %v1331
  %vm1338 = vmor %vm1336, %vm1337
  %v1339 = vsel %vm1338, %v1331, %v1335
  %v1340 = vand.u32 2147483647, %v1211
  %vm1341 = vcmp.eq.f32.partialorder %v1340, 8.507059e+37
  %v1342 = vand.u32 %v1211, 2147483648
  %v1343 = vor.u32 1.1754944e-38, %v1342
  %v1344 = vsel %vm1341, %v1343, %v1339
  %v1345 = vmul.f32 %v1248, %v1344
  %v1346 = vrcp.pop %v1212
  %v1347 = vmul.f32 %v1212, %v1346
  %v1348 = vsub.f32 1.0, %v1347
  %v1349 = vmul.f32 %v1346, %v1348
  %v1350 = vadd.f32 %v1346, %v1349
  %vm1351 = vweird.f32 %v1212
  %vm1352 = vweird.f32 %v1346
  %vm1353 = vmor %vm1351, %vm1352
  %v1354 = vsel %vm1353, %v1346, %v1350
  %v1355 = vand.u32 2147483647, %v1212
  %vm1356 = vcmp.eq.f32.partialorder %v1355, 8.507059e+37
  %v1357 = vand.u32 %v1212, 2147483648
  %v1358 = vor.u32 1.1754944e-38, %v1357
  %v1359 = vsel %vm1356, %v1358, %v1354
  %v1360 = vmul.f32 %v1250, %v1359
  %v1361 = vrcp.pop %v1213
  %v1362 = vmul.f32 %v1213, %v1361
  %v1363 = vsub.f32 1.0, %v1362
  %v1364 = vmul.f32 %v1361, %v1363
  %v1365 = vadd.f32 %v1361, %v1364
  %vm1366 = vweird.f32 %v1213
  %vm1367 = vweird.f32 %v1361
  %vm1368 = vmor %vm1366, %vm1367
  %v1369 = vsel %vm1368, %v1361, %v1365
  %v1370 = vand.u32 2147483647, %v1213
  %vm1371 = vcmp.eq.f32.partialorder %v1370, 8.507059e+37
  %v1372 = vand.u32 %v1213, 2147483648
  %v1373 = vor.u32 1.1754944e-38, %v1372
  %v1374 = vsel %vm1371, %v1373, %v1369
  %v1375 = vmul.f32 %v1252, %v1374
  %v1376 = vrcp.pop %v1214
  %v1377 = vmul.f32 %v1214, %v1376
  %v1378 = vsub.f32 1.0, %v1377
  %v1379 = vmul.f32 %v1376, %v1378
  %v1380 = vadd.f32 %v1376, %v1379
  %vm1381 = vweird.f32 %v1214
  %vm1382 = vweird.f32 %v1376
  %vm1383 = vmor %vm1381, %vm1382
  %v1384 = vsel %vm1383, %v1376, %v1380
  %v1385 = vand.u32 2147483647, %v1214
  %vm1386 = vcmp.eq.f32.partialorder %v1385, 8.507059e+37
  %v1387 = vand.u32 %v1214, 2147483648
  %v1388 = vor.u32 1.1754944e-38, %v1387
  %v1389 = vsel %vm1386, %v1388, %v1384
  %v1390 = vmul.f32 %v1254, %v1389
  %v1391 = vrcp.pop %v1215
  %v1392 = vmul.f32 %v1215, %v1391
  %v1393 = vsub.f32 1.0, %v1392
  %v1394 = vmul.f32 %v1391, %v1393
  %v1395 = vadd.f32 %v1391, %v1394
  %vm1396 = vweird.f32 %v1215
  %vm1397 = vweird.f32 %v1391
  %vm1398 = vmor %vm1396, %vm1397
  %v1399 = vsel %vm1398, %v1391, %v1395
  %v1400 = vand.u32 2147483647, %v1215
  %vm1401 = vcmp.eq.f32.partialorder %v1400, 8.507059e+37
  %v1402 = vand.u32 %v1215, 2147483648
  %v1403 = vor.u32 1.1754944e-38, %v1402
  %v1404 = vsel %vm1401, %v1403, %v1399
  %v1405 = vmul.f32 %v1256, %v1404
  %v1406 = vrcp.pop %v1216
  %v1407 = vmul.f32 %v1216, %v1406
  %v1408 = vsub.f32 1.0, %v1407
  %v1409 = vmul.f32 %v1406, %v1408
  %v1410 = vadd.f32 %v1406, %v1409
  %vm1411 = vweird.f32 %v1216
  %vm1412 = vweird.f32 %v1406
  %vm1413 = vmor %vm1411, %vm1412
  %v1414 = vsel %vm1413, %v1406, %v1410
  %v1415 = vand.u32 2147483647, %v1216
  %vm1416 = vcmp.eq.f32.partialorder %v1415, 8.507059e+37
  %v1417 = vand.u32 %v1216, 2147483648
  %v1418 = vor.u32 1.1754944e-38, %v1417
  %v1419 = vsel %vm1416, %v1418, %v1414
  %v1420 = vmul.f32 %v1258, %v1419
  %v1421 = vrcp.pop %v1217
  %v1422 = vmul.f32 %v1217, %v1421
  %v1423 = vsub.f32 1.0, %v1422
  %v1424 = vmul.f32 %v1421, %v1423
  %v1425 = vadd.f32 %v1421, %v1424
  %vm1426 = vweird.f32 %v1217
  %vm1427 = vweird.f32 %v1421
  %vm1428 = vmor %vm1426, %vm1427
  %v1429 = vsel %vm1428, %v1421, %v1425
  %v1430 = vand.u32 2147483647, %v1217
  %vm1431 = vcmp.eq.f32.partialorder %v1430, 8.507059e+37
  %v1432 = vand.u32 %v1217, 2147483648
  %v1433 = vor.u32 1.1754944e-38, %v1432
  %v1434 = vsel %vm1431, %v1433, %v1429
  %v1435 = vmul.f32 %v1260, %v1434
  %v1436 = vrcp.pop %v1218
  %v1437 = vmul.f32 %v1218, %v1436
  %v1438 = vsub.f32 1.0, %v1437
  %v1439 = vmul.f32 %v1436, %v1438
  %v1440 = vadd.f32 %v1436, %v1439
  %vm1441 = vweird.f32 %v1218
  %vm1442 = vweird.f32 %v1436
  %vm1443 = vmor %vm1441, %vm1442
  %v1444 = vsel %vm1443, %v1436, %v1440
  %v1445 = vand.u32 2147483647, %v1218
  %vm1446 = vcmp.eq.f32.partialorder %v1445, 8.507059e+37
  %v1447 = vand.u32 %v1218, 2147483648
  %v1448 = vor.u32 1.1754944e-38, %v1447
  %v1449 = vsel %vm1446, %v1448, %v1444
  %v1450 = vmul.f32 %v1262, %v1449
  %v1451 = vrcp.pop %v1219
  %v1452 = vmul.f32 %v1219, %v1451
  %v1453 = vsub.f32 1.0, %v1452
  %v1454 = vmul.f32 %v1451, %v1453
  %v1455 = vadd.f32 %v1451, %v1454
  %vm1456 = vweird.f32 %v1219
  %vm1457 = vweird.f32 %v1451
  %vm1458 = vmor %vm1456, %vm1457
  %v1459 = vsel %vm1458, %v1451, %v1455
  %v1460 = vand.u32 2147483647, %v1219
  %vm1461 = vcmp.eq.f32.partialorder %v1460, 8.507059e+37
  %v1462 = vand.u32 %v1219, 2147483648
  %v1463 = vor.u32 1.1754944e-38, %v1462
  %v1464 = vsel %vm1461, %v1463, %v1459
  %v1465 = vmul.f32 %v1264, %v1464
  %v1466 = vrcp.pop %v1220
  %v1467 = vmul.f32 %v1220, %v1466
  %v1468 = vsub.f32 1.0, %v1467
  %v1469 = vmul.f32 %v1466, %v1468
  %v1470 = vadd.f32 %v1466, %v1469
  %vm1471 = vweird.f32 %v1220
  %vm1472 = vweird.f32 %v1466
  %vm1473 = vmor %vm1471, %vm1472
  %v1474 = vsel %vm1473, %v1466, %v1470
  %v1475 = vand.u32 2147483647, %v1220
  %vm1476 = vcmp.eq.f32.partialorder %v1475, 8.507059e+37
  %v1477 = vand.u32 %v1220, 2147483648
  %v1478 = vor.u32 1.1754944e-38, %v1477
  %v1479 = vsel %vm1476, %v1478, %v1474
  %v1480 = vmul.f32 %v1266, %v1479
  %v1481 = vrcp.pop %v1221
  %v1482 = vmul.f32 %v1221, %v1481
  %v1483 = vsub.f32 1.0, %v1482
  %v1484 = vmul.f32 %v1481, %v1483
  %v1485 = vadd.f32 %v1481, %v1484
  %vm1486 = vweird.f32 %v1221
  %vm1487 = vweird.f32 %v1481
  %vm1488 = vmor %vm1486, %vm1487
  %v1489 = vsel %vm1488, %v1481, %v1485
  %v1490 = vand.u32 2147483647, %v1221
  %vm1491 = vcmp.eq.f32.partialorder %v1490, 8.507059e+37
  %v1492 = vand.u32 %v1221, 2147483648
  %v1493 = vor.u32 1.1754944e-38, %v1492
  %v1494 = vsel %vm1491, %v1493, %v1489
  %v1495 = vmul.f32 %v1268, %v1494
  %v1496 = vrcp.pop %v1222
  %v1497 = vmul.f32 %v1222, %v1496
  %v1498 = vsub.f32 1.0, %v1497
  %v1499 = vmul.f32 %v1496, %v1498
  %v1500 = vadd.f32 %v1496, %v1499
  %vm1501 = vweird.f32 %v1222
  %vm1502 = vweird.f32 %v1496
  %vm1503 = vmor %vm1501, %vm1502
  %v1504 = vsel %vm1503, %v1496, %v1500
  %v1505 = vand.u32 2147483647, %v1222
  %vm1506 = vcmp.eq.f32.partialorder %v1505, 8.507059e+37
  %v1507 = vand.u32 %v1222, 2147483648
  %v1508 = vor.u32 1.1754944e-38, %v1507
  %v1509 = vsel %vm1506, %v1508, %v1504
  %v1510 = vmul.f32 %v1270, %v1509
  %v1511 = vsub.f32 %v1285, %v821
  %v1512 = vsub.f32 %v1300, %v836
  %v1513 = vsub.f32 %v1315, %v851
  %v1514 = vsub.f32 %v1330, %v866
  %v1515 = vsub.f32 %v1345, %v881
  %v1516 = vsub.f32 %v1360, %v896
  %v1517 = vsub.f32 %v1375, %v911
  %v1518 = vsub.f32 %v1390, %v926
  %v1519 = vsub.f32 %v1405, %v941
  %v1520 = vsub.f32 %v1420, %v956
  %v1521 = vsub.f32 %v1435, %v971
  %v1522 = vsub.f32 %v1450, %v986
  %v1523 = vsub.f32 %v1465, %v1001
  %v1524 = vsub.f32 %v1480, %v1016
  %v1525 = vsub.f32 %v1495, %v1031
  %v1526 = vsub.f32 %v1510, %v1046
  %v1527 = vsub.f32 0.0, %v1511
  %v1528 = vsub.f32 0.0, %v1512
  %v1529 = vsub.f32 0.0, %v1513
  %v1530 = vsub.f32 0.0, %v1514
  %v1531 = vsub.f32 0.0, %v1515
  %v1532 = vsub.f32 0.0, %v1516
  %v1533 = vsub.f32 0.0, %v1517
  %v1534 = vsub.f32 0.0, %v1518
  %v1535 = vsub.f32 0.0, %v1519
  %v1536 = vsub.f32 0.0, %v1520
  %v1537 = vsub.f32 0.0, %v1521
  %v1538 = vsub.f32 0.0, %v1522
  %v1539 = vsub.f32 0.0, %v1523
  %v1540 = vsub.f32 0.0, %v1524
  %v1541 = vsub.f32 0.0, %v1525
  %v1542 = vsub.f32 0.0, %v1526
  %v1543 = vmax.f32 %v1527, 0.0
  %v1544 = vmax.f32 %v1528, 0.0
  %v1545 = vmax.f32 %v1529, 0.0
  %v1546 = vmax.f32 %v1530, 0.0
  %v1547 = vmax.f32 %v1531, 0.0
  %v1548 = vmax.f32 %v1532, 0.0
  %v1549 = vmax.f32 %v1533, 0.0
  %v1550 = vmax.f32 %v1534, 0.0
  %v1551 = vmax.f32 %v1535, 0.0
  %v1552 = vmax.f32 %v1536, 0.0
  %v1553 = vmax.f32 %v1537, 0.0
  %v1554 = vmax.f32 %v1538, 0.0
  %v1555 = vmax.f32 %v1539, 0.0
  %v1556 = vmax.f32 %v1540, 0.0
  %v1557 = vmax.f32 %v1541, 0.0
  %v1558 = vmax.f32 %v1542, 0.0
  %v1559 = vand.u32 2147483647, %v1511
  %v1560 = vand.u32 2147483647, %v1512
  %v1561 = vand.u32 2147483647, %v1513
  %v1562 = vand.u32 2147483647, %v1514
  %v1563 = vand.u32 2147483647, %v1515
  %v1564 = vand.u32 2147483647, %v1516
  %v1565 = vand.u32 2147483647, %v1517
  %v1566 = vand.u32 2147483647, %v1518
  %v1567 = vand.u32 2147483647, %v1519
  %v1568 = vand.u32 2147483647, %v1520
  %v1569 = vand.u32 2147483647, %v1521
  %v1570 = vand.u32 2147483647, %v1522
  %v1571 = vand.u32 2147483647, %v1523
  %v1572 = vand.u32 2147483647, %v1524
  %v1573 = vand.u32 2147483647, %v1525
  %v1574 = vand.u32 2147483647, %v1526
  %v1575 = vsub.f32 0.0, %v1559
  %v1576 = vsub.f32 0.0, %v1560
  %v1577 = vsub.f32 0.0, %v1561
  %v1578 = vsub.f32 0.0, %v1562
  %v1579 = vsub.f32 0.0, %v1563
  %v1580 = vsub.f32 0.0, %v1564
  %v1581 = vsub.f32 0.0, %v1565
  %v1582 = vsub.f32 0.0, %v1566
  %v1583 = vsub.f32 0.0, %v1567
  %v1584 = vsub.f32 0.0, %v1568
  %v1585 = vsub.f32 0.0, %v1569
  %v1586 = vsub.f32 0.0, %v1570
  %v1587 = vsub.f32 0.0, %v1571
  %v1588 = vsub.f32 0.0, %v1572
  %v1589 = vsub.f32 0.0, %v1573
  %v1590 = vsub.f32 0.0, %v1574
  %v1591 = vmul.f32 %v1575, 1.442695
  %v1592 = vpow.pop %v1591
  %v1593 = vmul.f32 %v1576, 1.442695
  %v1594 = vpow.pop %v1593
  %v1595 = vmul.f32 %v1577, 1.442695
  %v1596 = vpow.pop %v1595
  %v1597 = vmul.f32 %v1578, 1.442695
  %v1598 = vpow.pop %v1597
  %v1599 = vmul.f32 %v1579, 1.442695
  %v1600 = vpow.pop %v1599
  %v1601 = vmul.f32 %v1580, 1.442695
  %v1602 = vpow.pop %v1601
  %v1603 = vmul.f32 %v1581, 1.442695
  %v1604 = vpow.pop %v1603
  %v1605 = vmul.f32 %v1582, 1.442695
  %v1606 = vpow.pop %v1605
  %v1607 = vmul.f32 %v1583, 1.442695
  %v1608 = vpow.pop %v1607
  %v1609 = vmul.f32 %v1584, 1.442695
  %v1610 = vpow.pop %v1609
  %v1611 = vmul.f32 %v1585, 1.442695
  %v1612 = vpow.pop %v1611
  %v1613 = vmul.f32 %v1586, 1.442695
  %v1614 = vpow.pop %v1613
  %v1615 = vmul.f32 %v1587, 1.442695
  %v1616 = vpow.pop %v1615
  %v1617 = vmul.f32 %v1588, 1.442695
  %v1618 = vpow.pop %v1617
  %v1619 = vmul.f32 %v1589, 1.442695
  %v1620 = vpow.pop %v1619
  %v1621 = vmul.f32 %v1590, 1.442695
  %v1622 = vpow.pop %v1621
  %v1623 = vadd.f32 %v1592, 1.0
  %v1624 = vlog2.pop %v1623
  %v1625 = vmul.f32 %v1624, 0.6931472
  %v1626 = vmul.f32 -0.5, %v1592
  %v1627 = vadd.f32 %v1626, 1.0
  %v1628 = vmul.f32 %v1627, %v1592
  %v1629 = vand.u32 2147483647, %v1592
  %vm1630 = vcmp.lt.f32.partialorder %v1629, 0.0004427343
  %v1631 = vsel %vm1630, %v1628, %v1625
  %v1632 = vadd.f32 %v1594, 1.0
  %v1633 = vlog2.pop %v1632
  %v1634 = vmul.f32 %v1633, 0.6931472
  %v1635 = vmul.f32 -0.5, %v1594
  %v1636 = vadd.f32 %v1635, 1.0
  %v1637 = vmul.f32 %v1636, %v1594
  %v1638 = vand.u32 2147483647, %v1594
  %vm1639 = vcmp.lt.f32.partialorder %v1638, 0.0004427343
  %v1640 = vsel %vm1639, %v1637, %v1634
  %v1641 = vadd.f32 %v1596, 1.0
  %v1642 = vlog2.pop %v1641
  %v1643 = vmul.f32 %v1642, 0.6931472
  %v1644 = vmul.f32 -0.5, %v1596
  %v1645 = vadd.f32 %v1644, 1.0
  %v1646 = vmul.f32 %v1645, %v1596
  %v1647 = vand.u32 2147483647, %v1596
  %vm1648 = vcmp.lt.f32.partialorder %v1647, 0.0004427343
  %v1649 = vsel %vm1648, %v1646, %v1643
  %v1650 = vadd.f32 %v1598, 1.0
  %v1651 = vlog2.pop %v1650
  %v1652 = vmul.f32 %v1651, 0.6931472
  %v1653 = vmul.f32 -0.5, %v1598
  %v1654 = vadd.f32 %v1653, 1.0
  %v1655 = vmul.f32 %v1654, %v1598
  %v1656 = vand.u32 2147483647, %v1598
  %vm1657 = vcmp.lt.f32.partialorder %v1656, 0.0004427343
  %v1658 = vsel %vm1657, %v1655, %v1652
  %v1659 = vadd.f32 %v1600, 1.0
  %v1660 = vlog2.pop %v1659
  %v1661 = vmul.f32 %v1660, 0.6931472
  %v1662 = vmul.f32 -0.5, %v1600
  %v1663 = vadd.f32 %v1662, 1.0
  %v1664 = vmul.f32 %v1663, %v1600
  %v1665 = vand.u32 2147483647, %v1600
  %vm1666 = vcmp.lt.f32.partialorder %v1665, 0.0004427343
  %v1667 = vsel %vm1666, %v1664, %v1661
  %v1668 = vadd.f32 %v1602, 1.0
  %v1669 = vlog2.pop %v1668
  %v1670 = vmul.f32 %v1669, 0.6931472
  %v1671 = vmul.f32 -0.5, %v1602
  %v1672 = vadd.f32 %v1671, 1.0
  %v1673 = vmul.f32 %v1672, %v1602
  %v1674 = vand.u32 2147483647, %v1602
  %vm1675 = vcmp.lt.f32.partialorder %v1674, 0.0004427343
  %v1676 = vsel %vm1675, %v1673, %v1670
  %v1677 = vadd.f32 %v1604, 1.0
  %v1678 = vlog2.pop %v1677
  %v1679 = vmul.f32 %v1678, 0.6931472
  %v1680 = vmul.f32 -0.5, %v1604
  %v1681 = vadd.f32 %v1680, 1.0
  %v1682 = vmul.f32 %v1681, %v1604
  %v1683 = vand.u32 2147483647, %v1604
  %vm1684 = vcmp.lt.f32.partialorder %v1683, 0.0004427343
  %v1685 = vsel %vm1684, %v1682, %v1679
  %v1686 = vadd.f32 %v1606, 1.0
  %v1687 = vlog2.pop %v1686
  %v1688 = vmul.f32 %v1687, 0.6931472
  %v1689 = vmul.f32 -0.5, %v1606
  %v1690 = vadd.f32 %v1689, 1.0
  %v1691 = vmul.f32 %v1690, %v1606
  %v1692 = vand.u32 2147483647, %v1606
  %vm1693 = vcmp.lt.f32.partialorder %v1692, 0.0004427343
  %v1694 = vsel %vm1693, %v1691, %v1688
  %v1695 = vadd.f32 %v1608, 1.0
  %v1696 = vlog2.pop %v1695
  %v1697 = vmul.f32 %v1696, 0.6931472
  %v1698 = vmul.f32 -0.5, %v1608
  %v1699 = vadd.f32 %v1698, 1.0
  %v1700 = vmul.f32 %v1699, %v1608
  %v1701 = vand.u32 2147483647, %v1608
  %vm1702 = vcmp.lt.f32.partialorder %v1701, 0.0004427343
  %v1703 = vsel %vm1702, %v1700, %v1697
  %v1704 = vadd.f32 %v1610, 1.0
  %v1705 = vlog2.pop %v1704
  %v1706 = vmul.f32 %v1705, 0.6931472
  %v1707 = vmul.f32 -0.5, %v1610
  %v1708 = vadd.f32 %v1707, 1.0
  %v1709 = vmul.f32 %v1708, %v1610
  %v1710 = vand.u32 2147483647, %v1610
  %vm1711 = vcmp.lt.f32.partialorder %v1710, 0.0004427343
  %v1712 = vsel %vm1711, %v1709, %v1706
  %v1713 = vadd.f32 %v1612, 1.0
  %v1714 = vlog2.pop %v1713
  %v1715 = vmul.f32 %v1714, 0.6931472
  %v1716 = vmul.f32 -0.5, %v1612
  %v1717 = vadd.f32 %v1716, 1.0
  %v1718 = vmul.f32 %v1717, %v1612
  %v1719 = vand.u32 2147483647, %v1612
  %vm1720 = vcmp.lt.f32.partialorder %v1719, 0.0004427343
  %v1721 = vsel %vm1720, %v1718, %v1715
  %v1722 = vadd.f32 %v1614, 1.0
  %v1723 = vlog2.pop %v1722
  %v1724 = vmul.f32 %v1723, 0.6931472
  %v1725 = vmul.f32 -0.5, %v1614
  %v1726 = vadd.f32 %v1725, 1.0
  %v1727 = vmul.f32 %v1726, %v1614
  %v1728 = vand.u32 2147483647, %v1614
  %vm1729 = vcmp.lt.f32.partialorder %v1728, 0.0004427343
  %v1730 = vsel %vm1729, %v1727, %v1724
  %v1731 = vadd.f32 %v1616, 1.0
  %v1732 = vlog2.pop %v1731
  %v1733 = vmul.f32 %v1732, 0.6931472
  %v1734 = vmul.f32 -0.5, %v1616
  %v1735 = vadd.f32 %v1734, 1.0
  %v1736 = vmul.f32 %v1735, %v1616
  %v1737 = vand.u32 2147483647, %v1616
  %vm1738 = vcmp.lt.f32.partialorder %v1737, 0.0004427343
  %v1739 = vsel %vm1738, %v1736, %v1733
  %v1740 = vadd.f32 %v1618, 1.0
  %v1741 = vlog2.pop %v1740
  %v1742 = vmul.f32 %v1741, 0.6931472
  %v1743 = vmul.f32 -0.5, %v1618
  %v1744 = vadd.f32 %v1743, 1.0
  %v1745 = vmul.f32 %v1744, %v1618
  %v1746 = vand.u32 2147483647, %v1618
  %vm1747 = vcmp.lt.f32.partialorder %v1746, 0.0004427343
  %v1748 = vsel %vm1747, %v1745, %v1742
  %v1749 = vadd.f32 %v1620, 1.0
  %v1750 = vlog2.pop %v1749
  %v1751 = vmul.f32 %v1750, 0.6931472
  %v1752 = vmul.f32 -0.5, %v1620
  %v1753 = vadd.f32 %v1752, 1.0
  %v1754 = vmul.f32 %v1753, %v1620
  %v1755 = vand.u32 2147483647, %v1620
  %vm1756 = vcmp.lt.f32.partialorder %v1755, 0.0004427343
  %v1757 = vsel %vm1756, %v1754, %v1751
  %v1758 = vadd.f32 %v1622, 1.0
  %v1759 = vlog2.pop %v1758
  %v1760 = vmul.f32 %v1759, 0.6931472
  %v1761 = vmul.f32 -0.5, %v1622
  %v1762 = vadd.f32 %v1761, 1.0
  %v1763 = vmul.f32 %v1762, %v1622
  %v1764 = vand.u32 2147483647, %v1622
  %vm1765 = vcmp.lt.f32.partialorder %v1764, 0.0004427343
  %v1766 = vsel %vm1765, %v1763, %v1760
  %v1767 = vadd.f32 %v1543, %v1631
  %v1768 = vadd.f32 %v1544, %v1640
  %v1769 = vadd.f32 %v1545, %v1649
  %v1770 = vadd.f32 %v1546, %v1658
  %v1771 = vadd.f32 %v1547, %v1667
  %v1772 = vadd.f32 %v1548, %v1676
  %v1773 = vadd.f32 %v1549, %v1685
  %v1774 = vadd.f32 %v1550, %v1694
  %v1775 = vadd.f32 %v1551, %v1703
  %v1776 = vadd.f32 %v1552, %v1712
  %v1777 = vadd.f32 %v1553, %v1721
  %v1778 = vadd.f32 %v1554, %v1730
  %v1779 = vadd.f32 %v1555, %v1739
  %v1780 = vadd.f32 %v1556, %v1748
  %v1781 = vadd.f32 %v1557, %v1757
  %v1782 = vadd.f32 %v1558, %v1766
  %vm1783 = vcmask 7168
  %1784 = vst.msk [vmem:[%s7] sm:$0xff] %vm1783, %v1767
  %1785 = vst.msk [vmem:[%s7 + $0x8] sm:$0xff] %vm1783, %v1768
  %1786 = vst.msk [vmem:[%s7 + $0x10] sm:$0xff] %vm1783, %v1769
  %1787 = vst.msk [vmem:[%s7 + $0x18] sm:$0xff] %vm1783, %v1770
  %1788 = vst.msk [vmem:[%s7 + $0x20] sm:$0xff] %vm1783, %v1771
  %1789 = vst.msk [vmem:[%s7 + $0x28] sm:$0xff] %vm1783, %v1772
  %1790 = vst.msk [vmem:[%s7 + $0x30] sm:$0xff] %vm1783, %v1773
  %1791 = vst.msk [vmem:[%s7 + $0x38] sm:$0xff] %vm1783, %v1774
  %1792 = vst.msk [vmem:[%s7 + $0x40] sm:$0xff] %vm1783, %v1775
  %1793 = vst.msk [vmem:[%s7 + $0x48] sm:$0xff] %vm1783, %v1776
  %1794 = vst.msk [vmem:[%s7 + $0x50] sm:$0xff] %vm1783, %v1777
  %1795 = vst.msk [vmem:[%s7 + $0x58] sm:$0xff] %vm1783, %v1778
  %1796 = vst.msk [vmem:[%s7 + $0x60] sm:$0xff] %vm1783, %v1779
  %1797 = vst.msk [vmem:[%s7 + $0x68] sm:$0xff] %vm1783, %v1780
  %1798 = vst.msk [vmem:[%s7 + $0x70] sm:$0xff] %vm1783, %v1781
  %1799 = vst.msk [vmem:[%s7 + $0x78] sm:$0xff] %vm1783, %v1782
  %vm1800 = vcmp.ge.f32.partialorder %v1285, %v821
  %vm1801 = vcmp.ge.f32.partialorder %v1300, %v836
  %vm1802 = vcmp.ge.f32.partialorder %v1315, %v851
  %vm1803 = vcmp.ge.f32.partialorder %v1330, %v866
  %vm1804 = vcmp.ge.f32.partialorder %v1345, %v881
  %vm1805 = vcmp.ge.f32.partialorder %v1360, %v896
  %vm1806 = vcmp.ge.f32.partialorder %v1375, %v911
  %vm1807 = vcmp.ge.f32.partialorder %v1390, %v926
  %vm1808 = vcmp.ge.f32.partialorder %v1405, %v941
  %vm1809 = vcmp.ge.f32.partialorder %v1420, %v956
  %vm1810 = vcmp.ge.f32.partialorder %v1435, %v971
  %vm1811 = vcmp.ge.f32.partialorder %v1450, %v986
  %vm1812 = vcmp.ge.f32.partialorder %v1465, %v1001
  %vm1813 = vcmp.ge.f32.partialorder %v1480, %v1016
  %vm1814 = vcmp.ge.f32.partialorder %v1495, %v1031
  %vm1815 = vcmp.ge.f32.partialorder %v1510, %v1046
  %v1816 = vsel %vm1800, 1, 0
  %v1817 = vsel %vm1801, 1, 0
  %v1818 = vsel %vm1802, 1, 0
  %v1819 = vsel %vm1803, 1, 0
  %v1820 = vsel %vm1804, 1, 0
  %v1821 = vsel %vm1805, 1, 0
  %v1822 = vsel %vm1806, 1, 0
  %v1823 = vsel %vm1807, 1, 0
  %v1824 = vsel %vm1808, 1, 0
  %v1825 = vsel %vm1809, 1, 0
  %v1826 = vsel %vm1810, 1, 0
  %v1827 = vsel %vm1811, 1, 0
  %v1828 = vsel %vm1812, 1, 0
  %v1829 = vsel %vm1813, 1, 0
  %v1830 = vsel %vm1814, 1, 0
  %v1831 = vsel %vm1815, 1, 0
  %v1832 = vcvt.s32.f32 %v1816
  %v1833 = vcvt.s32.f32 %v1817
  %v1834 = vcvt.s32.f32 %v1818
  %v1835 = vcvt.s32.f32 %v1819
  %v1836 = vcvt.s32.f32 %v1820
  %v1837 = vcvt.s32.f32 %v1821
  %v1838 = vcvt.s32.f32 %v1822
  %v1839 = vcvt.s32.f32 %v1823
  %v1840 = vcvt.s32.f32 %v1824
  %v1841 = vcvt.s32.f32 %v1825
  %v1842 = vcvt.s32.f32 %v1826
  %v1843 = vcvt.s32.f32 %v1827
  %v1844 = vcvt.s32.f32 %v1828
  %v1845 = vcvt.s32.f32 %v1829
  %v1846 = vcvt.s32.f32 %v1830
  %v1847 = vcvt.s32.f32 %v1831
  %1848 = vst.msk [vmem:[%s8] sm:$0xff] %vm1783, %v1832
  %1849 = vst.msk [vmem:[%s8 + $0x8] sm:$0xff] %vm1783, %v1833
  %1850 = vst.msk [vmem:[%s8 + $0x10] sm:$0xff] %vm1783, %v1834
  %1851 = vst.msk [vmem:[%s8 + $0x18] sm:$0xff] %vm1783, %v1835
  %1852 = vst.msk [vmem:[%s8 + $0x20] sm:$0xff] %vm1783, %v1836
  %1853 = vst.msk [vmem:[%s8 + $0x28] sm:$0xff] %vm1783, %v1837
  %1854 = vst.msk [vmem:[%s8 + $0x30] sm:$0xff] %vm1783, %v1838
  %1855 = vst.msk [vmem:[%s8 + $0x38] sm:$0xff] %vm1783, %v1839
  %1856 = vst.msk [vmem:[%s8 + $0x40] sm:$0xff] %vm1783, %v1840
  %1857 = vst.msk [vmem:[%s8 + $0x48] sm:$0xff] %vm1783, %v1841
  %1858 = vst.msk [vmem:[%s8 + $0x50] sm:$0xff] %vm1783, %v1842
  %1859 = vst.msk [vmem:[%s8 + $0x58] sm:$0xff] %vm1783, %v1843
  %1860 = vst.msk [vmem:[%s8 + $0x60] sm:$0xff] %vm1783, %v1844
  %1861 = vst.msk [vmem:[%s8 + $0x68] sm:$0xff] %vm1783, %v1845
  %1862 = vst.msk [vmem:[%s8 + $0x70] sm:$0xff] %vm1783, %v1846
  %1863 = vst.msk [vmem:[%s8 + $0x78] sm:$0xff] %vm1783, %v1847
  // Predicated region
  $region30: #{tpu_custom_call.1} parent=0 // pred_check
    _
  $region31: #{tpu_custom_call.1} parent=0 // pred_check_branch
    %1865 = sbr.rel (0) target = $region33
  $region32: #{tpu_custom_call.1} parent=0 // pred_region
    _
  $region33: #{tpu_custom_call.1} parent=0 // pred_fallthru
    _
  // Predicated region
  $region34: #{tpu_custom_call.1} parent=0 // pred_check
    _
  $region35: #{tpu_custom_call.1} parent=0 // pred_check_branch
    %1867 = sbr.rel (0) target = $region37
  $region36: #{tpu_custom_call.1} parent=0 // pred_region
    _
  $region37: #{tpu_custom_call.1} parent=0 // pred_fallthru
    _
  // Predicated region
  $region38: #{tpu_custom_call.1} parent=0 // pred_check
    _
  $region39: #{tpu_custom_call.1} parent=0 // pred_check_branch
    %1869 = sbr.rel (0) target = $region41
  $region40: #{tpu_custom_call.1} parent=0 // pred_region
    _
  $region41: #{tpu_custom_call.1} parent=0 // pred_fallthru
    _
  // Predicated region
  $region42: #{tpu_custom_call.1} parent=0 // pred_check
    _
  $region43: #{tpu_custom_call.1} parent=0 // pred_check_branch
    %1871 = sbr.rel (0) target = $region45
  $region44: #{tpu_custom_call.1} parent=0 // pred_region
    _
  $region45: #{tpu_custom_call.1} parent=0 // pred_fallthru
    _

// kernel: tpu_custom_call.1
$region0: #{tpu_custom_call.1}
  #allocation0 [shape = 'u32[]', space=smem, size = 0x4, offset = 0x4, fixed_abs, tag = 'smem constant byte address 0x4 - core index']
  #allocation1 [shape = 'u32[72,128]{1,0:T(1,128)}', space=vmem, size = 0x9000, scoped, tag = 'internal scratch']
  %s0 = inlined_call_operand.vmem [shape: f32[128,128], index: 0, kind: input, shape index: {}]
  %s1 = inlined_call_operand.vmem [shape: f32[128,128], index: 1, kind: input, shape index: {}]
  %s2 = inlined_call_operand.vmem [shape: f32[128,1], index: 2, kind: input, shape index: {}]
  %s3 = inlined_call_operand.vmem [shape: f32[1,128], index: 3, kind: input, shape index: {}]
  %s4 = inlined_call_operand.vmem [shape: s32[128,1], index: 4, kind: input, shape index: {}]
  %s5 = inlined_call_operand.vmem [shape: s32[1,128], index: 5, kind: input, shape index: {}]
  %s6 = inlined_call_operand.vmem [shape: f32[1,128], index: 6, kind: input, shape index: {}]
  %s7 = inlined_call_operand.vmem [shape: f32[128,1], index: 7, kind: output, shape index: {0}]
  %s8 = inlined_call_operand.vmem [shape: f32[128,1], index: 8, kind: output, shape index: {1}]
  %9 = xla_tuple %s7, %s8
  %s10 = sld [smem:[#allocation0]]
  $region46: #{tpu_custom_call.1} parent=0
    _
  %s12 = ssub.s32 1, %s10
  %s13 = scalar_select 0, %s12, %s10
  // Predicated region
  $region2: #{tpu_custom_call.1} parent=0 // pred_check
    _
  $region3: #{tpu_custom_call.1} parent=0 // pred_check_branch
    %15 = sbr.rel (0) target = $region5
  $region4: #{tpu_custom_call.1} parent=0 // pred_region
    _
  $region5: #{tpu_custom_call.1} parent=0 // pred_fallthru
    _
  // Predicated region
  $region6: #{tpu_custom_call.1} parent=0 // pred_check
    _
  $region7: #{tpu_custom_call.1} parent=0 // pred_check_branch
    %17 = sbr.rel (0) target = $region9
  $region8: #{tpu_custom_call.1} parent=0 // pred_region
    _
  $region9: #{tpu_custom_call.1} parent=0 // pred_fallthru
    _
  // Predicated region
  $region10: #{tpu_custom_call.1} parent=0 // pred_check
    _
  $region11: #{tpu_custom_call.1} parent=0 // pred_check_branch
    %19 = sbr.rel (0) target = $region13
  $region12: #{tpu_custom_call.1} parent=0 // pred_region
    _
  $region13: #{tpu_custom_call.1} parent=0 // pred_fallthru
    _
  // Predicated region
  $region14: #{tpu_custom_call.1} parent=0 // pred_check
    _
  $region15: #{tpu_custom_call.1} parent=0 // pred_check_branch
    %21 = sbr.rel (0) target = $region17
  $region16: #{tpu_custom_call.1} parent=0 // pred_region
    _
  $region17: #{tpu_custom_call.1} parent=0 // pred_fallthru
    _
  // Predicated region
  $region18: #{tpu_custom_call.1} parent=0 // pred_check
    _
  $region19: #{tpu_custom_call.1} parent=0 // pred_check_branch
    %23 = sbr.rel (0) target = $region21
  $region20: #{tpu_custom_call.1} parent=0 // pred_region
    _
  $region21: #{tpu_custom_call.1} parent=0 // pred_fallthru
    _
  // Predicated region
  $region22: #{tpu_custom_call.1} parent=0 // pred_check
    _
  $region23: #{tpu_custom_call.1} parent=0 // pred_check_branch
    %25 = sbr.rel (0) target = $region25
  $region24: #{tpu_custom_call.1} parent=0 // pred_region
    _
  $region25: #{tpu_custom_call.1} parent=0 // pred_fallthru
    _
  // Predicated region
  $region26: #{tpu_custom_call.1} parent=0 // pred_check
    _
  $region27: #{tpu_custom_call.1} parent=0 // pred_check_branch
    %27 = sbr.rel (0) target = $region29
  $region28: #{tpu_custom_call.1} parent=0 // pred_region
    _
  $region29: #{tpu_custom_call.1} parent=0 // pred_fallthru
    _
  %v28 = vld [vmem:[%s0] sm:$0xff]
  %v29 = vld [vmem:[%s0 + $0x8] sm:$0xff]
  %v30 = vld [vmem:[%s0 + $0x10] sm:$0xff]
  %v31 = vld [vmem:[%s0 + $0x18] sm:$0xff]
  %v32 = vld [vmem:[%s0 + $0x20] sm:$0xff]
  %v33 = vld [vmem:[%s0 + $0x28] sm:$0xff]
  %v34 = vld [vmem:[%s0 + $0x30] sm:$0xff]
  %v35 = vld [vmem:[%s0 + $0x38] sm:$0xff]
  %v36 = vld [vmem:[%s0 + $0x40] sm:$0xff]
  %v37 = vld [vmem:[%s0 + $0x48] sm:$0xff]
  %v38 = vld [vmem:[%s0 + $0x50] sm:$0xff]
  %v39 = vld [vmem:[%s0 + $0x58] sm:$0xff]
  %v40 = vld [vmem:[%s0 + $0x60] sm:$0xff]
  %v41 = vld [vmem:[%s0 + $0x68] sm:$0xff]
  %v42 = vld [vmem:[%s0 + $0x70] sm:$0xff]
  %v43 = vld [vmem:[%s0 + $0x78] sm:$0xff]
  %v44 = vld [vmem:[%s1] sm:$0xff]
  %v45 = vld [vmem:[%s1 + $0x8] sm:$0xff]
  %v46 = vld [vmem:[%s1 + $0x10] sm:$0xff]
  %v47 = vld [vmem:[%s1 + $0x18] sm:$0xff]
  %v48 = vld [vmem:[%s1 + $0x20] sm:$0xff]
  %v49 = vld [vmem:[%s1 + $0x28] sm:$0xff]
  %v50 = vld [vmem:[%s1 + $0x30] sm:$0xff]
  %v51 = vld [vmem:[%s1 + $0x38] sm:$0xff]
  %v52 = vld [vmem:[%s1 + $0x40] sm:$0xff]
  %v53 = vld [vmem:[%s1 + $0x48] sm:$0xff]
  %v54 = vld [vmem:[%s1 + $0x50] sm:$0xff]
  %v55 = vld [vmem:[%s1 + $0x58] sm:$0xff]
  %v56 = vld [vmem:[%s1 + $0x60] sm:$0xff]
  %v57 = vld [vmem:[%s1 + $0x68] sm:$0xff]
  %v58 = vld [vmem:[%s1 + $0x70] sm:$0xff]
  %v59 = vld [vmem:[%s1 + $0x78] sm:$0xff]
  %60 = vmatpush.msra.mxu0 %v59
  %61 = vmatpush.msra.mxu0 %v58
  %62 = vmatpush.msra.mxu0 %v57
  %63 = vmatpush.msra.mxu0 %v56
  %64 = vmatpush.msra.mxu0 %v55
  %65 = vmatpush.msra.mxu0 %v54
  %66 = vmatpush.msra.mxu0 %v53
  %67 = vmatpush.msra.mxu0 %v52
  %68 = vmatpush.msra.mxu0 %v51
  %69 = vmatpush.msra.mxu0 %v50
  %70 = vmatpush.msra.mxu0 %v49
  %71 = vmatpush.msra.mxu0 %v48
  %72 = vmatpush.msra.mxu0 %v47
  %73 = vmatpush.msra.mxu0 %v46
  %74 = vmatpush.msra.mxu0 %v45
  %75 = vmatpush.msra.mxu0 %v44
  %76 = vmatmul.f32.gmra.mxu0 %v28
  %v77 = vpop.f32.mrf.mxu0
  %v78 = vadd.f32 0.0, %v77
  %79 = vmatmul.f32.gmra.mxu0 %v29
  %v80 = vpop.f32.mrf.mxu0
  %v81 = vadd.f32 0.0, %v80
  %82 = vmatmul.f32.gmra.mxu0 %v30
  %v83 = vpop.f32.mrf.mxu0
  %v84 = vadd.f32 0.0, %v83
  %85 = vmatmul.f32.gmra.mxu0 %v31
  %v86 = vpop.f32.mrf.mxu0
  %v87 = vadd.f32 0.0, %v86
  %88 = vmatmul.f32.gmra.mxu0 %v32
  %v89 = vpop.f32.mrf.mxu0
  %v90 = vadd.f32 0.0, %v89
  %91 = vmatmul.f32.gmra.mxu0 %v33
  %v92 = vpop.f32.mrf.mxu0
  %v93 = vadd.f32 0.0, %v92
  %94 = vmatmul.f32.gmra.mxu0 %v34
  %v95 = vpop.f32.mrf.mxu0
  %v96 = vadd.f32 0.0, %v95
  %97 = vmatmul.f32.gmra.mxu0 %v35
  %v98 = vpop.f32.mrf.mxu0
  %v99 = vadd.f32 0.0, %v98
  %100 = vmatmul.f32.gmra.mxu0 %v36
  %v101 = vpop.f32.mrf.mxu0
  %v102 = vadd.f32 0.0, %v101
  %103 = vmatmul.f32.gmra.mxu0 %v37
  %v104 = vpop.f32.mrf.mxu0
  %v105 = vadd.f32 0.0, %v104
  %106 = vmatmul.f32.gmra.mxu0 %v38
  %v107 = vpop.f32.mrf.mxu0
  %v108 = vadd.f32 0.0, %v107
  %109 = vmatmul.f32.gmra.mxu0 %v39
  %v110 = vpop.f32.mrf.mxu0
  %v111 = vadd.f32 0.0, %v110
  %112 = vmatmul.f32.gmra.mxu0 %v40
  %v113 = vpop.f32.mrf.mxu0
  %v114 = vadd.f32 0.0, %v113
  %115 = vmatmul.f32.gmra.mxu0 %v41
  %v116 = vpop.f32.mrf.mxu0
  %v117 = vadd.f32 0.0, %v116
  %118 = vmatmul.f32.gmra.mxu0 %v42
  %v119 = vpop.f32.mrf.mxu0
  %v120 = vadd.f32 0.0, %v119
  %121 = vmatmul.f32.gmra.mxu0 %v43
  %v122 = vpop.f32.mrf.mxu0
  %v123 = vadd.f32 0.0, %v122
  %124 = vdwg.mxu0
  %v125 = vld [vmem:[%s2] sm:$0xff]
  %v126 = vld [vmem:[%s2 + $0x8] sm:$0xff]
  %v127 = vld [vmem:[%s2 + $0x10] sm:$0xff]
  %v128 = vld [vmem:[%s2 + $0x18] sm:$0xff]
  %v129 = vld [vmem:[%s2 + $0x20] sm:$0xff]
  %v130 = vld [vmem:[%s2 + $0x28] sm:$0xff]
  %v131 = vld [vmem:[%s2 + $0x30] sm:$0xff]
  %v132 = vld [vmem:[%s2 + $0x38] sm:$0xff]
  %v133 = vld [vmem:[%s2 + $0x40] sm:$0xff]
  %v134 = vld [vmem:[%s2 + $0x48] sm:$0xff]
  %v135 = vld [vmem:[%s2 + $0x50] sm:$0xff]
  %v136 = vld [vmem:[%s2 + $0x58] sm:$0xff]
  %v137 = vld [vmem:[%s2 + $0x60] sm:$0xff]
  %v138 = vld [vmem:[%s2 + $0x68] sm:$0xff]
  %v139 = vld [vmem:[%s2 + $0x70] sm:$0xff]
  %v140 = vld [vmem:[%s2 + $0x78] sm:$0xff]
  %v141 = vld [vmem:[%s3] sm:$0x1]
  %143 = vset.pattern.permute.xlu0 0
  %144 = vperm.xlu0 %143, %v125
  %v145 = vpop.permute.xlu0 %144
  %148 = vset.pattern.permute.xlu0 0
  %149 = vperm.xlu0 %148, %v126
  %v150 = vpop.permute.xlu0 %149
  %153 = vset.pattern.permute.xlu0 0
  %154 = vperm.xlu0 %153, %v127
  %v155 = vpop.permute.xlu0 %154
  %158 = vset.pattern.permute.xlu0 0
  %159 = vperm.xlu0 %158, %v128
  %v160 = vpop.permute.xlu0 %159
  %163 = vset.pattern.permute.xlu0 0
  %164 = vperm.xlu0 %163, %v129
  %v165 = vpop.permute.xlu0 %164
  %168 = vset.pattern.permute.xlu0 0
  %169 = vperm.xlu0 %168, %v130
  %v170 = vpop.permute.xlu0 %169
  %173 = vset.pattern.permute.xlu0 0
  %174 = vperm.xlu0 %173, %v131
  %v175 = vpop.permute.xlu0 %174
  %178 = vset.pattern.permute.xlu0 0
  %179 = vperm.xlu0 %178, %v132
  %v180 = vpop.permute.xlu0 %179
  %183 = vset.pattern.permute.xlu0 0
  %184 = vperm.xlu0 %183, %v133
  %v185 = vpop.permute.xlu0 %184
  %188 = vset.pattern.permute.xlu0 0
  %189 = vperm.xlu0 %188, %v134
  %v190 = vpop.permute.xlu0 %189
  %193 = vset.pattern.permute.xlu0 0
  %194 = vperm.xlu0 %193, %v135
  %v195 = vpop.permute.xlu0 %194
  %198 = vset.pattern.permute.xlu0 0
  %199 = vperm.xlu0 %198, %v136
  %v200 = vpop.permute.xlu0 %199
  %203 = vset.pattern.permute.xlu0 0
  %204 = vperm.xlu0 %203, %v137
  %v205 = vpop.permute.xlu0 %204
  %208 = vset.pattern.permute.xlu0 0
  %209 = vperm.xlu0 %208, %v138
  %v210 = vpop.permute.xlu0 %209
  %213 = vset.pattern.permute.xlu0 0
  %214 = vperm.xlu0 %213, %v139
  %v215 = vpop.permute.xlu0 %214
  %218 = vset.pattern.permute.xlu0 0
  %219 = vperm.xlu0 %218, %v140
  %v220 = vpop.permute.xlu0 %219
  %v223 = vperm.slane %v141, 0
  %v225 = vadd.f32 %v145, %v223
  %v226 = vadd.f32 %v150, %v223
  %v227 = vadd.f32 %v155, %v223
  %v228 = vadd.f32 %v160, %v223
  %v229 = vadd.f32 %v165, %v223
  %v230 = vadd.f32 %v170, %v223
  %v231 = vadd.f32 %v175, %v223
  %v232 = vadd.f32 %v180, %v223
  %v233 = vadd.f32 %v185, %v223
  %v234 = vadd.f32 %v190, %v223
  %v235 = vadd.f32 %v195, %v223
  %v236 = vadd.f32 %v200, %v223
  %v237 = vadd.f32 %v205, %v223
  %v238 = vadd.f32 %v210, %v223
  %v239 = vadd.f32 %v215, %v223
  %v240 = vadd.f32 %v220, %v223
  %v241 = vmul.f32 %v78, 2.0
  %v242 = vmul.f32 %v81, 2.0
  %v243 = vmul.f32 %v84, 2.0
  %v244 = vmul.f32 %v87, 2.0
  %v245 = vmul.f32 %v90, 2.0
  %v246 = vmul.f32 %v93, 2.0
  %v247 = vmul.f32 %v96, 2.0
  %v248 = vmul.f32 %v99, 2.0
  %v249 = vmul.f32 %v102, 2.0
  %v250 = vmul.f32 %v105, 2.0
  %v251 = vmul.f32 %v108, 2.0
  %v252 = vmul.f32 %v111, 2.0
  %v253 = vmul.f32 %v114, 2.0
  %v254 = vmul.f32 %v117, 2.0
  %v255 = vmul.f32 %v120, 2.0
  %v256 = vmul.f32 %v123, 2.0
  %v257 = vsub.f32 %v225, %v241
  %v258 = vsub.f32 %v226, %v242
  %v259 = vsub.f32 %v227, %v243
  %v260 = vsub.f32 %v228, %v244
  %v261 = vsub.f32 %v229, %v245
  %v262 = vsub.f32 %v230, %v246
  %v263 = vsub.f32 %v231, %v247
  %v264 = vsub.f32 %v232, %v248
  %v265 = vsub.f32 %v233, %v249
  %v266 = vsub.f32 %v234, %v250
  %v267 = vsub.f32 %v235, %v251
  %v268 = vsub.f32 %v236, %v252
  %v269 = vsub.f32 %v237, %v253
  %v270 = vsub.f32 %v238, %v254
  %v271 = vsub.f32 %v239, %v255
  %v272 = vsub.f32 %v240, %v256
  %v273 = vmax.f32 %v257, 1e-12
  %v274 = vmax.f32 %v258, 1e-12
  %v275 = vmax.f32 %v259, 1e-12
  %v276 = vmax.f32 %v260, 1e-12
  %v277 = vmax.f32 %v261, 1e-12
  %v278 = vmax.f32 %v262, 1e-12
  %v279 = vmax.f32 %v263, 1e-12
  %v280 = vmax.f32 %v264, 1e-12
  %v281 = vmax.f32 %v265, 1e-12
  %v282 = vmax.f32 %v266, 1e-12
  %v283 = vmax.f32 %v267, 1e-12
  %v284 = vmax.f32 %v268, 1e-12
  %v285 = vmax.f32 %v269, 1e-12
  %v286 = vmax.f32 %v270, 1e-12
  %v287 = vmax.f32 %v271, 1e-12
  %v288 = vmax.f32 %v272, 1e-12
  %v289 = vrsqrt.pop %v273
  %v290 = vmul.f32 %v289, %v273
  %v291 = vmul.f32 %v290, %v289
  %v292 = vmul.f32 0.5, %v291
  %v293 = vsub.f32 1.5, %v292
  %v294 = vmul.f32 %v289, %v293
  %v295 = vmul.f32 %v273, %v294
  %vm296 = vcmp.eq.f32.partialorder %v273, inf
  %v297 = vsel %vm296, %v273, %v295
  %vm298 = vcmp.eq.f32.partialorder %v273, 0.0
  %v299 = vand.u32 %v273, 2147483648
  %v300 = vsel %vm298, %v299, %v297
  %v301 = vrsqrt.pop %v274
  %v302 = vmul.f32 %v301, %v274
  %v303 = vmul.f32 %v302, %v301
  %v304 = vmul.f32 0.5, %v303
  %v305 = vsub.f32 1.5, %v304
  %v306 = vmul.f32 %v301, %v305
  %v307 = vmul.f32 %v274, %v306
  %vm308 = vcmp.eq.f32.partialorder %v274, inf
  %v309 = vsel %vm308, %v274, %v307
  %vm310 = vcmp.eq.f32.partialorder %v274, 0.0
  %v311 = vand.u32 %v274, 2147483648
  %v312 = vsel %vm310, %v311, %v309
  %v313 = vrsqrt.pop %v275
  %v314 = vmul.f32 %v313, %v275
  %v315 = vmul.f32 %v314, %v313
  %v316 = vmul.f32 0.5, %v315
  %v317 = vsub.f32 1.5, %v316
  %v318 = vmul.f32 %v313, %v317
  %v319 = vmul.f32 %v275, %v318
  %vm320 = vcmp.eq.f32.partialorder %v275, inf
  %v321 = vsel %vm320, %v275, %v319
  %vm322 = vcmp.eq.f32.partialorder %v275, 0.0
  %v323 = vand.u32 %v275, 2147483648
  %v324 = vsel %vm322, %v323, %v321
  %v325 = vrsqrt.pop %v276
  %v326 = vmul.f32 %v325, %v276
  %v327 = vmul.f32 %v326, %v325
  %v328 = vmul.f32 0.5, %v327
  %v329 = vsub.f32 1.5, %v328
  %v330 = vmul.f32 %v325, %v329
  %v331 = vmul.f32 %v276, %v330
  %vm332 = vcmp.eq.f32.partialorder %v276, inf
  %v333 = vsel %vm332, %v276, %v331
  %vm334 = vcmp.eq.f32.partialorder %v276, 0.0
  %v335 = vand.u32 %v276, 2147483648
  %v336 = vsel %vm334, %v335, %v333
  %v337 = vrsqrt.pop %v277
  %v338 = vmul.f32 %v337, %v277
  %v339 = vmul.f32 %v338, %v337
  %v340 = vmul.f32 0.5, %v339
  %v341 = vsub.f32 1.5, %v340
  %v342 = vmul.f32 %v337, %v341
  %v343 = vmul.f32 %v277, %v342
  %vm344 = vcmp.eq.f32.partialorder %v277, inf
  %v345 = vsel %vm344, %v277, %v343
  %vm346 = vcmp.eq.f32.partialorder %v277, 0.0
  %v347 = vand.u32 %v277, 2147483648
  %v348 = vsel %vm346, %v347, %v345
  %v349 = vrsqrt.pop %v278
  %v350 = vmul.f32 %v349, %v278
  %v351 = vmul.f32 %v350, %v349
  %v352 = vmul.f32 0.5, %v351
  %v353 = vsub.f32 1.5, %v352
  %v354 = vmul.f32 %v349, %v353
  %v355 = vmul.f32 %v278, %v354
  %vm356 = vcmp.eq.f32.partialorder %v278, inf
  %v357 = vsel %vm356, %v278, %v355
  %vm358 = vcmp.eq.f32.partialorder %v278, 0.0
  %v359 = vand.u32 %v278, 2147483648
  %v360 = vsel %vm358, %v359, %v357
  %v361 = vrsqrt.pop %v279
  %v362 = vmul.f32 %v361, %v279
  %v363 = vmul.f32 %v362, %v361
  %v364 = vmul.f32 0.5, %v363
  %v365 = vsub.f32 1.5, %v364
  %v366 = vmul.f32 %v361, %v365
  %v367 = vmul.f32 %v279, %v366
  %vm368 = vcmp.eq.f32.partialorder %v279, inf
  %v369 = vsel %vm368, %v279, %v367
  %vm370 = vcmp.eq.f32.partialorder %v279, 0.0
  %v371 = vand.u32 %v279, 2147483648
  %v372 = vsel %vm370, %v371, %v369
  %v373 = vrsqrt.pop %v280
  %v374 = vmul.f32 %v373, %v280
  %v375 = vmul.f32 %v374, %v373
  %v376 = vmul.f32 0.5, %v375
  %v377 = vsub.f32 1.5, %v376
  %v378 = vmul.f32 %v373, %v377
  %v379 = vmul.f32 %v280, %v378
  %vm380 = vcmp.eq.f32.partialorder %v280, inf
  %v381 = vsel %vm380, %v280, %v379
  %vm382 = vcmp.eq.f32.partialorder %v280, 0.0
  %v383 = vand.u32 %v280, 2147483648
  %v384 = vsel %vm382, %v383, %v381
  %v385 = vrsqrt.pop %v281
  %v386 = vmul.f32 %v385, %v281
  %v387 = vmul.f32 %v386, %v385
  %v388 = vmul.f32 0.5, %v387
  %v389 = vsub.f32 1.5, %v388
  %v390 = vmul.f32 %v385, %v389
  %v391 = vmul.f32 %v281, %v390
  %vm392 = vcmp.eq.f32.partialorder %v281, inf
  %v393 = vsel %vm392, %v281, %v391
  %vm394 = vcmp.eq.f32.partialorder %v281, 0.0
  %v395 = vand.u32 %v281, 2147483648
  %v396 = vsel %vm394, %v395, %v393
  %v397 = vrsqrt.pop %v282
  %v398 = vmul.f32 %v397, %v282
  %v399 = vmul.f32 %v398, %v397
  %v400 = vmul.f32 0.5, %v399
  %v401 = vsub.f32 1.5, %v400
  %v402 = vmul.f32 %v397, %v401
  %v403 = vmul.f32 %v282, %v402
  %vm404 = vcmp.eq.f32.partialorder %v282, inf
  %v405 = vsel %vm404, %v282, %v403
  %vm406 = vcmp.eq.f32.partialorder %v282, 0.0
  %v407 = vand.u32 %v282, 2147483648
  %v408 = vsel %vm406, %v407, %v405
  %v409 = vrsqrt.pop %v283
  %v410 = vmul.f32 %v409, %v283
  %v411 = vmul.f32 %v410, %v409
  %v412 = vmul.f32 0.5, %v411
  %v413 = vsub.f32 1.5, %v412
  %v414 = vmul.f32 %v409, %v413
  %v415 = vmul.f32 %v283, %v414
  %vm416 = vcmp.eq.f32.partialorder %v283, inf
  %v417 = vsel %vm416, %v283, %v415
  %vm418 = vcmp.eq.f32.partialorder %v283, 0.0
  %v419 = vand.u32 %v283, 2147483648
  %v420 = vsel %vm418, %v419, %v417
  %v421 = vrsqrt.pop %v284
  %v422 = vmul.f32 %v421, %v284
  %v423 = vmul.f32 %v422, %v421
  %v424 = vmul.f32 0.5, %v423
  %v425 = vsub.f32 1.5, %v424
  %v426 = vmul.f32 %v421, %v425
  %v427 = vmul.f32 %v284, %v426
  %vm428 = vcmp.eq.f32.partialorder %v284, inf
  %v429 = vsel %vm428, %v284, %v427
  %vm430 = vcmp.eq.f32.partialorder %v284, 0.0
  %v431 = vand.u32 %v284, 2147483648
  %v432 = vsel %vm430, %v431, %v429
  %v433 = vrsqrt.pop %v285
  %v434 = vmul.f32 %v433, %v285
  %v435 = vmul.f32 %v434, %v433
  %v436 = vmul.f32 0.5, %v435
  %v437 = vsub.f32 1.5, %v436
  %v438 = vmul.f32 %v433, %v437
  %v439 = vmul.f32 %v285, %v438
  %vm440 = vcmp.eq.f32.partialorder %v285, inf
  %v441 = vsel %vm440, %v285, %v439
  %vm442 = vcmp.eq.f32.partialorder %v285, 0.0
  %v443 = vand.u32 %v285, 2147483648
  %v444 = vsel %vm442, %v443, %v441
  %v445 = vrsqrt.pop %v286
  %v446 = vmul.f32 %v445, %v286
  %v447 = vmul.f32 %v446, %v445
  %v448 = vmul.f32 0.5, %v447
  %v449 = vsub.f32 1.5, %v448
  %v450 = vmul.f32 %v445, %v449
  %v451 = vmul.f32 %v286, %v450
  %vm452 = vcmp.eq.f32.partialorder %v286, inf
  %v453 = vsel %vm452, %v286, %v451
  %vm454 = vcmp.eq.f32.partialorder %v286, 0.0
  %v455 = vand.u32 %v286, 2147483648
  %v456 = vsel %vm454, %v455, %v453
  %v457 = vrsqrt.pop %v287
  %v458 = vmul.f32 %v457, %v287
  %v459 = vmul.f32 %v458, %v457
  %v460 = vmul.f32 0.5, %v459
  %v461 = vsub.f32 1.5, %v460
  %v462 = vmul.f32 %v457, %v461
  %v463 = vmul.f32 %v287, %v462
  %vm464 = vcmp.eq.f32.partialorder %v287, inf
  %v465 = vsel %vm464, %v287, %v463
  %vm466 = vcmp.eq.f32.partialorder %v287, 0.0
  %v467 = vand.u32 %v287, 2147483648
  %v468 = vsel %vm466, %v467, %v465
  %v469 = vrsqrt.pop %v288
  %v470 = vmul.f32 %v469, %v288
  %v471 = vmul.f32 %v470, %v469
  %v472 = vmul.f32 0.5, %v471
  %v473 = vsub.f32 1.5, %v472
  %v474 = vmul.f32 %v469, %v473
  %v475 = vmul.f32 %v288, %v474
  %vm476 = vcmp.eq.f32.partialorder %v288, inf
  %v477 = vsel %vm476, %v288, %v475
  %vm478 = vcmp.eq.f32.partialorder %v288, 0.0
  %v479 = vand.u32 %v288, 2147483648
  %v480 = vsel %vm478, %v479, %v477
  %v481 = vld [vmem:[%s4] sm:$0xff]
  %v482 = vld [vmem:[%s4 + $0x8] sm:$0xff]
  %v483 = vld [vmem:[%s4 + $0x10] sm:$0xff]
  %v484 = vld [vmem:[%s4 + $0x18] sm:$0xff]
  %v485 = vld [vmem:[%s4 + $0x20] sm:$0xff]
  %v486 = vld [vmem:[%s4 + $0x28] sm:$0xff]
  %v487 = vld [vmem:[%s4 + $0x30] sm:$0xff]
  %v488 = vld [vmem:[%s4 + $0x38] sm:$0xff]
  %v489 = vld [vmem:[%s4 + $0x40] sm:$0xff]
  %v490 = vld [vmem:[%s4 + $0x48] sm:$0xff]
  %v491 = vld [vmem:[%s4 + $0x50] sm:$0xff]
  %v492 = vld [vmem:[%s4 + $0x58] sm:$0xff]
  %v493 = vld [vmem:[%s4 + $0x60] sm:$0xff]
  %v494 = vld [vmem:[%s4 + $0x68] sm:$0xff]
  %v495 = vld [vmem:[%s4 + $0x70] sm:$0xff]
  %v496 = vld [vmem:[%s4 + $0x78] sm:$0xff]
  %v497 = vld [vmem:[%s5] sm:$0x1]
  %498 = vset.pattern.permute.xlu0 0
  %499 = vperm.xlu0 %498, %v481
  %v500 = vpop.permute.xlu0 %499
  %501 = vset.pattern.permute.xlu0 0
  %502 = vperm.xlu0 %501, %v482
  %v503 = vpop.permute.xlu0 %502
  %504 = vset.pattern.permute.xlu0 0
  %505 = vperm.xlu0 %504, %v483
  %v506 = vpop.permute.xlu0 %505
  %507 = vset.pattern.permute.xlu0 0
  %508 = vperm.xlu0 %507, %v484
  %v509 = vpop.permute.xlu0 %508
  %510 = vset.pattern.permute.xlu0 0
  %511 = vperm.xlu0 %510, %v485
  %v512 = vpop.permute.xlu0 %511
  %513 = vset.pattern.permute.xlu0 0
  %514 = vperm.xlu0 %513, %v486
  %v515 = vpop.permute.xlu0 %514
  %516 = vset.pattern.permute.xlu0 0
  %517 = vperm.xlu0 %516, %v487
  %v518 = vpop.permute.xlu0 %517
  %519 = vset.pattern.permute.xlu0 0
  %520 = vperm.xlu0 %519, %v488
  %v521 = vpop.permute.xlu0 %520
  %522 = vset.pattern.permute.xlu0 0
  %523 = vperm.xlu0 %522, %v489
  %v524 = vpop.permute.xlu0 %523
  %525 = vset.pattern.permute.xlu0 0
  %526 = vperm.xlu0 %525, %v490
  %v527 = vpop.permute.xlu0 %526
  %528 = vset.pattern.permute.xlu0 0
  %529 = vperm.xlu0 %528, %v491
  %v530 = vpop.permute.xlu0 %529
  %531 = vset.pattern.permute.xlu0 0
  %532 = vperm.xlu0 %531, %v492
  %v533 = vpop.permute.xlu0 %532
  %534 = vset.pattern.permute.xlu0 0
  %535 = vperm.xlu0 %534, %v493
  %v536 = vpop.permute.xlu0 %535
  %537 = vset.pattern.permute.xlu0 0
  %538 = vperm.xlu0 %537, %v494
  %v539 = vpop.permute.xlu0 %538
  %540 = vset.pattern.permute.xlu0 0
  %541 = vperm.xlu0 %540, %v495
  %v542 = vpop.permute.xlu0 %541
  %543 = vset.pattern.permute.xlu0 0
  %544 = vperm.xlu0 %543, %v496
  %v545 = vpop.permute.xlu0 %544
  %v546 = vperm.slane %v497, 0
  %vm547 = vcmp.eq.s32.totalorder %v500, %v546
  %vm548 = vcmp.eq.s32.totalorder %v503, %v546
  %vm549 = vcmp.eq.s32.totalorder %v506, %v546
  %vm550 = vcmp.eq.s32.totalorder %v509, %v546
  %vm551 = vcmp.eq.s32.totalorder %v512, %v546
  %vm552 = vcmp.eq.s32.totalorder %v515, %v546
  %vm553 = vcmp.eq.s32.totalorder %v518, %v546
  %vm554 = vcmp.eq.s32.totalorder %v521, %v546
  %vm555 = vcmp.eq.s32.totalorder %v524, %v546
  %vm556 = vcmp.eq.s32.totalorder %v527, %v546
  %vm557 = vcmp.eq.s32.totalorder %v530, %v546
  %vm558 = vcmp.eq.s32.totalorder %v533, %v546
  %vm559 = vcmp.eq.s32.totalorder %v536, %v546
  %vm560 = vcmp.eq.s32.totalorder %v539, %v546
  %vm561 = vcmp.eq.s32.totalorder %v542, %v546
  %vm562 = vcmp.eq.s32.totalorder %v545, %v546
  %v563 = vld [vmem:[%s6] sm:$0x1]
  %v565 = vperm.slane %v563, 0
  %v567 = vsel %vm547, %v565, 0.0
  %v568 = vsel %vm548, %v565, 0.0
  %v569 = vsel %vm549, %v565, 0.0
  %v570 = vsel %vm550, %v565, 0.0
  %v571 = vsel %vm551, %v565, 0.0
  %v572 = vsel %vm552, %v565, 0.0
  %v573 = vsel %vm553, %v565, 0.0
  %v574 = vsel %vm554, %v565, 0.0
  %v575 = vsel %vm555, %v565, 0.0
  %v576 = vsel %vm556, %v565, 0.0
  %v577 = vsel %vm557, %v565, 0.0
  %v578 = vsel %vm558, %v565, 0.0
  %v579 = vsel %vm559, %v565, 0.0
  %v580 = vsel %vm560, %v565, 0.0
  %v581 = vsel %vm561, %v565, 0.0
  %v582 = vsel %vm562, %v565, 0.0
  %v583 = vsub.f32 %v565, %v567
  %v584 = vsub.f32 %v565, %v568
  %v585 = vsub.f32 %v565, %v569
  %v586 = vsub.f32 %v565, %v570
  %v587 = vsub.f32 %v565, %v571
  %v588 = vsub.f32 %v565, %v572
  %v589 = vsub.f32 %v565, %v573
  %v590 = vsub.f32 %v565, %v574
  %v591 = vsub.f32 %v565, %v575
  %v592 = vsub.f32 %v565, %v576
  %v593 = vsub.f32 %v565, %v577
  %v594 = vsub.f32 %v565, %v578
  %v595 = vsub.f32 %v565, %v579
  %v596 = vsub.f32 %v565, %v580
  %v597 = vsub.f32 %v565, %v581
  %v598 = vsub.f32 %v565, %v582
  %v599 = vmul.f32 %v300, %v567
  %v600 = vmul.f32 %v312, %v568
  %v601 = vmul.f32 %v324, %v569
  %v602 = vmul.f32 %v336, %v570
  %v603 = vmul.f32 %v348, %v571
  %v604 = vmul.f32 %v360, %v572
  %v605 = vmul.f32 %v372, %v573
  %v606 = vmul.f32 %v384, %v574
  %v607 = vmul.f32 %v396, %v575
  %v608 = vmul.f32 %v408, %v576
  %v609 = vmul.f32 %v420, %v577
  %v610 = vmul.f32 %v432, %v578
  %v611 = vmul.f32 %v444, %v579
  %v612 = vmul.f32 %v456, %v580
  %v613 = vmul.f32 %v468, %v581
  %v614 = vmul.f32 %v480, %v582
  %615 = vmax.xlane.f32.xlu0 %v599
  %v616 = vpop.xlane.xlu0 %615
  %617 = vmax.xlane.f32.xlu0 %v600
  %v618 = vpop.xlane.xlu0 %617
  %619 = vmax.xlane.f32.xlu0 %v601
  %v620 = vpop.xlane.xlu0 %619
  %621 = vmax.xlane.f32.xlu0 %v602
  %v622 = vpop.xlane.xlu0 %621
  %623 = vmax.xlane.f32.xlu0 %v603
  %v624 = vpop.xlane.xlu0 %623
  %625 = vmax.xlane.f32.xlu0 %v604
  %v626 = vpop.xlane.xlu0 %625
  %627 = vmax.xlane.f32.xlu0 %v605
  %v628 = vpop.xlane.xlu0 %627
  %629 = vmax.xlane.f32.xlu0 %v606
  %v630 = vpop.xlane.xlu0 %629
  %631 = vmax.xlane.f32.xlu0 %v607
  %v632 = vpop.xlane.xlu0 %631
  %633 = vmax.xlane.f32.xlu0 %v608
  %v634 = vpop.xlane.xlu0 %633
  %635 = vmax.xlane.f32.xlu0 %v609
  %v636 = vpop.xlane.xlu0 %635
  %637 = vmax.xlane.f32.xlu0 %v610
  %v638 = vpop.xlane.xlu0 %637
  %639 = vmax.xlane.f32.xlu0 %v611
  %v640 = vpop.xlane.xlu0 %639
  %641 = vmax.xlane.f32.xlu0 %v612
  %v642 = vpop.xlane.xlu0 %641
  %643 = vmax.xlane.f32.xlu0 %v613
  %v644 = vpop.xlane.xlu0 %643
  %645 = vmax.xlane.f32.xlu0 %v614
  %v646 = vpop.xlane.xlu0 %645
  %v647 = vsub.f32 %v599, %v616
  %v648 = vsub.f32 %v600, %v618
  %v649 = vsub.f32 %v601, %v620
  %v650 = vsub.f32 %v602, %v622
  %v651 = vsub.f32 %v603, %v624
  %v652 = vsub.f32 %v604, %v626
  %v653 = vsub.f32 %v605, %v628
  %v654 = vsub.f32 %v606, %v630
  %v655 = vsub.f32 %v607, %v632
  %v656 = vsub.f32 %v608, %v634
  %v657 = vsub.f32 %v609, %v636
  %v658 = vsub.f32 %v610, %v638
  %v659 = vsub.f32 %v611, %v640
  %v660 = vsub.f32 %v612, %v642
  %v661 = vsub.f32 %v613, %v644
  %v662 = vsub.f32 %v614, %v646
  %v663 = vmul.f32 %v647, 1.442695
  %v664 = vpow.pop %v663
  %v665 = vmul.f32 %v648, 1.442695
  %v666 = vpow.pop %v665
  %v667 = vmul.f32 %v649, 1.442695
  %v668 = vpow.pop %v667
  %v669 = vmul.f32 %v650, 1.442695
  %v670 = vpow.pop %v669
  %v671 = vmul.f32 %v651, 1.442695
  %v672 = vpow.pop %v671
  %v673 = vmul.f32 %v652, 1.442695
  %v674 = vpow.pop %v673
  %v675 = vmul.f32 %v653, 1.442695
  %v676 = vpow.pop %v675
  %v677 = vmul.f32 %v654, 1.442695
  %v678 = vpow.pop %v677
  %v679 = vmul.f32 %v655, 1.442695
  %v680 = vpow.pop %v679
  %v681 = vmul.f32 %v656, 1.442695
  %v682 = vpow.pop %v681
  %v683 = vmul.f32 %v657, 1.442695
  %v684 = vpow.pop %v683
  %v685 = vmul.f32 %v658, 1.442695
  %v686 = vpow.pop %v685
  %v687 = vmul.f32 %v659, 1.442695
  %v688 = vpow.pop %v687
  %v689 = vmul.f32 %v660, 1.442695
  %v690 = vpow.pop %v689
  %v691 = vmul.f32 %v661, 1.442695
  %v692 = vpow.pop %v691
  %v693 = vmul.f32 %v662, 1.442695
  %v694 = vpow.pop %v693
  %v695 = vmul.f32 %v664, %v567
  %v696 = vmul.f32 %v666, %v568
  %v697 = vmul.f32 %v668, %v569
  %v698 = vmul.f32 %v670, %v570
  %v699 = vmul.f32 %v672, %v571
  %v700 = vmul.f32 %v674, %v572
  %v701 = vmul.f32 %v676, %v573
  %v702 = vmul.f32 %v678, %v574
  %v703 = vmul.f32 %v680, %v575
  %v704 = vmul.f32 %v682, %v576
  %v705 = vmul.f32 %v684, %v577
  %v706 = vmul.f32 %v686, %v578
  %v707 = vmul.f32 %v688, %v579
  %v708 = vmul.f32 %v690, %v580
  %v709 = vmul.f32 %v692, %v581
  %v710 = vmul.f32 %v694, %v582
  %711 = vadd.xlane.f32.xlu0 %v695
  %v712 = vpop.xlane.xlu0 %711
  %713 = vadd.xlane.f32.xlu0 %v696
  %v714 = vpop.xlane.xlu0 %713
  %715 = vadd.xlane.f32.xlu0 %v697
  %v716 = vpop.xlane.xlu0 %715
  %717 = vadd.xlane.f32.xlu0 %v698
  %v718 = vpop.xlane.xlu0 %717
  %719 = vadd.xlane.f32.xlu0 %v699
  %v720 = vpop.xlane.xlu0 %719
  %721 = vadd.xlane.f32.xlu0 %v700
  %v722 = vpop.xlane.xlu0 %721
  %723 = vadd.xlane.f32.xlu0 %v701
  %v724 = vpop.xlane.xlu0 %723
  %725 = vadd.xlane.f32.xlu0 %v702
  %v726 = vpop.xlane.xlu0 %725
  %727 = vadd.xlane.f32.xlu0 %v703
  %v728 = vpop.xlane.xlu0 %727
  %729 = vadd.xlane.f32.xlu0 %v704
  %v730 = vpop.xlane.xlu0 %729
  %731 = vadd.xlane.f32.xlu0 %v705
  %v732 = vpop.xlane.xlu0 %731
  %733 = vadd.xlane.f32.xlu0 %v706
  %v734 = vpop.xlane.xlu0 %733
  %735 = vadd.xlane.f32.xlu0 %v707
  %v736 = vpop.xlane.xlu0 %735
  %737 = vadd.xlane.f32.xlu0 %v708
  %v738 = vpop.xlane.xlu0 %737
  %739 = vadd.xlane.f32.xlu0 %v709
  %v740 = vpop.xlane.xlu0 %739
  %741 = vadd.xlane.f32.xlu0 %v710
  %v742 = vpop.xlane.xlu0 %741
  %v743 = vadd.f32 %v712, 1e-06
  %v744 = vadd.f32 %v714, 1e-06
  %v745 = vadd.f32 %v716, 1e-06
  %v746 = vadd.f32 %v718, 1e-06
  %v747 = vadd.f32 %v720, 1e-06
  %v748 = vadd.f32 %v722, 1e-06
  %v749 = vadd.f32 %v724, 1e-06
  %v750 = vadd.f32 %v726, 1e-06
  %v751 = vadd.f32 %v728, 1e-06
  %v752 = vadd.f32 %v730, 1e-06
  %v753 = vadd.f32 %v732, 1e-06
  %v754 = vadd.f32 %v734, 1e-06
  %v755 = vadd.f32 %v736, 1e-06
  %v756 = vadd.f32 %v738, 1e-06
  %v757 = vadd.f32 %v740, 1e-06
  %v758 = vadd.f32 %v742, 1e-06
  %v759 = vmul.f32 %v599, %v695
  %v760 = vmul.f32 %v600, %v696
  %v761 = vmul.f32 %v601, %v697
  %v762 = vmul.f32 %v602, %v698
  %v763 = vmul.f32 %v603, %v699
  %v764 = vmul.f32 %v604, %v700
  %v765 = vmul.f32 %v605, %v701
  %v766 = vmul.f32 %v606, %v702
  %v767 = vmul.f32 %v607, %v703
  %v768 = vmul.f32 %v608, %v704
  %v769 = vmul.f32 %v609, %v705
  %v770 = vmul.f32 %v610, %v706
  %v771 = vmul.f32 %v611, %v707
  %v772 = vmul.f32 %v612, %v708
  %v773 = vmul.f32 %v613, %v709
  %v774 = vmul.f32 %v614, %v710
  %775 = vadd.xlane.f32.xlu0 %v759
  %v776 = vpop.xlane.xlu0 %775
  %777 = vadd.xlane.f32.xlu0 %v760
  %v778 = vpop.xlane.xlu0 %777
  %779 = vadd.xlane.f32.xlu0 %v761
  %v780 = vpop.xlane.xlu0 %779
  %781 = vadd.xlane.f32.xlu0 %v762
  %v782 = vpop.xlane.xlu0 %781
  %783 = vadd.xlane.f32.xlu0 %v763
  %v784 = vpop.xlane.xlu0 %783
  %785 = vadd.xlane.f32.xlu0 %v764
  %v786 = vpop.xlane.xlu0 %785
  %787 = vadd.xlane.f32.xlu0 %v765
  %v788 = vpop.xlane.xlu0 %787
  %789 = vadd.xlane.f32.xlu0 %v766
  %v790 = vpop.xlane.xlu0 %789
  %791 = vadd.xlane.f32.xlu0 %v767
  %v792 = vpop.xlane.xlu0 %791
  %793 = vadd.xlane.f32.xlu0 %v768
  %v794 = vpop.xlane.xlu0 %793
  %795 = vadd.xlane.f32.xlu0 %v769
  %v796 = vpop.xlane.xlu0 %795
  %797 = vadd.xlane.f32.xlu0 %v770
  %v798 = vpop.xlane.xlu0 %797
  %799 = vadd.xlane.f32.xlu0 %v771
  %v800 = vpop.xlane.xlu0 %799
  %801 = vadd.xlane.f32.xlu0 %v772
  %v802 = vpop.xlane.xlu0 %801
  %803 = vadd.xlane.f32.xlu0 %v773
  %v804 = vpop.xlane.xlu0 %803
  %805 = vadd.xlane.f32.xlu0 %v774
  %v806 = vpop.xlane.xlu0 %805
  %v807 = vrcp.pop %v743
  %v808 = vmul.f32 %v743, %v807
  %v809 = vsub.f32 1.0, %v808
  %v810 = vmul.f32 %v807, %v809
  %v811 = vadd.f32 %v807, %v810
  %vm812 = vweird.f32 %v743
  %vm813 = vweird.f32 %v807
  %vm814 = vmor %vm812, %vm813
  %v815 = vsel %vm814, %v807, %v811
  %v816 = vand.u32 2147483647, %v743
  %vm817 = vcmp.eq.f32.partialorder %v816, 8.507059e+37
  %v818 = vand.u32 %v743, 2147483648
  %v819 = vor.u32 1.1754944e-38, %v818
  %v820 = vsel %vm817, %v819, %v815
  %v821 = vmul.f32 %v776, %v820
  %v822 = vrcp.pop %v744
  %v823 = vmul.f32 %v744, %v822
  %v824 = vsub.f32 1.0, %v823
  %v825 = vmul.f32 %v822, %v824
  %v826 = vadd.f32 %v822, %v825
  %vm827 = vweird.f32 %v744
  %vm828 = vweird.f32 %v822
  %vm829 = vmor %vm827, %vm828
  %v830 = vsel %vm829, %v822, %v826
  %v831 = vand.u32 2147483647, %v744
  %vm832 = vcmp.eq.f32.partialorder %v831, 8.507059e+37
  %v833 = vand.u32 %v744, 2147483648
  %v834 = vor.u32 1.1754944e-38, %v833
  %v835 = vsel %vm832, %v834, %v830
  %v836 = vmul.f32 %v778, %v835
  %v837 = vrcp.pop %v745
  %v838 = vmul.f32 %v745, %v837
  %v839 = vsub.f32 1.0, %v838
  %v840 = vmul.f32 %v837, %v839
  %v841 = vadd.f32 %v837, %v840
  %vm842 = vweird.f32 %v745
  %vm843 = vweird.f32 %v837
  %vm844 = vmor %vm842, %vm843
  %v845 = vsel %vm844, %v837, %v841
  %v846 = vand.u32 2147483647, %v745
  %vm847 = vcmp.eq.f32.partialorder %v846, 8.507059e+37
  %v848 = vand.u32 %v745, 2147483648
  %v849 = vor.u32 1.1754944e-38, %v848
  %v850 = vsel %vm847, %v849, %v845
  %v851 = vmul.f32 %v780, %v850
  %v852 = vrcp.pop %v746
  %v853 = vmul.f32 %v746, %v852
  %v854 = vsub.f32 1.0, %v853
  %v855 = vmul.f32 %v852, %v854
  %v856 = vadd.f32 %v852, %v855
  %vm857 = vweird.f32 %v746
  %vm858 = vweird.f32 %v852
  %vm859 = vmor %vm857, %vm858
  %v860 = vsel %vm859, %v852, %v856
  %v861 = vand.u32 2147483647, %v746
  %vm862 = vcmp.eq.f32.partialorder %v861, 8.507059e+37
  %v863 = vand.u32 %v746, 2147483648
  %v864 = vor.u32 1.1754944e-38, %v863
  %v865 = vsel %vm862, %v864, %v860
  %v866 = vmul.f32 %v782, %v865
  %v867 = vrcp.pop %v747
  %v868 = vmul.f32 %v747, %v867
  %v869 = vsub.f32 1.0, %v868
  %v870 = vmul.f32 %v867, %v869
  %v871 = vadd.f32 %v867, %v870
  %vm872 = vweird.f32 %v747
  %vm873 = vweird.f32 %v867
  %vm874 = vmor %vm872, %vm873
  %v875 = vsel %vm874, %v867, %v871
  %v876 = vand.u32 2147483647, %v747
  %vm877 = vcmp.eq.f32.partialorder %v876, 8.507059e+37
  %v878 = vand.u32 %v747, 2147483648
  %v879 = vor.u32 1.1754944e-38, %v878
  %v880 = vsel %vm877, %v879, %v875
  %v881 = vmul.f32 %v784, %v880
  %v882 = vrcp.pop %v748
  %v883 = vmul.f32 %v748, %v882
  %v884 = vsub.f32 1.0, %v883
  %v885 = vmul.f32 %v882, %v884
  %v886 = vadd.f32 %v882, %v885
  %vm887 = vweird.f32 %v748
  %vm888 = vweird.f32 %v882
  %vm889 = vmor %vm887, %vm888
  %v890 = vsel %vm889, %v882, %v886
  %v891 = vand.u32 2147483647, %v748
  %vm892 = vcmp.eq.f32.partialorder %v891, 8.507059e+37
  %v893 = vand.u32 %v748, 2147483648
  %v894 = vor.u32 1.1754944e-38, %v893
  %v895 = vsel %vm892, %v894, %v890
  %v896 = vmul.f32 %v786, %v895
  %v897 = vrcp.pop %v749
  %v898 = vmul.f32 %v749, %v897
  %v899 = vsub.f32 1.0, %v898
  %v900 = vmul.f32 %v897, %v899
  %v901 = vadd.f32 %v897, %v900
  %vm902 = vweird.f32 %v749
  %vm903 = vweird.f32 %v897
  %vm904 = vmor %vm902, %vm903
  %v905 = vsel %vm904, %v897, %v901
  %v906 = vand.u32 2147483647, %v749
  %vm907 = vcmp.eq.f32.partialorder %v906, 8.507059e+37
  %v908 = vand.u32 %v749, 2147483648
  %v909 = vor.u32 1.1754944e-38, %v908
  %v910 = vsel %vm907, %v909, %v905
  %v911 = vmul.f32 %v788, %v910
  %v912 = vrcp.pop %v750
  %v913 = vmul.f32 %v750, %v912
  %v914 = vsub.f32 1.0, %v913
  %v915 = vmul.f32 %v912, %v914
  %v916 = vadd.f32 %v912, %v915
  %vm917 = vweird.f32 %v750
  %vm918 = vweird.f32 %v912
  %vm919 = vmor %vm917, %vm918
  %v920 = vsel %vm919, %v912, %v916
  %v921 = vand.u32 2147483647, %v750
  %vm922 = vcmp.eq.f32.partialorder %v921, 8.507059e+37
  %v923 = vand.u32 %v750, 2147483648
  %v924 = vor.u32 1.1754944e-38, %v923
  %v925 = vsel %vm922, %v924, %v920
  %v926 = vmul.f32 %v790, %v925
  %v927 = vrcp.pop %v751
  %v928 = vmul.f32 %v751, %v927
  %v929 = vsub.f32 1.0, %v928
  %v930 = vmul.f32 %v927, %v929
  %v931 = vadd.f32 %v927, %v930
  %vm932 = vweird.f32 %v751
  %vm933 = vweird.f32 %v927
  %vm934 = vmor %vm932, %vm933
  %v935 = vsel %vm934, %v927, %v931
  %v936 = vand.u32 2147483647, %v751
  %vm937 = vcmp.eq.f32.partialorder %v936, 8.507059e+37
  %v938 = vand.u32 %v751, 2147483648
  %v939 = vor.u32 1.1754944e-38, %v938
  %v940 = vsel %vm937, %v939, %v935
  %v941 = vmul.f32 %v792, %v940
  %v942 = vrcp.pop %v752
  %v943 = vmul.f32 %v752, %v942
  %v944 = vsub.f32 1.0, %v943
  %v945 = vmul.f32 %v942, %v944
  %v946 = vadd.f32 %v942, %v945
  %vm947 = vweird.f32 %v752
  %vm948 = vweird.f32 %v942
  %vm949 = vmor %vm947, %vm948
  %v950 = vsel %vm949, %v942, %v946
  %v951 = vand.u32 2147483647, %v752
  %vm952 = vcmp.eq.f32.partialorder %v951, 8.507059e+37
  %v953 = vand.u32 %v752, 2147483648
  %v954 = vor.u32 1.1754944e-38, %v953
  %v955 = vsel %vm952, %v954, %v950
  %v956 = vmul.f32 %v794, %v955
  %v957 = vrcp.pop %v753
  %v958 = vmul.f32 %v753, %v957
  %v959 = vsub.f32 1.0, %v958
  %v960 = vmul.f32 %v957, %v959
  %v961 = vadd.f32 %v957, %v960
  %vm962 = vweird.f32 %v753
  %vm963 = vweird.f32 %v957
  %vm964 = vmor %vm962, %vm963
  %v965 = vsel %vm964, %v957, %v961
  %v966 = vand.u32 2147483647, %v753
  %vm967 = vcmp.eq.f32.partialorder %v966, 8.507059e+37
  %v968 = vand.u32 %v753, 2147483648
  %v969 = vor.u32 1.1754944e-38, %v968
  %v970 = vsel %vm967, %v969, %v965
  %v971 = vmul.f32 %v796, %v970
  %v972 = vrcp.pop %v754
  %v973 = vmul.f32 %v754, %v972
  %v974 = vsub.f32 1.0, %v973
  %v975 = vmul.f32 %v972, %v974
  %v976 = vadd.f32 %v972, %v975
  %vm977 = vweird.f32 %v754
  %vm978 = vweird.f32 %v972
  %vm979 = vmor %vm977, %vm978
  %v980 = vsel %vm979, %v972, %v976
  %v981 = vand.u32 2147483647, %v754
  %vm982 = vcmp.eq.f32.partialorder %v981, 8.507059e+37
  %v983 = vand.u32 %v754, 2147483648
  %v984 = vor.u32 1.1754944e-38, %v983
  %v985 = vsel %vm982, %v984, %v980
  %v986 = vmul.f32 %v798, %v985
  %v987 = vrcp.pop %v755
  %v988 = vmul.f32 %v755, %v987
  %v989 = vsub.f32 1.0, %v988
  %v990 = vmul.f32 %v987, %v989
  %v991 = vadd.f32 %v987, %v990
  %vm992 = vweird.f32 %v755
  %vm993 = vweird.f32 %v987
  %vm994 = vmor %vm992, %vm993
  %v995 = vsel %vm994, %v987, %v991
  %v996 = vand.u32 2147483647, %v755
  %vm997 = vcmp.eq.f32.partialorder %v996, 8.507059e+37
  %v998 = vand.u32 %v755, 2147483648
  %v999 = vor.u32 1.1754944e-38, %v998
  %v1000 = vsel %vm997, %v999, %v995
  %v1001 = vmul.f32 %v800, %v1000
  %v1002 = vrcp.pop %v756
  %v1003 = vmul.f32 %v756, %v1002
  %v1004 = vsub.f32 1.0, %v1003
  %v1005 = vmul.f32 %v1002, %v1004
  %v1006 = vadd.f32 %v1002, %v1005
  %vm1007 = vweird.f32 %v756
  %vm1008 = vweird.f32 %v1002
  %vm1009 = vmor %vm1007, %vm1008
  %v1010 = vsel %vm1009, %v1002, %v1006
  %v1011 = vand.u32 2147483647, %v756
  %vm1012 = vcmp.eq.f32.partialorder %v1011, 8.507059e+37
  %v1013 = vand.u32 %v756, 2147483648
  %v1014 = vor.u32 1.1754944e-38, %v1013
  %v1015 = vsel %vm1012, %v1014, %v1010
  %v1016 = vmul.f32 %v802, %v1015
  %v1017 = vrcp.pop %v757
  %v1018 = vmul.f32 %v757, %v1017
  %v1019 = vsub.f32 1.0, %v1018
  %v1020 = vmul.f32 %v1017, %v1019
  %v1021 = vadd.f32 %v1017, %v1020
  %vm1022 = vweird.f32 %v757
  %vm1023 = vweird.f32 %v1017
  %vm1024 = vmor %vm1022, %vm1023
  %v1025 = vsel %vm1024, %v1017, %v1021
  %v1026 = vand.u32 2147483647, %v757
  %vm1027 = vcmp.eq.f32.partialorder %v1026, 8.507059e+37
  %v1028 = vand.u32 %v757, 2147483648
  %v1029 = vor.u32 1.1754944e-38, %v1028
  %v1030 = vsel %vm1027, %v1029, %v1025
  %v1031 = vmul.f32 %v804, %v1030
  %v1032 = vrcp.pop %v758
  %v1033 = vmul.f32 %v758, %v1032
  %v1034 = vsub.f32 1.0, %v1033
  %v1035 = vmul.f32 %v1032, %v1034
  %v1036 = vadd.f32 %v1032, %v1035
  %vm1037 = vweird.f32 %v758
  %vm1038 = vweird.f32 %v1032
  %vm1039 = vmor %vm1037, %vm1038
  %v1040 = vsel %vm1039, %v1032, %v1036
  %v1041 = vand.u32 2147483647, %v758
  %vm1042 = vcmp.eq.f32.partialorder %v1041, 8.507059e+37
  %v1043 = vand.u32 %v758, 2147483648
  %v1044 = vor.u32 1.1754944e-38, %v1043
  %v1045 = vsel %vm1042, %v1044, %v1040
  %v1046 = vmul.f32 %v806, %v1045
  %v1047 = vmul.f32 %v300, %v583
  %v1048 = vmul.f32 %v312, %v584
  %v1049 = vmul.f32 %v324, %v585
  %v1050 = vmul.f32 %v336, %v586
  %v1051 = vmul.f32 %v348, %v587
  %v1052 = vmul.f32 %v360, %v588
  %v1053 = vmul.f32 %v372, %v589
  %v1054 = vmul.f32 %v384, %v590
  %v1055 = vmul.f32 %v396, %v591
  %v1056 = vmul.f32 %v408, %v592
  %v1057 = vmul.f32 %v420, %v593
  %v1058 = vmul.f32 %v432, %v594
  %v1059 = vmul.f32 %v444, %v595
  %v1060 = vmul.f32 %v456, %v596
  %v1061 = vmul.f32 %v468, %v597
  %v1062 = vmul.f32 %v480, %v598
  %v1063 = vsub.f32 0.0, %v1047
  %v1064 = vsub.f32 0.0, %v1048
  %v1065 = vsub.f32 0.0, %v1049
  %v1066 = vsub.f32 0.0, %v1050
  %v1067 = vsub.f32 0.0, %v1051
  %v1068 = vsub.f32 0.0, %v1052
  %v1069 = vsub.f32 0.0, %v1053
  %v1070 = vsub.f32 0.0, %v1054
  %v1071 = vsub.f32 0.0, %v1055
  %v1072 = vsub.f32 0.0, %v1056
  %v1073 = vsub.f32 0.0, %v1057
  %v1074 = vsub.f32 0.0, %v1058
  %v1075 = vsub.f32 0.0, %v1059
  %v1076 = vsub.f32 0.0, %v1060
  %v1077 = vsub.f32 0.0, %v1061
  %v1078 = vsub.f32 0.0, %v1062
  %1079 = vmax.xlane.f32.xlu0 %v1063
  %v1080 = vpop.xlane.xlu0 %1079
  %1081 = vmax.xlane.f32.xlu0 %v1064
  %v1082 = vpop.xlane.xlu0 %1081
  %1083 = vmax.xlane.f32.xlu0 %v1065
  %v1084 = vpop.xlane.xlu0 %1083
  %1085 = vmax.xlane.f32.xlu0 %v1066
  %v1086 = vpop.xlane.xlu0 %1085
  %1087 = vmax.xlane.f32.xlu0 %v1067
  %v1088 = vpop.xlane.xlu0 %1087
  %1089 = vmax.xlane.f32.xlu0 %v1068
  %v1090 = vpop.xlane.xlu0 %1089
  %1091 = vmax.xlane.f32.xlu0 %v1069
  %v1092 = vpop.xlane.xlu0 %1091
  %1093 = vmax.xlane.f32.xlu0 %v1070
  %v1094 = vpop.xlane.xlu0 %1093
  %1095 = vmax.xlane.f32.xlu0 %v1071
  %v1096 = vpop.xlane.xlu0 %1095
  %1097 = vmax.xlane.f32.xlu0 %v1072
  %v1098 = vpop.xlane.xlu0 %1097
  %1099 = vmax.xlane.f32.xlu0 %v1073
  %v1100 = vpop.xlane.xlu0 %1099
  %1101 = vmax.xlane.f32.xlu0 %v1074
  %v1102 = vpop.xlane.xlu0 %1101
  %1103 = vmax.xlane.f32.xlu0 %v1075
  %v1104 = vpop.xlane.xlu0 %1103
  %1105 = vmax.xlane.f32.xlu0 %v1076
  %v1106 = vpop.xlane.xlu0 %1105
  %1107 = vmax.xlane.f32.xlu0 %v1077
  %v1108 = vpop.xlane.xlu0 %1107
  %1109 = vmax.xlane.f32.xlu0 %v1078
  %v1110 = vpop.xlane.xlu0 %1109
  %v1111 = vsub.f32 %v1063, %v1080
  %v1112 = vsub.f32 %v1064, %v1082
  %v1113 = vsub.f32 %v1065, %v1084
  %v1114 = vsub.f32 %v1066, %v1086
  %v1115 = vsub.f32 %v1067, %v1088
  %v1116 = vsub.f32 %v1068, %v1090
  %v1117 = vsub.f32 %v1069, %v1092
  %v1118 = vsub.f32 %v1070, %v1094
  %v1119 = vsub.f32 %v1071, %v1096
  %v1120 = vsub.f32 %v1072, %v1098
  %v1121 = vsub.f32 %v1073, %v1100
  %v1122 = vsub.f32 %v1074, %v1102
  %v1123 = vsub.f32 %v1075, %v1104
  %v1124 = vsub.f32 %v1076, %v1106
  %v1125 = vsub.f32 %v1077, %v1108
  %v1126 = vsub.f32 %v1078, %v1110
  %v1127 = vmul.f32 %v1111, 1.442695
  %v1128 = vpow.pop %v1127
  %v1129 = vmul.f32 %v1112, 1.442695
  %v1130 = vpow.pop %v1129
  %v1131 = vmul.f32 %v1113, 1.442695
  %v1132 = vpow.pop %v1131
  %v1133 = vmul.f32 %v1114, 1.442695
  %v1134 = vpow.pop %v1133
  %v1135 = vmul.f32 %v1115, 1.442695
  %v1136 = vpow.pop %v1135
  %v1137 = vmul.f32 %v1116, 1.442695
  %v1138 = vpow.pop %v1137
  %v1139 = vmul.f32 %v1117, 1.442695
  %v1140 = vpow.pop %v1139
  %v1141 = vmul.f32 %v1118, 1.442695
  %v1142 = vpow.pop %v1141
  %v1143 = vmul.f32 %v1119, 1.442695
  %v1144 = vpow.pop %v1143
  %v1145 = vmul.f32 %v1120, 1.442695
  %v1146 = vpow.pop %v1145
  %v1147 = vmul.f32 %v1121, 1.442695
  %v1148 = vpow.pop %v1147
  %v1149 = vmul.f32 %v1122, 1.442695
  %v1150 = vpow.pop %v1149
  %v1151 = vmul.f32 %v1123, 1.442695
  %v1152 = vpow.pop %v1151
  %v1153 = vmul.f32 %v1124, 1.442695
  %v1154 = vpow.pop %v1153
  %v1155 = vmul.f32 %v1125, 1.442695
  %v1156 = vpow.pop %v1155
  %v1157 = vmul.f32 %v1126, 1.442695
  %v1158 = vpow.pop %v1157
  %v1159 = vmul.f32 %v1128, %v583
  %v1160 = vmul.f32 %v1130, %v584
  %v1161 = vmul.f32 %v1132, %v585
  %v1162 = vmul.f32 %v1134, %v586
  %v1163 = vmul.f32 %v1136, %v587
  %v1164 = vmul.f32 %v1138, %v588
  %v1165 = vmul.f32 %v1140, %v589
  %v1166 = vmul.f32 %v1142, %v590
  %v1167 = vmul.f32 %v1144, %v591
  %v1168 = vmul.f32 %v1146, %v592
  %v1169 = vmul.f32 %v1148, %v593
  %v1170 = vmul.f32 %v1150, %v594
  %v1171 = vmul.f32 %v1152, %v595
  %v1172 = vmul.f32 %v1154, %v596
  %v1173 = vmul.f32 %v1156, %v597
  %v1174 = vmul.f32 %v1158, %v598
  %1175 = vadd.xlane.f32.xlu0 %v1159
  %v1176 = vpop.xlane.xlu0 %1175
  %1177 = vadd.xlane.f32.xlu0 %v1160
  %v1178 = vpop.xlane.xlu0 %1177
  %1179 = vadd.xlane.f32.xlu0 %v1161
  %v1180 = vpop.xlane.xlu0 %1179
  %1181 = vadd.xlane.f32.xlu0 %v1162
  %v1182 = vpop.xlane.xlu0 %1181
  %1183 = vadd.xlane.f32.xlu0 %v1163
  %v1184 = vpop.xlane.xlu0 %1183
  %1185 = vadd.xlane.f32.xlu0 %v1164
  %v1186 = vpop.xlane.xlu0 %1185
  %1187 = vadd.xlane.f32.xlu0 %v1165
  %v1188 = vpop.xlane.xlu0 %1187
  %1189 = vadd.xlane.f32.xlu0 %v1166
  %v1190 = vpop.xlane.xlu0 %1189
  %1191 = vadd.xlane.f32.xlu0 %v1167
  %v1192 = vpop.xlane.xlu0 %1191
  %1193 = vadd.xlane.f32.xlu0 %v1168
  %v1194 = vpop.xlane.xlu0 %1193
  %1195 = vadd.xlane.f32.xlu0 %v1169
  %v1196 = vpop.xlane.xlu0 %1195
  %1197 = vadd.xlane.f32.xlu0 %v1170
  %v1198 = vpop.xlane.xlu0 %1197
  %1199 = vadd.xlane.f32.xlu0 %v1171
  %v1200 = vpop.xlane.xlu0 %1199
  %1201 = vadd.xlane.f32.xlu0 %v1172
  %v1202 = vpop.xlane.xlu0 %1201
  %1203 = vadd.xlane.f32.xlu0 %v1173
  %v1204 = vpop.xlane.xlu0 %1203
  %1205 = vadd.xlane.f32.xlu0 %v1174
  %v1206 = vpop.xlane.xlu0 %1205
  %v1207 = vadd.f32 %v1176, 1e-06
  %v1208 = vadd.f32 %v1178, 1e-06
  %v1209 = vadd.f32 %v1180, 1e-06
  %v1210 = vadd.f32 %v1182, 1e-06
  %v1211 = vadd.f32 %v1184, 1e-06
  %v1212 = vadd.f32 %v1186, 1e-06
  %v1213 = vadd.f32 %v1188, 1e-06
  %v1214 = vadd.f32 %v1190, 1e-06
  %v1215 = vadd.f32 %v1192, 1e-06
  %v1216 = vadd.f32 %v1194, 1e-06
  %v1217 = vadd.f32 %v1196, 1e-06
  %v1218 = vadd.f32 %v1198, 1e-06
  %v1219 = vadd.f32 %v1200, 1e-06
  %v1220 = vadd.f32 %v1202, 1e-06
  %v1221 = vadd.f32 %v1204, 1e-06
  %v1222 = vadd.f32 %v1206, 1e-06
  %v1223 = vmul.f32 %v1047, %v1159
  %v1224 = vmul.f32 %v1048, %v1160
  %v1225 = vmul.f32 %v1049, %v1161
  %v1226 = vmul.f32 %v1050, %v1162
  %v1227 = vmul.f32 %v1051, %v1163
  %v1228 = vmul.f32 %v1052, %v1164
  %v1229 = vmul.f32 %v1053, %v1165
  %v1230 = vmul.f32 %v1054, %v1166
  %v1231 = vmul.f32 %v1055, %v1167
  %v1232 = vmul.f32 %v1056, %v1168
  %v1233 = vmul.f32 %v1057, %v1169
  %v1234 = vmul.f32 %v1058, %v1170
  %v1235 = vmul.f32 %v1059, %v1171
  %v1236 = vmul.f32 %v1060, %v1172
  %v1237 = vmul.f32 %v1061, %v1173
  %v1238 = vmul.f32 %v1062, %v1174
  %1239 = vadd.xlane.f32.xlu0 %v1223
  %v1240 = vpop.xlane.xlu0 %1239
  %1241 = vadd.xlane.f32.xlu0 %v1224
  %v1242 = vpop.xlane.xlu0 %1241
  %1243 = vadd.xlane.f32.xlu0 %v1225
  %v1244 = vpop.xlane.xlu0 %1243
  %1245 = vadd.xlane.f32.xlu0 %v1226
  %v1246 = vpop.xlane.xlu0 %1245
  %1247 = vadd.xlane.f32.xlu0 %v1227
  %v1248 = vpop.xlane.xlu0 %1247
  %1249 = vadd.xlane.f32.xlu0 %v1228
  %v1250 = vpop.xlane.xlu0 %1249
  %1251 = vadd.xlane.f32.xlu0 %v1229
  %v1252 = vpop.xlane.xlu0 %1251
  %1253 = vadd.xlane.f32.xlu0 %v1230
  %v1254 = vpop.xlane.xlu0 %1253
  %1255 = vadd.xlane.f32.xlu0 %v1231
  %v1256 = vpop.xlane.xlu0 %1255
  %1257 = vadd.xlane.f32.xlu0 %v1232
  %v1258 = vpop.xlane.xlu0 %1257
  %1259 = vadd.xlane.f32.xlu0 %v1233
  %v1260 = vpop.xlane.xlu0 %1259
  %1261 = vadd.xlane.f32.xlu0 %v1234
  %v1262 = vpop.xlane.xlu0 %1261
  %1263 = vadd.xlane.f32.xlu0 %v1235
  %v1264 = vpop.xlane.xlu0 %1263
  %1265 = vadd.xlane.f32.xlu0 %v1236
  %v1266 = vpop.xlane.xlu0 %1265
  %1267 = vadd.xlane.f32.xlu0 %v1237
  %v1268 = vpop.xlane.xlu0 %1267
  %1269 = vadd.xlane.f32.xlu0 %v1238
  %v1270 = vpop.xlane.xlu0 %1269
  %v1271 = vrcp.pop %v1207
  %v1272 = vmul.f32 %v1207, %v1271
  %v1273 = vsub.f32 1.0, %v1272
  %v1274 = vmul.f32 %v1271, %v1273
  %v1275 = vadd.f32 %v1271, %v1274
  %vm1276 = vweird.f32 %v1207
  %vm1277 = vweird.f32 %v1271
  %vm1278 = vmor %vm1276, %vm1277
  %v1279 = vsel %vm1278, %v1271, %v1275
  %v1280 = vand.u32 2147483647, %v1207
  %vm1281 = vcmp.eq.f32.partialorder %v1280, 8.507059e+37
  %v1282 = vand.u32 %v1207, 2147483648
  %v1283 = vor.u32 1.1754944e-38, %v1282
  %v1284 = vsel %vm1281, %v1283, %v1279
  %v1285 = vmul.f32 %v1240, %v1284
  %v1286 = vrcp.pop %v1208
  %v1287 = vmul.f32 %v1208, %v1286
  %v1288 = vsub.f32 1.0, %v1287
  %v1289 = vmul.f32 %v1286, %v1288
  %v1290 = vadd.f32 %v1286, %v1289
  %vm1291 = vweird.f32 %v1208
  %vm1292 = vweird.f32 %v1286
  %vm1293 = vmor %vm1291, %vm1292
  %v1294 = vsel %vm1293, %v1286, %v1290
  %v1295 = vand.u32 2147483647, %v1208
  %vm1296 = vcmp.eq.f32.partialorder %v1295, 8.507059e+37
  %v1297 = vand.u32 %v1208, 2147483648
  %v1298 = vor.u32 1.1754944e-38, %v1297
  %v1299 = vsel %vm1296, %v1298, %v1294
  %v1300 = vmul.f32 %v1242, %v1299
  %v1301 = vrcp.pop %v1209
  %v1302 = vmul.f32 %v1209, %v1301
  %v1303 = vsub.f32 1.0, %v1302
  %v1304 = vmul.f32 %v1301, %v1303
  %v1305 = vadd.f32 %v1301, %v1304
  %vm1306 = vweird.f32 %v1209
  %vm1307 = vweird.f32 %v1301
  %vm1308 = vmor %vm1306, %vm1307
  %v1309 = vsel %vm1308, %v1301, %v1305
  %v1310 = vand.u32 2147483647, %v1209
  %vm1311 = vcmp.eq.f32.partialorder %v1310, 8.507059e+37
  %v1312 = vand.u32 %v1209, 2147483648
  %v1313 = vor.u32 1.1754944e-38, %v1312
  %v1314 = vsel %vm1311, %v1313, %v1309
  %v1315 = vmul.f32 %v1244, %v1314
  %v1316 = vrcp.pop %v1210
  %v1317 = vmul.f32 %v1210, %v1316
  %v1318 = vsub.f32 1.0, %v1317
  %v1319 = vmul.f32 %v1316, %v1318
  %v1320 = vadd.f32 %v1316, %v1319
  %vm1321 = vweird.f32 %v1210
  %vm1322 = vweird.f32 %v1316
  %vm1323 = vmor %vm1321, %vm1322
  %v1324 = vsel %vm1323, %v1316, %v1320
  %v1325 = vand.u32 2147483647, %v1210
  %vm1326 = vcmp.eq.f32.partialorder %v1325, 8.507059e+37
  %v1327 = vand.u32 %v1210, 2147483648
  %v1328 = vor.u32 1.1754944e-38, %v1327
  %v1329 = vsel %vm1326, %v1328, %v1324
  %v1330 = vmul.f32 %v1246, %v1329
  %v1331 = vrcp.pop %v1211
  %v1332 = vmul.f32 %v1211, %v1331
  %v1333 = vsub.f32 1.0, %v1332
  %v1334 = vmul.f32 %v1331, %v1333
  %v1335 = vadd.f32 %v1331, %v1334
  %vm1336 = vweird.f32 %v1211
  %vm1337 = vweird.f32 %v1331
  %vm1338 = vmor %vm1336, %vm1337
  %v1339 = vsel %vm1338, %v1331, %v1335
  %v1340 = vand.u32 2147483647, %v1211
  %vm1341 = vcmp.eq.f32.partialorder %v1340, 8.507059e+37
  %v1342 = vand.u32 %v1211, 2147483648
  %v1343 = vor.u32 1.1754944e-38, %v1342
  %v1344 = vsel %vm1341, %v1343, %v1339
  %v1345 = vmul.f32 %v1248, %v1344
  %v1346 = vrcp.pop %v1212
  %v1347 = vmul.f32 %v1212, %v1346
  %v1348 = vsub.f32 1.0, %v1347
  %v1349 = vmul.f32 %v1346, %v1348
  %v1350 = vadd.f32 %v1346, %v1349
  %vm1351 = vweird.f32 %v1212
  %vm1352 = vweird.f32 %v1346
  %vm1353 = vmor %vm1351, %vm1352
  %v1354 = vsel %vm1353, %v1346, %v1350
  %v1355 = vand.u32 2147483647, %v1212
  %vm1356 = vcmp.eq.f32.partialorder %v1355, 8.507059e+37
  %v1357 = vand.u32 %v1212, 2147483648
  %v1358 = vor.u32 1.1754944e-38, %v1357
  %v1359 = vsel %vm1356, %v1358, %v1354
  %v1360 = vmul.f32 %v1250, %v1359
  %v1361 = vrcp.pop %v1213
  %v1362 = vmul.f32 %v1213, %v1361
  %v1363 = vsub.f32 1.0, %v1362
  %v1364 = vmul.f32 %v1361, %v1363
  %v1365 = vadd.f32 %v1361, %v1364
  %vm1366 = vweird.f32 %v1213
  %vm1367 = vweird.f32 %v1361
  %vm1368 = vmor %vm1366, %vm1367
  %v1369 = vsel %vm1368, %v1361, %v1365
  %v1370 = vand.u32 2147483647, %v1213
  %vm1371 = vcmp.eq.f32.partialorder %v1370, 8.507059e+37
  %v1372 = vand.u32 %v1213, 2147483648
  %v1373 = vor.u32 1.1754944e-38, %v1372
  %v1374 = vsel %vm1371, %v1373, %v1369
  %v1375 = vmul.f32 %v1252, %v1374
  %v1376 = vrcp.pop %v1214
  %v1377 = vmul.f32 %v1214, %v1376
  %v1378 = vsub.f32 1.0, %v1377
  %v1379 = vmul.f32 %v1376, %v1378
  %v1380 = vadd.f32 %v1376, %v1379
  %vm1381 = vweird.f32 %v1214
  %vm1382 = vweird.f32 %v1376
  %vm1383 = vmor %vm1381, %vm1382
  %v1384 = vsel %vm1383, %v1376, %v1380
  %v1385 = vand.u32 2147483647, %v1214
  %vm1386 = vcmp.eq.f32.partialorder %v1385, 8.507059e+37
  %v1387 = vand.u32 %v1214, 2147483648
  %v1388 = vor.u32 1.1754944e-38, %v1387
  %v1389 = vsel %vm1386, %v1388, %v1384
  %v1390 = vmul.f32 %v1254, %v1389
  %v1391 = vrcp.pop %v1215
  %v1392 = vmul.f32 %v1215, %v1391
  %v1393 = vsub.f32 1.0, %v1392
  %v1394 = vmul.f32 %v1391, %v1393
  %v1395 = vadd.f32 %v1391, %v1394
  %vm1396 = vweird.f32 %v1215
  %vm1397 = vweird.f32 %v1391
  %vm1398 = vmor %vm1396, %vm1397
  %v1399 = vsel %vm1398, %v1391, %v1395
  %v1400 = vand.u32 2147483647, %v1215
  %vm1401 = vcmp.eq.f32.partialorder %v1400, 8.507059e+37
  %v1402 = vand.u32 %v1215, 2147483648
  %v1403 = vor.u32 1.1754944e-38, %v1402
  %v1404 = vsel %vm1401, %v1403, %v1399
  %v1405 = vmul.f32 %v1256, %v1404
  %v1406 = vrcp.pop %v1216
  %v1407 = vmul.f32 %v1216, %v1406
  %v1408 = vsub.f32 1.0, %v1407
  %v1409 = vmul.f32 %v1406, %v1408
  %v1410 = vadd.f32 %v1406, %v1409
  %vm1411 = vweird.f32 %v1216
  %vm1412 = vweird.f32 %v1406
  %vm1413 = vmor %vm1411, %vm1412
  %v1414 = vsel %vm1413, %v1406, %v1410
  %v1415 = vand.u32 2147483647, %v1216
  %vm1416 = vcmp.eq.f32.partialorder %v1415, 8.507059e+37
  %v1417 = vand.u32 %v1216, 2147483648
  %v1418 = vor.u32 1.1754944e-38, %v1417
  %v1419 = vsel %vm1416, %v1418, %v1414
  %v1420 = vmul.f32 %v1258, %v1419
  %v1421 = vrcp.pop %v1217
  %v1422 = vmul.f32 %v1217, %v1421
  %v1423 = vsub.f32 1.0, %v1422
  %v1424 = vmul.f32 %v1421, %v1423
  %v1425 = vadd.f32 %v1421, %v1424
  %vm1426 = vweird.f32 %v1217
  %vm1427 = vweird.f32 %v1421
  %vm1428 = vmor %vm1426, %vm1427
  %v1429 = vsel %vm1428, %v1421, %v1425
  %v1430 = vand.u32 2147483647, %v1217
  %vm1431 = vcmp.eq.f32.partialorder %v1430, 8.507059e+37
  %v1432 = vand.u32 %v1217, 2147483648
  %v1433 = vor.u32 1.1754944e-38, %v1432
  %v1434 = vsel %vm1431, %v1433, %v1429
  %v1435 = vmul.f32 %v1260, %v1434
  %v1436 = vrcp.pop %v1218
  %v1437 = vmul.f32 %v1218, %v1436
  %v1438 = vsub.f32 1.0, %v1437
  %v1439 = vmul.f32 %v1436, %v1438
  %v1440 = vadd.f32 %v1436, %v1439
  %vm1441 = vweird.f32 %v1218
  %vm1442 = vweird.f32 %v1436
  %vm1443 = vmor %vm1441, %vm1442
  %v1444 = vsel %vm1443, %v1436, %v1440
  %v1445 = vand.u32 2147483647, %v1218
  %vm1446 = vcmp.eq.f32.partialorder %v1445, 8.507059e+37
  %v1447 = vand.u32 %v1218, 2147483648
  %v1448 = vor.u32 1.1754944e-38, %v1447
  %v1449 = vsel %vm1446, %v1448, %v1444
  %v1450 = vmul.f32 %v1262, %v1449
  %v1451 = vrcp.pop %v1219
  %v1452 = vmul.f32 %v1219, %v1451
  %v1453 = vsub.f32 1.0, %v1452
  %v1454 = vmul.f32 %v1451, %v1453
  %v1455 = vadd.f32 %v1451, %v1454
  %vm1456 = vweird.f32 %v1219
  %vm1457 = vweird.f32 %v1451
  %vm1458 = vmor %vm1456, %vm1457
  %v1459 = vsel %vm1458, %v1451, %v1455
  %v1460 = vand.u32 2147483647, %v1219
  %vm1461 = vcmp.eq.f32.partialorder %v1460, 8.507059e+37
  %v1462 = vand.u32 %v1219, 2147483648
  %v1463 = vor.u32 1.1754944e-38, %v1462
  %v1464 = vsel %vm1461, %v1463, %v1459
  %v1465 = vmul.f32 %v1264, %v1464
  %v1466 = vrcp.pop %v1220
  %v1467 = vmul.f32 %v1220, %v1466
  %v1468 = vsub.f32 1.0, %v1467
  %v1469 = vmul.f32 %v1466, %v1468
  %v1470 = vadd.f32 %v1466, %v1469
  %vm1471 = vweird.f32 %v1220
  %vm1472 = vweird.f32 %v1466
  %vm1473 = vmor %vm1471, %vm1472
  %v1474 = vsel %vm1473, %v1466, %v1470
  %v1475 = vand.u32 2147483647, %v1220
  %vm1476 = vcmp.eq.f32.partialorder %v1475, 8.507059e+37
  %v1477 = vand.u32 %v1220, 2147483648
  %v1478 = vor.u32 1.1754944e-38, %v1477
  %v1479 = vsel %vm1476, %v1478, %v1474
  %v1480 = vmul.f32 %v1266, %v1479
  %v1481 = vrcp.pop %v1221
  %v1482 = vmul.f32 %v1221, %v1481
  %v1483 = vsub.f32 1.0, %v1482
  %v1484 = vmul.f32 %v1481, %v1483
  %v1485 = vadd.f32 %v1481, %v1484
  %vm1486 = vweird.f32 %v1221
  %vm1487 = vweird.f32 %v1481
  %vm1488 = vmor %vm1486, %vm1487
  %v1489 = vsel %vm1488, %v1481, %v1485
  %v1490 = vand.u32 2147483647, %v1221
  %vm1491 = vcmp.eq.f32.partialorder %v1490, 8.507059e+37
  %v1492 = vand.u32 %v1221, 2147483648
  %v1493 = vor.u32 1.1754944e-38, %v1492
  %v1494 = vsel %vm1491, %v1493, %v1489
  %v1495 = vmul.f32 %v1268, %v1494
  %v1496 = vrcp.pop %v1222
  %v1497 = vmul.f32 %v1222, %v1496
  %v1498 = vsub.f32 1.0, %v1497
  %v1499 = vmul.f32 %v1496, %v1498
  %v1500 = vadd.f32 %v1496, %v1499
  %vm1501 = vweird.f32 %v1222
  %vm1502 = vweird.f32 %v1496
  %vm1503 = vmor %vm1501, %vm1502
  %v1504 = vsel %vm1503, %v1496, %v1500
  %v1505 = vand.u32 2147483647, %v1222
  %vm1506 = vcmp.eq.f32.partialorder %v1505, 8.507059e+37
  %v1507 = vand.u32 %v1222, 2147483648
  %v1508 = vor.u32 1.1754944e-38, %v1507
  %v1509 = vsel %vm1506, %v1508, %v1504
  %v1510 = vmul.f32 %v1270, %v1509
  %v1511 = vsub.f32 %v1285, %v821
  %v1512 = vsub.f32 %v1300, %v836
  %v1513 = vsub.f32 %v1315, %v851
  %v1514 = vsub.f32 %v1330, %v866
  %v1515 = vsub.f32 %v1345, %v881
  %v1516 = vsub.f32 %v1360, %v896
  %v1517 = vsub.f32 %v1375, %v911
  %v1518 = vsub.f32 %v1390, %v926
  %v1519 = vsub.f32 %v1405, %v941
  %v1520 = vsub.f32 %v1420, %v956
  %v1521 = vsub.f32 %v1435, %v971
  %v1522 = vsub.f32 %v1450, %v986
  %v1523 = vsub.f32 %v1465, %v1001
  %v1524 = vsub.f32 %v1480, %v1016
  %v1525 = vsub.f32 %v1495, %v1031
  %v1526 = vsub.f32 %v1510, %v1046
  %v1527 = vsub.f32 0.0, %v1511
  %v1528 = vsub.f32 0.0, %v1512
  %v1529 = vsub.f32 0.0, %v1513
  %v1530 = vsub.f32 0.0, %v1514
  %v1531 = vsub.f32 0.0, %v1515
  %v1532 = vsub.f32 0.0, %v1516
  %v1533 = vsub.f32 0.0, %v1517
  %v1534 = vsub.f32 0.0, %v1518
  %v1535 = vsub.f32 0.0, %v1519
  %v1536 = vsub.f32 0.0, %v1520
  %v1537 = vsub.f32 0.0, %v1521
  %v1538 = vsub.f32 0.0, %v1522
  %v1539 = vsub.f32 0.0, %v1523
  %v1540 = vsub.f32 0.0, %v1524
  %v1541 = vsub.f32 0.0, %v1525
  %v1542 = vsub.f32 0.0, %v1526
  %v1543 = vmax.f32 %v1527, 0.0
  %v1544 = vmax.f32 %v1528, 0.0
  %v1545 = vmax.f32 %v1529, 0.0
  %v1546 = vmax.f32 %v1530, 0.0
  %v1547 = vmax.f32 %v1531, 0.0
  %v1548 = vmax.f32 %v1532, 0.0
  %v1549 = vmax.f32 %v1533, 0.0
  %v1550 = vmax.f32 %v1534, 0.0
  %v1551 = vmax.f32 %v1535, 0.0
  %v1552 = vmax.f32 %v1536, 0.0
  %v1553 = vmax.f32 %v1537, 0.0
  %v1554 = vmax.f32 %v1538, 0.0
  %v1555 = vmax.f32 %v1539, 0.0
  %v1556 = vmax.f32 %v1540, 0.0
  %v1557 = vmax.f32 %v1541, 0.0
  %v1558 = vmax.f32 %v1542, 0.0
  %v1559 = vand.u32 2147483647, %v1511
  %v1560 = vand.u32 2147483647, %v1512
  %v1561 = vand.u32 2147483647, %v1513
  %v1562 = vand.u32 2147483647, %v1514
  %v1563 = vand.u32 2147483647, %v1515
  %v1564 = vand.u32 2147483647, %v1516
  %v1565 = vand.u32 2147483647, %v1517
  %v1566 = vand.u32 2147483647, %v1518
  %v1567 = vand.u32 2147483647, %v1519
  %v1568 = vand.u32 2147483647, %v1520
  %v1569 = vand.u32 2147483647, %v1521
  %v1570 = vand.u32 2147483647, %v1522
  %v1571 = vand.u32 2147483647, %v1523
  %v1572 = vand.u32 2147483647, %v1524
  %v1573 = vand.u32 2147483647, %v1525
  %v1574 = vand.u32 2147483647, %v1526
  %v1575 = vsub.f32 0.0, %v1559
  %v1576 = vsub.f32 0.0, %v1560
  %v1577 = vsub.f32 0.0, %v1561
  %v1578 = vsub.f32 0.0, %v1562
  %v1579 = vsub.f32 0.0, %v1563
  %v1580 = vsub.f32 0.0, %v1564
  %v1581 = vsub.f32 0.0, %v1565
  %v1582 = vsub.f32 0.0, %v1566
  %v1583 = vsub.f32 0.0, %v1567
  %v1584 = vsub.f32 0.0, %v1568
  %v1585 = vsub.f32 0.0, %v1569
  %v1586 = vsub.f32 0.0, %v1570
  %v1587 = vsub.f32 0.0, %v1571
  %v1588 = vsub.f32 0.0, %v1572
  %v1589 = vsub.f32 0.0, %v1573
  %v1590 = vsub.f32 0.0, %v1574
  %v1591 = vmul.f32 %v1575, 1.442695
  %v1592 = vpow.pop %v1591
  %v1593 = vmul.f32 %v1576, 1.442695
  %v1594 = vpow.pop %v1593
  %v1595 = vmul.f32 %v1577, 1.442695
  %v1596 = vpow.pop %v1595
  %v1597 = vmul.f32 %v1578, 1.442695
  %v1598 = vpow.pop %v1597
  %v1599 = vmul.f32 %v1579, 1.442695
  %v1600 = vpow.pop %v1599
  %v1601 = vmul.f32 %v1580, 1.442695
  %v1602 = vpow.pop %v1601
  %v1603 = vmul.f32 %v1581, 1.442695
  %v1604 = vpow.pop %v1603
  %v1605 = vmul.f32 %v1582, 1.442695
  %v1606 = vpow.pop %v1605
  %v1607 = vmul.f32 %v1583, 1.442695
  %v1608 = vpow.pop %v1607
  %v1609 = vmul.f32 %v1584, 1.442695
  %v1610 = vpow.pop %v1609
  %v1611 = vmul.f32 %v1585, 1.442695
  %v1612 = vpow.pop %v1611
  %v1613 = vmul.f32 %v1586, 1.442695
  %v1614 = vpow.pop %v1613
  %v1615 = vmul.f32 %v1587, 1.442695
  %v1616 = vpow.pop %v1615
  %v1617 = vmul.f32 %v1588, 1.442695
  %v1618 = vpow.pop %v1617
  %v1619 = vmul.f32 %v1589, 1.442695
  %v1620 = vpow.pop %v1619
  %v1621 = vmul.f32 %v1590, 1.442695
  %v1622 = vpow.pop %v1621
  %v1623 = vadd.f32 %v1592, 1.0
  %v1624 = vlog2.pop %v1623
  %v1625 = vmul.f32 %v1624, 0.6931472
  %v1626 = vmul.f32 -0.5, %v1592
  %v1627 = vadd.f32 %v1626, 1.0
  %v1628 = vmul.f32 %v1627, %v1592
  %v1629 = vand.u32 2147483647, %v1592
  %vm1630 = vcmp.lt.f32.partialorder %v1629, 0.0004427343
  %v1631 = vsel %vm1630, %v1628, %v1625
  %v1632 = vadd.f32 %v1594, 1.0
  %v1633 = vlog2.pop %v1632
  %v1634 = vmul.f32 %v1633, 0.6931472
  %v1635 = vmul.f32 -0.5, %v1594
  %v1636 = vadd.f32 %v1635, 1.0
  %v1637 = vmul.f32 %v1636, %v1594
  %v1638 = vand.u32 2147483647, %v1594
  %vm1639 = vcmp.lt.f32.partialorder %v1638, 0.0004427343
  %v1640 = vsel %vm1639, %v1637, %v1634
  %v1641 = vadd.f32 %v1596, 1.0
  %v1642 = vlog2.pop %v1641
  %v1643 = vmul.f32 %v1642, 0.6931472
  %v1644 = vmul.f32 -0.5, %v1596
  %v1645 = vadd.f32 %v1644, 1.0
  %v1646 = vmul.f32 %v1645, %v1596
  %v1647 = vand.u32 2147483647, %v1596
  %vm1648 = vcmp.lt.f32.partialorder %v1647, 0.0004427343
  %v1649 = vsel %vm1648, %v1646, %v1643
  %v1650 = vadd.f32 %v1598, 1.0
  %v1651 = vlog2.pop %v1650
  %v1652 = vmul.f32 %v1651, 0.6931472
  %v1653 = vmul.f32 -0.5, %v1598
  %v1654 = vadd.f32 %v1653, 1.0
  %v1655 = vmul.f32 %v1654, %v1598
  %v1656 = vand.u32 2147483647, %v1598
  %vm1657 = vcmp.lt.f32.partialorder %v1656, 0.0004427343
  %v1658 = vsel %vm1657, %v1655, %v1652
  %v1659 = vadd.f32 %v1600, 1.0
  %v1660 = vlog2.pop %v1659
  %v1661 = vmul.f32 %v1660, 0.6931472
  %v1662 = vmul.f32 -0.5, %v1600
  %v1663 = vadd.f32 %v1662, 1.0
  %v1664 = vmul.f32 %v1663, %v1600
  %v1665 = vand.u32 2147483647, %v1600
  %vm1666 = vcmp.lt.f32.partialorder %v1665, 0.0004427343
  %v1667 = vsel %vm1666, %v1664, %v1661
  %v1668 = vadd.f32 %v1602, 1.0
  %v1669 = vlog2.pop %v1668
  %v1670 = vmul.f32 %v1669, 0.6931472
  %v1671 = vmul.f32 -0.5, %v1602
  %v1672 = vadd.f32 %v1671, 1.0
  %v1673 = vmul.f32 %v1672, %v1602
  %v1674 = vand.u32 2147483647, %v1602
  %vm1675 = vcmp.lt.f32.partialorder %v1674, 0.0004427343
  %v1676 = vsel %vm1675, %v1673, %v1670
  %v1677 = vadd.f32 %v1604, 1.0
  %v1678 = vlog2.pop %v1677
  %v1679 = vmul.f32 %v1678, 0.6931472
  %v1680 = vmul.f32 -0.5, %v1604
  %v1681 = vadd.f32 %v1680, 1.0
  %v1682 = vmul.f32 %v1681, %v1604
  %v1683 = vand.u32 2147483647, %v1604
  %vm1684 = vcmp.lt.f32.partialorder %v1683, 0.0004427343
  %v1685 = vsel %vm1684, %v1682, %v1679
  %v1686 = vadd.f32 %v1606, 1.0
  %v1687 = vlog2.pop %v1686
  %v1688 = vmul.f32 %v1687, 0.6931472
  %v1689 = vmul.f32 -0.5, %v1606
  %v1690 = vadd.f32 %v1689, 1.0
  %v1691 = vmul.f32 %v1690, %v1606
  %v1692 = vand.u32 2147483647, %v1606
  %vm1693 = vcmp.lt.f32.partialorder %v1692, 0.0004427343
  %v1694 = vsel %vm1693, %v1691, %v1688
  %v1695 = vadd.f32 %v1608, 1.0
  %v1696 = vlog2.pop %v1695
  %v1697 = vmul.f32 %v1696, 0.6931472
  %v1698 = vmul.f32 -0.5, %v1608
  %v1699 = vadd.f32 %v1698, 1.0
  %v1700 = vmul.f32 %v1699, %v1608
  %v1701 = vand.u32 2147483647, %v1608
  %vm1702 = vcmp.lt.f32.partialorder %v1701, 0.0004427343
  %v1703 = vsel %vm1702, %v1700, %v1697
  %v1704 = vadd.f32 %v1610, 1.0
  %v1705 = vlog2.pop %v1704
  %v1706 = vmul.f32 %v1705, 0.6931472
  %v1707 = vmul.f32 -0.5, %v1610
  %v1708 = vadd.f32 %v1707, 1.0
  %v1709 = vmul.f32 %v1708, %v1610
  %v1710 = vand.u32 2147483647, %v1610
  %vm1711 = vcmp.lt.f32.partialorder %v1710, 0.0004427343
  %v1712 = vsel %vm1711, %v1709, %v1706
  %v1713 = vadd.f32 %v1612, 1.0
  %v1714 = vlog2.pop %v1713
  %v1715 = vmul.f32 %v1714, 0.6931472
  %v1716 = vmul.f32 -0.5, %v1612
  %v1717 = vadd.f32 %v1716, 1.0
  %v1718 = vmul.f32 %v1717, %v1612
  %v1719 = vand.u32 2147483647, %v1612
  %vm1720 = vcmp.lt.f32.partialorder %v1719, 0.0004427343
  %v1721 = vsel %vm1720, %v1718, %v1715
  %v1722 = vadd.f32 %v1614, 1.0
  %v1723 = vlog2.pop %v1722
  %v1724 = vmul.f32 %v1723, 0.6931472
  %v1725 = vmul.f32 -0.5, %v1614
  %v1726 = vadd.f32 %v1725, 1.0
  %v1727 = vmul.f32 %v1726, %v1614
  %v1728 = vand.u32 2147483647, %v1614
  %vm1729 = vcmp.lt.f32.partialorder %v1728, 0.0004427343
  %v1730 = vsel %vm1729, %v1727, %v1724
  %v1731 = vadd.f32 %v1616, 1.0
  %v1732 = vlog2.pop %v1731
  %v1733 = vmul.f32 %v1732, 0.6931472
  %v1734 = vmul.f32 -0.5, %v1616
  %v1735 = vadd.f32 %v1734, 1.0
  %v1736 = vmul.f32 %v1735, %v1616
  %v1737 = vand.u32 2147483647, %v1616
  %vm1738 = vcmp.lt.f32.partialorder %v1737, 0.0004427343
  %v1739 = vsel %vm1738, %v1736, %v1733
  %v1740 = vadd.f32 %v1618, 1.0
  %v1741 = vlog2.pop %v1740
  %v1742 = vmul.f32 %v1741, 0.6931472
  %v1743 = vmul.f32 -0.5, %v1618
  %v1744 = vadd.f32 %v1743, 1.0
  %v1745 = vmul.f32 %v1744, %v1618
  %v1746 = vand.u32 2147483647, %v1618
  %vm1747 = vcmp.lt.f32.partialorder %v1746, 0.0004427343
  %v1748 = vsel %vm1747, %v1745, %v1742
  %v1749 = vadd.f32 %v1620, 1.0
  %v1750 = vlog2.pop %v1749
  %v1751 = vmul.f32 %v1750, 0.6931472
  %v1752 = vmul.f32 -0.5, %v1620
  %v1753 = vadd.f32 %v1752, 1.0
  %v1754 = vmul.f32 %v1753, %v1620
  %v1755 = vand.u32 2147483647, %v1620
  %vm1756 = vcmp.lt.f32.partialorder %v1755, 0.0004427343
  %v1757 = vsel %vm1756, %v1754, %v1751
  %v1758 = vadd.f32 %v1622, 1.0
  %v1759 = vlog2.pop %v1758
  %v1760 = vmul.f32 %v1759, 0.6931472
  %v1761 = vmul.f32 -0.5, %v1622
  %v1762 = vadd.f32 %v1761, 1.0
  %v1763 = vmul.f32 %v1762, %v1622
  %v1764 = vand.u32 2147483647, %v1622
  %vm1765 = vcmp.lt.f32.partialorder %v1764, 0.0004427343
  %v1766 = vsel %vm1765, %v1763, %v1760
  %v1767 = vadd.f32 %v1543, %v1631
  %v1768 = vadd.f32 %v1544, %v1640
  %v1769 = vadd.f32 %v1545, %v1649
  %v1770 = vadd.f32 %v1546, %v1658
  %v1771 = vadd.f32 %v1547, %v1667
  %v1772 = vadd.f32 %v1548, %v1676
  %v1773 = vadd.f32 %v1549, %v1685
  %v1774 = vadd.f32 %v1550, %v1694
  %v1775 = vadd.f32 %v1551, %v1703
  %v1776 = vadd.f32 %v1552, %v1712
  %v1777 = vadd.f32 %v1553, %v1721
  %v1778 = vadd.f32 %v1554, %v1730
  %v1779 = vadd.f32 %v1555, %v1739
  %v1780 = vadd.f32 %v1556, %v1748
  %v1781 = vadd.f32 %v1557, %v1757
  %v1782 = vadd.f32 %v1558, %v1766
  %vm1783 = vcmask 7168
  %1784 = vst.msk [vmem:[%s7] sm:$0xff] %vm1783, %v1767
  %1785 = vst.msk [vmem:[%s7 + $0x8] sm:$0xff] %vm1783, %v1768
  %1786 = vst.msk [vmem:[%s7 + $0x10] sm:$0xff] %vm1783, %v1769
  %1787 = vst.msk [vmem:[%s7 + $0x18] sm:$0xff] %vm1783, %v1770
  %1788 = vst.msk [vmem:[%s7 + $0x20] sm:$0xff] %vm1783, %v1771
  %1789 = vst.msk [vmem:[%s7 + $0x28] sm:$0xff] %vm1783, %v1772
  %1790 = vst.msk [vmem:[%s7 + $0x30] sm:$0xff] %vm1783, %v1773
  %1791 = vst.msk [vmem:[%s7 + $0x38] sm:$0xff] %vm1783, %v1774
  %1792 = vst.msk [vmem:[%s7 + $0x40] sm:$0xff] %vm1783, %v1775
  %1793 = vst.msk [vmem:[%s7 + $0x48] sm:$0xff] %vm1783, %v1776
  %1794 = vst.msk [vmem:[%s7 + $0x50] sm:$0xff] %vm1783, %v1777
  %1795 = vst.msk [vmem:[%s7 + $0x58] sm:$0xff] %vm1783, %v1778
  %1796 = vst.msk [vmem:[%s7 + $0x60] sm:$0xff] %vm1783, %v1779
  %1797 = vst.msk [vmem:[%s7 + $0x68] sm:$0xff] %vm1783, %v1780
  %1798 = vst.msk [vmem:[%s7 + $0x70] sm:$0xff] %vm1783, %v1781
  %1799 = vst.msk [vmem:[%s7 + $0x78] sm:$0xff] %vm1783, %v1782
  %vm1800 = vcmp.ge.f32.partialorder %v1285, %v821
  %vm1801 = vcmp.ge.f32.partialorder %v1300, %v836
  %vm1802 = vcmp.ge.f32.partialorder %v1315, %v851
  %vm1803 = vcmp.ge.f32.partialorder %v1330, %v866
  %vm1804 = vcmp.ge.f32.partialorder %v1345, %v881
  %vm1805 = vcmp.ge.f32.partialorder %v1360, %v896
  %vm1806 = vcmp.ge.f32.partialorder %v1375, %v911
  %vm1807 = vcmp.ge.f32.partialorder %v1390, %v926
  %vm1808 = vcmp.ge.f32.partialorder %v1405, %v941
  %vm1809 = vcmp.ge.f32.partialorder %v1420, %v956
  %vm1810 = vcmp.ge.f32.partialorder %v1435, %v971
  %vm1811 = vcmp.ge.f32.partialorder %v1450, %v986
  %vm1812 = vcmp.ge.f32.partialorder %v1465, %v1001
  %vm1813 = vcmp.ge.f32.partialorder %v1480, %v1016
  %vm1814 = vcmp.ge.f32.partialorder %v1495, %v1031
  %vm1815 = vcmp.ge.f32.partialorder %v1510, %v1046
  %v1816 = vsel %vm1800, 1, 0
  %v1817 = vsel %vm1801, 1, 0
  %v1818 = vsel %vm1802, 1, 0
  %v1819 = vsel %vm1803, 1, 0
  %v1820 = vsel %vm1804, 1, 0
  %v1821 = vsel %vm1805, 1, 0
  %v1822 = vsel %vm1806, 1, 0
  %v1823 = vsel %vm1807, 1, 0
  %v1824 = vsel %vm1808, 1, 0
  %v1825 = vsel %vm1809, 1, 0
  %v1826 = vsel %vm1810, 1, 0
  %v1827 = vsel %vm1811, 1, 0
  %v1828 = vsel %vm1812, 1, 0
  %v1829 = vsel %vm1813, 1, 0
  %v1830 = vsel %vm1814, 1, 0
  %v1831 = vsel %vm1815, 1, 0
  %v1832 = vcvt.s32.f32 %v1816
  %v1833 = vcvt.s32.f32 %v1817
  %v1834 = vcvt.s32.f32 %v1818
  %v1835 = vcvt.s32.f32 %v1819
  %v1836 = vcvt.s32.f32 %v1820
  %v1837 = vcvt.s32.f32 %v1821
  %v1838 = vcvt.s32.f32 %v1822
  %v1839 = vcvt.s32.f32 %v1823
  %v1840 = vcvt.s32.f32 %v1824
  %v1841 = vcvt.s32.f32 %v1825
  %v1842 = vcvt.s32.f32 %v1826
  %v1843 = vcvt.s32.f32 %v1827
  %v1844 = vcvt.s32.f32 %v1828
  %v1845 = vcvt.s32.f32 %v1829
  %v1846 = vcvt.s32.f32 %v1830
  %v1847 = vcvt.s32.f32 %v1831
  %1848 = vst.msk [vmem:[%s8] sm:$0xff] %vm1783, %v1832
  %1849 = vst.msk [vmem:[%s8 + $0x8] sm:$0xff] %vm1783, %v1833
  %1850 = vst.msk [vmem:[%s8 + $0x10] sm:$0xff] %vm1783, %v1834
  %1851 = vst.msk [vmem:[%s8 + $0x18] sm:$0xff] %vm1783, %v1835
  %1852 = vst.msk [vmem:[%s8 + $0x20] sm:$0xff] %vm1783, %v1836
  %1853 = vst.msk [vmem:[%s8 + $0x28] sm:$0xff] %vm1783, %v1837
  %1854 = vst.msk [vmem:[%s8 + $0x30] sm:$0xff] %vm1783, %v1838
  %1855 = vst.msk [vmem:[%s8 + $0x38] sm:$0xff] %vm1783, %v1839
  %1856 = vst.msk [vmem:[%s8 + $0x40] sm:$0xff] %vm1783, %v1840
  %1857 = vst.msk [vmem:[%s8 + $0x48] sm:$0xff] %vm1783, %v1841
  %1858 = vst.msk [vmem:[%s8 + $0x50] sm:$0xff] %vm1783, %v1842
  %1859 = vst.msk [vmem:[%s8 + $0x58] sm:$0xff] %vm1783, %v1843
  %1860 = vst.msk [vmem:[%s8 + $0x60] sm:$0xff] %vm1783, %v1844
  %1861 = vst.msk [vmem:[%s8 + $0x68] sm:$0xff] %vm1783, %v1845
  %1862 = vst.msk [vmem:[%s8 + $0x70] sm:$0xff] %vm1783, %v1846
  %1863 = vst.msk [vmem:[%s8 + $0x78] sm:$0xff] %vm1783, %v1847
  // Predicated region
  $region30: #{tpu_custom_call.1} parent=0 // pred_check
    _
  $region31: #{tpu_custom_call.1} parent=0 // pred_check_branch
    %1865 = sbr.rel (0) target = $region33
  $region32: #{tpu_custom_call.1} parent=0 // pred_region
    _
  $region33: #{tpu_custom_call.1} parent=0 // pred_fallthru
    _
  // Predicated region
  $region34: #{tpu_custom_call.1} parent=0 // pred_check
    _
  $region35: #{tpu_custom_call.1} parent=0 // pred_check_branch
    %1867 = sbr.rel (0) target = $region37
  $region36: #{tpu_custom_call.1} parent=0 // pred_region
    _
  $region37: #{tpu_custom_call.1} parent=0 // pred_fallthru
    _
  // Predicated region
  $region38: #{tpu_custom_call.1} parent=0 // pred_check
    _
  $region39: #{tpu_custom_call.1} parent=0 // pred_check_branch
    %1869 = sbr.rel (0) target = $region41
  $region40: #{tpu_custom_call.1} parent=0 // pred_region
    _
  $region41: #{tpu_custom_call.1} parent=0 // pred_fallthru
    _
  // Predicated region
  $region42: #{tpu_custom_call.1} parent=0 // pred_check
    _
  $region43: #{tpu_custom_call.1} parent=0 // pred_check_branch
    %1871 = sbr.rel (0) target = $region45
  $region44: #{tpu_custom_call.1} parent=0 // pred_region
    _
  $region45: #{tpu_custom_call.1} parent=0 // pred_fallthru
    _

</llo_original>
